<compile_context>
chip_gen: v7x
topology: tpu7x:2x2x1
jax: 0.10.0
libtpu: 0.0.40
codegen_flags: <defaults>
</compile_context>

<pallas_src>
import numpy as np

import jax
import jax.numpy as jnp
from jax import lax
from jax.experimental import pallas as pl


# ----------------------------------------------------------------------------
# Model configuration (ConvVAE.construct defaults, bn=False)
# ----------------------------------------------------------------------------
INPUT_SIZE = (16, 16, 4)          # (H, W, C); external x is NCHW (N, 4, 16, 16)
LATENT_DIM = 8
BASE_CHANNEL = 16

ENC_CFG = [                       # Conv2d(k=3, s=2, pad=k//2) + ReLU
    {"channel": 8, "kernel": 3, "stride": 2},
    {"channel": 16, "kernel": 3, "stride": 2},
]
DEC_CFG = [                       # ReLU + ConvTranspose2d(k=4, s=2, pad=1)
    {"channel": 8, "kernel": 4, "stride": 2},
    {"channel": 8, "kernel": 4, "stride": 2},
]
# TODO(synk): the bn=True (BatchNorm2d) branch of the config is not implemented.

_FACTOR = 4                       # product of encoder strides
BASE_SIZE = (BASE_CHANNEL, INPUT_SIZE[0] // _FACTOR, INPUT_SIZE[1] // _FACTOR)   # (16, 4, 4)


# ----------------------------------------------------------------------------
# Shared layer math: works on Pallas Refs (kernel) and on plain arrays (f32 check)
# ----------------------------------------------------------------------------
def _layer(h, r, m, b, relu):
    """out = [relu](bias + sum_dy (R[dy] @ h) @ M_dy), with the M_dy vstacked in `m`.

    h : (rows_in, Wi*Ci)  activation (f32)
    r : (k, rows_out, rows_in)   0/1 row-gather (stride/pad/phase + batch blocks)
    m : (k*Wi*Ci, Wo*Co)         banded folded weights
    b : (1, Wo*Co) f32 bias row, or None (bias already folded into m)
    """
    m_val = m[...]
    cd = m_val.dtype                                  # bf16 in-kernel, f32 in the check
    hb = h.astype(cd)
    parts = [jnp.dot(r[dy], hb, preferred_element_type=jnp.float32)
             for dy in range(r.shape[0])]             # k row-gather dots
    patches = jnp.concatenate(parts, axis=1).astype(cd)
    out = jnp.dot(patches, m_val, preferred_element_type=jnp.float32)  # one weight dot
    if b is not None:
        out = out + b[...]
    if relu:
        out = jnp.maximum(out, 0.0)
    return out


def _vae_math(x2d, eps, consts):
    (r1, m1, b1, r2, m2, b2,
     rf, mf, bfc, sd, md,
     rt1, mt1, bt1, rt2, mt2, bt2,
     rfn, mfn, bfn) = consts

    h = _layer(x2d, r1, m1, b1, relu=True)            # enc conv1 + ReLU
    h = _layer(h, r2, m2, b2, relu=True)              # enc conv2 + ReLU
    mu_ls = _layer(h, rf, mf, bfc, relu=False)        # enc fc -> (N, 2L) = [mu | logstd]
    L = mu_ls.shape[1] // 2
    mu, ls = mu_ls[:, :L], mu_ls[:, L:]
    z = eps * jnp.exp(ls) + mu                        # reparameterize (f32, EUP exp)
    z_aug = jnp.concatenate([z, jnp.ones_like(z[:, :1])], axis=1)   # ones col carries bias
    h = _layer(z_aug, sd, md, None, relu=True)        # dec fc (+ decoder's leading ReLU)
    h = _layer(h, rt1, mt1, bt1, relu=True)           # ConvTranspose1 + ReLU
    h = _layer(h, rt2, mt2, bt2, relu=True)           # ConvTranspose2 + ReLU
    h = _layer(h, rfn, mfn, bfn, relu=False)          # final Conv2d
    return h, mu_ls


def _vae_kernel(x_ref, eps_ref, *rest):
    consts = rest[:-2]
    out_ref, muls_ref = rest[-2], rest[-1]
    out, mu_ls = _vae_math(x_ref[...], eps_ref[...], consts)
    out_ref[...] = out
    muls_ref[...] = mu_ls


def _fused_forward(x2d, eps, consts):
    """Single pallas_call: whole-array VMEM blocks, no grid."""
    H, W, C = INPUT_SIZE
    n_rows = x2d.shape[0]                              # N*H
    N = eps.shape[0]
    return pl.pallas_call(
        _vae_kernel,
        out_shape=(
            jax.ShapeDtypeStruct((n_rows, W * C), jnp.float32),      # recon, (N*H, W*C)
            jax.ShapeDtypeStruct((N, 2 * LATENT_DIM), jnp.float32),  # [mu | logstd]
        ),
    )(x2d, eps, *consts)


def convvae_forward(x_nchw, consts, eps):
    N = x_nchw.shape[0]
    H, W, C = INPUT_SIZE
    x2d = jnp.transpose(x_nchw, (0, 2, 3, 1)).reshape(N * H, W * C)   # NCHW -> (N*H, W*C), once
    out2d, mu_ls = _fused_forward(x2d, eps, consts)
    x_recon = jnp.transpose(out2d.reshape(N, H, W, C), (0, 3, 1, 2))  # back to NCHW, once
    mu_z = mu_ls[:, :LATENT_DIM]
    logstd_z = mu_ls[:, LATENT_DIM:]
    logstd_noise = jnp.zeros_like(x_recon)
    return x_recon, logstd_noise, mu_z, logstd_z


# ----------------------------------------------------------------------------
# Parameter init (PyTorch layouts)
# ----------------------------------------------------------------------------
def init_params(key):
    keys = iter(jax.random.split(key, 16))

    def nrm(shape, scale=0.1):
        return scale * jax.random.normal(next(keys), shape, dtype=jnp.float32)

    params = {}
    in_channels = [INPUT_SIZE[2]] + [d["channel"] for d in ENC_CFG[:-1]]
    params["enc_convs"] = [
        {"w": nrm((cfg["channel"], cin, cfg["kernel"], cfg["kernel"])),
         "b": nrm((cfg["channel"],))}
        for cin, cfg in zip(in_channels, ENC_CFG)
    ]
    conv_out_dim = (INPUT_SIZE[0] // _FACTOR) * (INPUT_SIZE[1] // _FACTOR) * ENC_CFG[-1]["channel"]
    params["enc_fc"] = {"w": nrm((2 * LATENT_DIM, conv_out_dim)),
                        "b": nrm((2 * LATENT_DIM,))}
    base_prod = BASE_SIZE[0] * BASE_SIZE[1] * BASE_SIZE[2]
    params["dec_fc"] = {"w": nrm((base_prod, LATENT_DIM)), "b": nrm((base_prod,))}
    dec_in = [BASE_CHANNEL] + [d["channel"] for d in DEC_CFG[:-1]]
    params["dec_convt"] = [
        {"w": nrm((cin, cfg["channel"], cfg["kernel"], cfg["kernel"])),
         "b": nrm((cfg["channel"],))}
        for cin, cfg in zip(dec_in, DEC_CFG)
    ]
    params["dec_final"] = {"w": nrm((INPUT_SIZE[2], DEC_CFG[-1]["channel"], 3, 3)),
                           "b": nrm((INPUT_SIZE[2],))}
    return params


# ----------------------------------------------------------------------------
# One-time folding of every layer into (R, M, bias) banded-matmul form (host, numpy)
# ----------------------------------------------------------------------------
def _conv_rm(W, b, Hi, Wi, s, p):
    """PyTorch Conv2d: W (Co,Ci,k,k), b (Co,), stride s, padding p, on an (Hi,Wi) map."""
    Co, Ci, k, _ = W.shape
    Ho = (Hi + 2 * p - k) // s + 1
    Wo = (Wi + 2 * p - k) // s + 1
    R = np.zeros((k, Ho, Hi), np.float32)
    M = np.zeros((k, Wi * Ci, Wo * Co), np.float32)
    for dy in range(k):
        for yo in range(Ho):
            yi = s * yo + dy - p
            if 0 <= yi < Hi:
                R[dy, yo, yi] = 1.0
        for dx in range(k):
            for xo in range(Wo):
                xi = s * xo + dx - p
                if 0 <= xi < Wi:
                    M[dy, xi * Ci:(xi + 1) * Ci, xo * Co:(xo + 1) * Co] += W[:, :, dy, dx].T
    bias = np.tile(b, Wo)[None, :].astype(np.float32)
    return R, M.reshape(k * Wi * Ci, Wo * Co), bias


def _convT_rm(W, b, Hi, Wi, s, p):
    """PyTorch ConvTranspose2d: W (Ci,Co,k,k), b (Co,), stride s, padding p.
    out[yo,xo] += x[yi,xi]*W[.,.,dy,dx] where yo = s*yi - p + dy (and same for x),
    i.e. the sub-pixel phases are baked in and no dilated zero tensor ever exists."""
    Ci, Co, k, _ = W.shape
    Ho = (Hi - 1) * s - 2 * p + k
    Wo = (Wi - 1) * s - 2 * p + k
    R = np.zeros((k, Ho, Hi), np.float32)
    M = np.zeros((k, Wi * Ci, Wo * Co), np.float32)
    for dy in range(k):
        for yi in range(Hi):
            yo = s * yi - p + dy
            if 0 <= yo < Ho:
                R[dy, yo, yi] = 1.0
        for dx in range(k):
            for xi in range(Wi):
                xo = s * xi - p + dx
                if 0 <= xo < Wo:
                    M[dy, xi * Ci:(xi + 1) * Ci, xo * Co:(xo + 1) * Co] += W[:, :, dy, dx]
    bias = np.tile(b, Wo)[None, :].astype(np.float32)
    return R, M.reshape(k * Wi * Ci, Wo * Co), bias


def _encfc_rm(Wfc, bfc, Hc, Wc, Cc):
    """nn.Linear(Hc*Wc*Cc -> 2L) consuming the NCHW flatten, as a kernel-(Hc,Wc) 'conv'.
    Produces [mu | logstd] in ONE slab so the kernel needs a single fc matmul."""
    twoL = Wfc.shape[0]
    R = np.zeros((Hc, 1, Hc), np.float32)
    M = np.zeros((Hc, Wc * Cc, twoL), np.float32)
    for dy in range(Hc):
        R[dy, 0, dy] = 1.0
        for xi in range(Wc):
            for ci in range(Cc):
                M[dy, xi * Cc + ci, :] = Wfc[:, ci * Hc * Wc + dy * Wc + xi]
    bias = bfc[None, :].astype(np.float32)
    return R, M.reshape(Hc * Wc * Cc, twoL), bias


def _decfc_rm(Wd, bd, Cb, Hb, Wb, L):
    """nn.Linear(L -> Cb*Hb*Wb) + NCHW reshape, emitting rows (n,y) / cols (x,c).
    The per-row bias pattern is folded into M via the ones column appended to z."""
    S = np.zeros((Hb, Hb, 1), np.float32)
    M = np.zeros((Hb, L + 1, Wb * Cb), np.float32)
    for y in range(Hb):
        S[y, y, 0] = 1.0
        for x in range(Wb):
            for c in range(Cb):
                j = c * Hb * Wb + y * Wb + x
                M[y, :L, x * Cb + c] = Wd[j, :]
                M[y, L, x * Cb + c] = bd[j]
    return S, M.reshape(Hb * (L + 1), Wb * Cb)


def prepare_constants(params, batch):
    """Fold all weights into the kernel's (R, M, bias) form.  Returns
    (kernel constants: R/M in bf16, bias f32) and (all-f32 copy for the reference check)."""
    H, W, _ = INPUT_SIZE
    kern, f32 = [], []

    def add(R, M, bias):
        Rb = np.stack([np.kron(np.eye(batch, dtype=np.float32), R[i])
                       for i in range(R.shape[0])])          # bake batch block structure
        f32.extend([jnp.asarray(Rb), jnp.asarray(M)])
        kern.extend([jnp.asarray(Rb, dtype=jnp.bfloat16),
                     jnp.asarray(M, dtype=jnp.bfloat16)])
        if bias is not None:
            f32.append(jnp.asarray(bias))
            kern.append(jnp.asarray(bias))                    # bias stays f32 (epilogue)

    npf = lambda a: np.asarray(a, dtype=np.float32)

    hi, wi = H, W
    for p, cfg in zip(params["enc_convs"], ENC_CFG):
        k, s = cfg["kernel"], cfg["stride"]
        R, M, b = _conv_rm(npf(p["w"]), npf(p["b"]), hi, wi, s, k // 2)
        add(R, M, b)
        hi = (hi + 2 * (k // 2) - k) // s + 1
        wi = (wi + 2 * (k // 2) - k) // s + 1

    R, M, b = _encfc_rm(npf(params["enc_fc"]["w"]), npf(params["enc_fc"]["b"]),
                        hi, wi, ENC_CFG[-1]["channel"])
    add(R, M, b)

    Cb, Hb, Wb = BASE_SIZE
    S, Md = _decfc_rm(npf(params["dec_fc"]["w"]), npf(params["dec_fc"]["b"]),
                      Cb, Hb, Wb, LATENT_DIM)
    add(S, Md, None)

    hi, wi = Hb, Wb
    for p, cfg in zip(params["dec_convt"], DEC_CFG):
        k, s = cfg["kernel"], cfg["stride"]
        R, M, b = _convT_rm(npf(p["w"]), npf(p["b"]), hi, wi, s, 1)
        add(R, M, b)
        hi = (hi - 1) * s - 2 + k
        wi = (wi - 1) * s - 2 + k

    R, M, b = _conv_rm(npf(params["dec_final"]["w"]), npf(params["dec_final"]["b"]),
                       hi, wi, 1, 1)
    add(R, M, b)

    return tuple(kern), tuple(f32)


# ----------------------------------------------------------------------------
# Pure-JAX f32 reference (matches the PyTorch module)
# ----------------------------------------------------------------------------
def reference_forward(x_nchw, params, eps):
    dn = ("NCHW", "OIHW", "NCHW")
    hp = lax.Precision.HIGHEST
    h = x_nchw
    for p, cfg in zip(params["enc_convs"], ENC_CFG):
        k, s = cfg["kernel"], cfg["stride"]
        pad = k // 2
        h = lax.conv_general_dilated(h, p["w"], (s, s), [(pad, pad), (pad, pad)],
                                     dimension_numbers=dn, precision=hp)
        h = jnp.maximum(h + p["b"][None, :, None, None], 0.0)
    N = x_nchw.shape[0]
    feat = h.reshape(N, -1)
    fc = jnp.dot(feat, params["enc_fc"]["w"].T, precision=hp) + params["enc_fc"]["b"]
    mu, ls = fc[:, :LATENT_DIM], fc[:, LATENT_DIM:]
    z = eps * jnp.exp(ls) + mu
    base = jnp.dot(z, params["dec_fc"]["w"].T, precision=hp) + params["dec_fc"]["b"]
    h = base.reshape(N, *BASE_SIZE)
    for p, cfg in zip(params["dec_convt"], DEC_CFG):
        k, s = cfg["kernel"], cfg["stride"]
        q = k - 1 - 1                                          # kernel - 1 - padding(=1)
        w_conv = jnp.flip(p["w"], (2, 3)).transpose(1, 0, 2, 3)   # (Ci,Co,k,k)->(Co,Ci,k,k)
        h = jnp.maximum(h, 0.0)
        h = lax.conv_general_dilated(h, w_conv, (1, 1), [(q, q), (q, q)],
                                     lhs_dilation=(s, s), dimension_numbers=dn, precision=hp)
        h = h + p["b"][None, :, None, None]
    h = jnp.maximum(h, 0.0)
    h = lax.conv_general_dilated(h, params["dec_final"]["w"], (1, 1), [(1, 1), (1, 1)],
                                 dimension_numbers=dn, precision=hp)
    h = h + params["dec_final"]["b"][None, :, None, None]
    return h, mu, ls


# ----------------------------------------------------------------------------
if __name__ == "__main__":
    key = jax.random.PRNGKey(0)
    k_param, k_x, k_eps = jax.random.split(key, 3)

    N = 2
    params = init_params(k_param)
    x = jax.random.normal(k_x, (N, INPUT_SIZE[2], INPUT_SIZE[0], INPUT_SIZE[1]),
                          dtype=jnp.float32)                  # NCHW
    eps = jax.random.normal(k_eps, (N, LATENT_DIM), dtype=jnp.float32)

    consts, consts_f32 = prepare_constants(params, N)         # one-time weight folding

    # --- check the folded (R, M) construction in f32 against a pure-JAX reference ---
    H, W, C = INPUT_SIZE
    x2d = jnp.transpose(x, (0, 2, 3, 1)).reshape(N * H, W * C)
    ref_recon, ref_mu, ref_ls = reference_forward(x, params, eps)
    with jax.default_matmul_precision("float32"):
        chk_out2d, chk_muls = _vae_math(x2d, eps, consts_f32)
    chk_recon = jnp.transpose(chk_out2d.reshape(N, H, W, C), (0, 3, 1, 2))
    assert jnp.max(jnp.abs(chk_recon - ref_recon)) < 1e-3
    assert jnp.max(jnp.abs(chk_muls[:, :LATENT_DIM] - ref_mu)) < 1e-3
    assert jnp.max(jnp.abs(chk_muls[:, LATENT_DIM:] - ref_ls)) < 1e-3

    # --- run the single fused Pallas kernel ---
    fwd = jax.jit(convvae_forward)
    x_recon, logstd_noise, mu_z, logstd_z = fwd(x, consts, eps)
    jax.block_until_ready((x_recon, logstd_noise, mu_z, logstd_z))

    assert x_recon.shape == x.shape
    assert logstd_noise.shape == x.shape
    assert mu_z.shape == (N, LATENT_DIM)
    assert logstd_z.shape == (N, LATENT_DIM)

    # --- loose tolerance: kernel uses bf16 matmul operands (f32 accumulate) ---
    assert jnp.max(jnp.abs(x_recon - ref_recon)) < 5e-2
    assert jnp.max(jnp.abs(mu_z - ref_mu)) < 5e-2
    assert jnp.max(jnp.abs(logstd_z - ref_ls)) < 5e-2

    print("KERNEL_OK")
</pallas_src>

<mosaic_0001>
module attributes {stable_mosaic.version = 11 : i64} {
  func.func @_vae_kernel(%arg0: memref<32x64xf32, #tpu.memory_space<vmem>>, %arg1: memref<2x8xf32, #tpu.memory_space<vmem>>, %arg2: memref<3x16x32xbf16, #tpu.memory_space<vmem>>, %arg3: memref<192x64xbf16, #tpu.memory_space<vmem>>, %arg4: memref<1x64xf32, #tpu.memory_space<vmem>>, %arg5: memref<3x8x16xbf16, #tpu.memory_space<vmem>>, %arg6: memref<192x64xbf16, #tpu.memory_space<vmem>>, %arg7: memref<1x64xf32, #tpu.memory_space<vmem>>, %arg8: memref<4x2x8xbf16, #tpu.memory_space<vmem>>, %arg9: memref<256x16xbf16, #tpu.memory_space<vmem>>, %arg10: memref<1x16xf32, #tpu.memory_space<vmem>>, %arg11: memref<4x8x2xbf16, #tpu.memory_space<vmem>>, %arg12: memref<36x64xbf16, #tpu.memory_space<vmem>>, %arg13: memref<4x16x8xbf16, #tpu.memory_space<vmem>>, %arg14: memref<256x64xbf16, #tpu.memory_space<vmem>>, %arg15: memref<1x64xf32, #tpu.memory_space<vmem>>, %arg16: memref<4x32x16xbf16, #tpu.memory_space<vmem>>, %arg17: memref<256x128xbf16, #tpu.memory_space<vmem>>, %arg18: memref<1x128xf32, #tpu.memory_space<vmem>>, %arg19: memref<3x32x32xbf16, #tpu.memory_space<vmem>>, %arg20: memref<384x64xbf16, #tpu.memory_space<vmem>>, %arg21: memref<1x64xf32, #tpu.memory_space<vmem>>, %arg22: memref<32x64xf32, #tpu.memory_space<vmem>>, %arg23: memref<2x16xf32, #tpu.memory_space<vmem>>) attributes {dimension_semantics = [], scalar_prefetch = 0 : i64, scratch_operands = 0 : i64, tpu.core_type = #tpu.core_type<tc>} {
    %c0 = arith.constant 0 : index
    %c0_0 = arith.constant 0 : index
    %0 = vector.load %arg0[%c0, %c0_0] : memref<32x64xf32, #tpu.memory_space<vmem>>, vector<32x64xf32>
    %c0_1 = arith.constant 0 : index
    %c0_2 = arith.constant 0 : index
    %1 = vector.load %arg1[%c0_1, %c0_2] : memref<2x8xf32, #tpu.memory_space<vmem>>, vector<2x8xf32>
    %c0_3 = arith.constant 0 : index
    %c0_4 = arith.constant 0 : index
    %2 = vector.load %arg3[%c0_3, %c0_4] : memref<192x64xbf16, #tpu.memory_space<vmem>>, vector<192x64xbf16>
    %3 = arith.truncf %0 : vector<32x64xf32> to vector<32x64xbf16>
    %c0_5 = arith.constant 0 : index
    %c0_6 = arith.constant 0 : index
    %c0_7 = arith.constant 0 : index
    %4 = vector.load %arg2[%c0_5, %c0_6, %c0_7] : memref<3x16x32xbf16, #tpu.memory_space<vmem>>, vector<1x16x32xbf16>
    %5 = vector.shape_cast %4 : vector<1x16x32xbf16> to vector<16x32xbf16>
    %cst = arith.constant dense<0.000000e+00> : vector<16x64xf32>
    %6 = tpu.matmul %5, %3, %cst {dimension_numbers = #tpu.dot_dimension_numbers<[1], [0], [0], [1], [0, 0, 1, 1], [], []>} : vector<16x32xbf16>, vector<32x64xbf16>, vector<16x64xf32> -> vector<16x64xf32>
    %c1 = arith.constant 1 : index
    %c0_8 = arith.constant 0 : index
    %c0_9 = arith.constant 0 : index
    %7 = vector.load %arg2[%c1, %c0_8, %c0_9] : memref<3x16x32xbf16, #tpu.memory_space<vmem>>, vector<1x16x32xbf16>
    %8 = vector.shape_cast %7 : vector<1x16x32xbf16> to vector<16x32xbf16>
    %cst_10 = arith.constant dense<0.000000e+00> : vector<16x64xf32>
    %9 = tpu.matmul %8, %3, %cst_10 {dimension_numbers = #tpu.dot_dimension_numbers<[1], [0], [0], [1], [0, 0, 1, 1], [], []>} : vector<16x32xbf16>, vector<32x64xbf16>, vector<16x64xf32> -> vector<16x64xf32>
    %c2 = arith.constant 2 : index
    %c0_11 = arith.constant 0 : index
    %c0_12 = arith.constant 0 : index
    %10 = vector.load %arg2[%c2, %c0_11, %c0_12] : memref<3x16x32xbf16, #tpu.memory_space<vmem>>, vector<1x16x32xbf16>
    %11 = vector.shape_cast %10 : vector<1x16x32xbf16> to vector<16x32xbf16>
    %cst_13 = arith.constant dense<0.000000e+00> : vector<16x64xf32>
    %12 = tpu.matmul %11, %3, %cst_13 {dimension_numbers = #tpu.dot_dimension_numbers<[1], [0], [0], [1], [0, 0, 1, 1], [], []>} : vector<16x32xbf16>, vector<32x64xbf16>, vector<16x64xf32> -> vector<16x64xf32>
    %13 = tpu.concatenate %6, %9, %12 in 1 : vector<16x64xf32>, vector<16x64xf32>, vector<16x64xf32> -> vector<16x192xf32>
    %14 = arith.truncf %13 : vector<16x192xf32> to vector<16x192xbf16>
    %cst_14 = arith.constant dense<0.000000e+00> : vector<16x64xf32>
    %15 = tpu.matmul %14, %2, %cst_14 {dimension_numbers = #tpu.dot_dimension_numbers<[1], [0], [0], [1], [0, 0, 1, 1], [], []>} : vector<16x192xbf16>, vector<192x64xbf16>, vector<16x64xf32> -> vector<16x64xf32>
    %c0_15 = arith.constant 0 : index
    %c0_16 = arith.constant 0 : index
    %16 = vector.load %arg4[%c0_15, %c0_16] : memref<1x64xf32, #tpu.memory_space<vmem>>, vector<1x64xf32>
    %17 = vector.broadcast %16 : vector<1x64xf32> to vector<16x64xf32>
    %18 = arith.addf %15, %17 : vector<16x64xf32>
    %cst_17 = arith.constant 0.000000e+00 : f32
    %19 = vector.broadcast %cst_17 : f32 to vector<16x64xf32>
    %20 = arith.maximumf %18, %19 : vector<16x64xf32>
    %c0_18 = arith.constant 0 : index
    %c0_19 = arith.constant 0 : index
    %21 = vector.load %arg6[%c0_18, %c0_19] : memref<192x64xbf16, #tpu.memory_space<vmem>>, vector<192x64xbf16>
    %22 = arith.truncf %20 : vector<16x64xf32> to vector<16x64xbf16>
    %c0_20 = arith.constant 0 : index
    %c0_21 = arith.constant 0 : index
    %c0_22 = arith.constant 0 : index
    %23 = vector.load %arg5[%c0_20, %c0_21, %c0_22] : memref<3x8x16xbf16, #tpu.memory_space<vmem>>, vector<1x8x16xbf16>
    %24 = vector.shape_cast %23 : vector<1x8x16xbf16> to vector<8x16xbf16>
    %cst_23 = arith.constant dense<0.000000e+00> : vector<8x64xf32>
    %25 = tpu.matmul %24, %22, %cst_23 {dimension_numbers = #tpu.dot_dimension_numbers<[1], [0], [0], [1], [0, 0, 1, 1], [], []>} : vector<8x16xbf16>, vector<16x64xbf16>, vector<8x64xf32> -> vector<8x64xf32>
    %c1_24 = arith.constant 1 : index
    %c0_25 = arith.constant 0 : index
    %c0_26 = arith.constant 0 : index
    %26 = vector.load %arg5[%c1_24, %c0_25, %c0_26] : memref<3x8x16xbf16, #tpu.memory_space<vmem>>, vector<1x8x16xbf16>
    %27 = vector.shape_cast %26 : vector<1x8x16xbf16> to vector<8x16xbf16>
    %cst_27 = arith.constant dense<0.000000e+00> : vector<8x64xf32>
    %28 = tpu.matmul %27, %22, %cst_27 {dimension_numbers = #tpu.dot_dimension_numbers<[1], [0], [0], [1], [0, 0, 1, 1], [], []>} : vector<8x16xbf16>, vector<16x64xbf16>, vector<8x64xf32> -> vector<8x64xf32>
    %c2_28 = arith.constant 2 : index
    %c0_29 = arith.constant 0 : index
    %c0_30 = arith.constant 0 : index
    %29 = vector.load %arg5[%c2_28, %c0_29, %c0_30] : memref<3x8x16xbf16, #tpu.memory_space<vmem>>, vector<1x8x16xbf16>
    %30 = vector.shape_cast %29 : vector<1x8x16xbf16> to vector<8x16xbf16>
    %cst_31 = arith.constant dense<0.000000e+00> : vector<8x64xf32>
    %31 = tpu.matmul %30, %22, %cst_31 {dimension_numbers = #tpu.dot_dimension_numbers<[1], [0], [0], [1], [0, 0, 1, 1], [], []>} : vector<8x16xbf16>, vector<16x64xbf16>, vector<8x64xf32> -> vector<8x64xf32>
    %32 = tpu.concatenate %25, %28, %31 in 1 : vector<8x64xf32>, vector<8x64xf32>, vector<8x64xf32> -> vector<8x192xf32>
    %33 = arith.truncf %32 : vector<8x192xf32> to vector<8x192xbf16>
    %cst_32 = arith.constant dense<0.000000e+00> : vector<8x64xf32>
    %34 = tpu.matmul %33, %21, %cst_32 {dimension_numbers = #tpu.dot_dimension_numbers<[1], [0], [0], [1], [0, 0, 1, 1], [], []>} : vector<8x192xbf16>, vector<192x64xbf16>, vector<8x64xf32> -> vector<8x64xf32>
    %c0_33 = arith.constant 0 : index
    %c0_34 = arith.constant 0 : index
    %35 = vector.load %arg7[%c0_33, %c0_34] : memref<1x64xf32, #tpu.memory_space<vmem>>, vector<1x64xf32>
    %36 = vector.broadcast %35 : vector<1x64xf32> to vector<8x64xf32>
    %37 = arith.addf %34, %36 : vector<8x64xf32>
    %cst_35 = arith.constant 0.000000e+00 : f32
    %38 = vector.broadcast %cst_35 : f32 to vector<8x64xf32>
    %39 = arith.maximumf %37, %38 : vector<8x64xf32>
    %c0_36 = arith.constant 0 : index
    %c0_37 = arith.constant 0 : index
    %40 = vector.load %arg9[%c0_36, %c0_37] : memref<256x16xbf16, #tpu.memory_space<vmem>>, vector<256x16xbf16>
    %41 = arith.truncf %39 : vector<8x64xf32> to vector<8x64xbf16>
    %c0_38 = arith.constant 0 : index
    %c0_39 = arith.constant 0 : index
    %c0_40 = arith.constant 0 : index
    %42 = vector.load %arg8[%c0_38, %c0_39, %c0_40] : memref<4x2x8xbf16, #tpu.memory_space<vmem>>, vector<1x2x8xbf16>
    %43 = vector.shape_cast %42 : vector<1x2x8xbf16> to vector<2x8xbf16>
    %cst_41 = arith.constant dense<0.000000e+00> : vector<2x64xf32>
    %44 = tpu.matmul %43, %41, %cst_41 {dimension_numbers = #tpu.dot_dimension_numbers<[1], [0], [0], [1], [0, 0, 1, 1], [], []>} : vector<2x8xbf16>, vector<8x64xbf16>, vector<2x64xf32> -> vector<2x64xf32>
    %c1_42 = arith.constant 1 : index
    %c0_43 = arith.constant 0 : index
    %c0_44 = arith.constant 0 : index
    %45 = vector.load %arg8[%c1_42, %c0_43, %c0_44] : memref<4x2x8xbf16, #tpu.memory_space<vmem>>, vector<1x2x8xbf16>
    %46 = vector.shape_cast %45 : vector<1x2x8xbf16> to vector<2x8xbf16>
    %cst_45 = arith.constant dense<0.000000e+00> : vector<2x64xf32>
    %47 = tpu.matmul %46, %41, %cst_45 {dimension_numbers = #tpu.dot_dimension_numbers<[1], [0], [0], [1], [0, 0, 1, 1], [], []>} : vector<2x8xbf16>, vector<8x64xbf16>, vector<2x64xf32> -> vector<2x64xf32>
    %c2_46 = arith.constant 2 : index
    %c0_47 = arith.constant 0 : index
    %c0_48 = arith.constant 0 : index
    %48 = vector.load %arg8[%c2_46, %c0_47, %c0_48] : memref<4x2x8xbf16, #tpu.memory_space<vmem>>, vector<1x2x8xbf16>
    %49 = vector.shape_cast %48 : vector<1x2x8xbf16> to vector<2x8xbf16>
    %cst_49 = arith.constant dense<0.000000e+00> : vector<2x64xf32>
    %50 = tpu.matmul %49, %41, %cst_49 {dimension_numbers = #tpu.dot_dimension_numbers<[1], [0], [0], [1], [0, 0, 1, 1], [], []>} : vector<2x8xbf16>, vector<8x64xbf16>, vector<2x64xf32> -> vector<2x64xf32>
    %c3 = arith.constant 3 : index
    %c0_50 = arith.constant 0 : index
    %c0_51 = arith.constant 0 : index
    %51 = vector.load %arg8[%c3, %c0_50, %c0_51] : memref<4x2x8xbf16, #tpu.memory_space<vmem>>, vector<1x2x8xbf16>
    %52 = vector.shape_cast %51 : vector<1x2x8xbf16> to vector<2x8xbf16>
    %cst_52 = arith.constant dense<0.000000e+00> : vector<2x64xf32>
    %53 = tpu.matmul %52, %41, %cst_52 {dimension_numbers = #tpu.dot_dimension_numbers<[1], [0], [0], [1], [0, 0, 1, 1], [], []>} : vector<2x8xbf16>, vector<8x64xbf16>, vector<2x64xf32> -> vector<2x64xf32>
    %54 = tpu.concatenate %44, %47, %50, %53 in 1 : vector<2x64xf32>, vector<2x64xf32>, vector<2x64xf32>, vector<2x64xf32> -> vector<2x256xf32>
    %55 = arith.truncf %54 : vector<2x256xf32> to vector<2x256xbf16>
    %cst_53 = arith.constant dense<0.000000e+00> : vector<2x16xf32>
    %56 = tpu.matmul %55, %40, %cst_53 {dimension_numbers = #tpu.dot_dimension_numbers<[1], [0], [0], [1], [0, 0, 1, 1], [], []>} : vector<2x256xbf16>, vector<256x16xbf16>, vector<2x16xf32> -> vector<2x16xf32>
    %c0_54 = arith.constant 0 : index
    %c0_55 = arith.constant 0 : index
    %57 = vector.load %arg10[%c0_54, %c0_55] : memref<1x16xf32, #tpu.memory_space<vmem>>, vector<1x16xf32>
    %58 = vector.broadcast %57 : vector<1x16xf32> to vector<2x16xf32>
    %59 = arith.addf %56, %58 : vector<2x16xf32>
    %60 = vector.extract_strided_slice %59 {offsets = [0, 0], sizes = [2, 8], strides = [1, 1]} : vector<2x16xf32> to vector<2x8xf32>
    %61 = vector.extract_strided_slice %59 {offsets = [0, 8], sizes = [2, 8], strides = [1, 1]} : vector<2x16xf32> to vector<2x8xf32>
    %62 = math.exp %61 : vector<2x8xf32>
    %63 = arith.mulf %1, %62 : vector<2x8xf32>
    %64 = arith.addf %63, %60 : vector<2x8xf32>
    %cst_56 = arith.constant 1.000000e+00 : f32
    %65 = vector.broadcast %cst_56 : f32 to vector<2x1xf32>
    %66 = tpu.concatenate %64, %65 in 1 : vector<2x8xf32>, vector<2x1xf32> -> vector<2x9xf32>
    %c0_57 = arith.constant 0 : index
    %c0_58 = arith.constant 0 : index
    %67 = vector.load %arg12[%c0_57, %c0_58] : memref<36x64xbf16, #tpu.memory_space<vmem>>, vector<36x64xbf16>
    %68 = arith.truncf %66 : vector<2x9xf32> to vector<2x9xbf16>
    %c0_59 = arith.constant 0 : index
    %c0_60 = arith.constant 0 : index
    %c0_61 = arith.constant 0 : index
    %69 = vector.load %arg11[%c0_59, %c0_60, %c0_61] : memref<4x8x2xbf16, #tpu.memory_space<vmem>>, vector<1x8x2xbf16>
    %70 = vector.shape_cast %69 : vector<1x8x2xbf16> to vector<8x2xbf16>
    %cst_62 = arith.constant dense<0.000000e+00> : vector<8x9xf32>
    %71 = tpu.matmul %70, %68, %cst_62 {dimension_numbers = #tpu.dot_dimension_numbers<[1], [0], [0], [1], [0, 0, 1, 1], [], []>} : vector<8x2xbf16>, vector<2x9xbf16>, vector<8x9xf32> -> vector<8x9xf32>
    %c1_63 = arith.constant 1 : index
    %c0_64 = arith.constant 0 : index
    %c0_65 = arith.constant 0 : index
    %72 = vector.load %arg11[%c1_63, %c0_64, %c0_65] : memref<4x8x2xbf16, #tpu.memory_space<vmem>>, vector<1x8x2xbf16>
    %73 = vector.shape_cast %72 : vector<1x8x2xbf16> to vector<8x2xbf16>
    %cst_66 = arith.constant dense<0.000000e+00> : vector<8x9xf32>
    %74 = tpu.matmul %73, %68, %cst_66 {dimension_numbers = #tpu.dot_dimension_numbers<[1], [0], [0], [1], [0, 0, 1, 1], [], []>} : vector<8x2xbf16>, vector<2x9xbf16>, vector<8x9xf32> -> vector<8x9xf32>
    %c2_67 = arith.constant 2 : index
    %c0_68 = arith.constant 0 : index
    %c0_69 = arith.constant 0 : index
    %75 = vector.load %arg11[%c2_67, %c0_68, %c0_69] : memref<4x8x2xbf16, #tpu.memory_space<vmem>>, vector<1x8x2xbf16>
    %76 = vector.shape_cast %75 : vector<1x8x2xbf16> to vector<8x2xbf16>
    %cst_70 = arith.constant dense<0.000000e+00> : vector<8x9xf32>
    %77 = tpu.matmul %76, %68, %cst_70 {dimension_numbers = #tpu.dot_dimension_numbers<[1], [0], [0], [1], [0, 0, 1, 1], [], []>} : vector<8x2xbf16>, vector<2x9xbf16>, vector<8x9xf32> -> vector<8x9xf32>
    %c3_71 = arith.constant 3 : index
    %c0_72 = arith.constant 0 : index
    %c0_73 = arith.constant 0 : index
    %78 = vector.load %arg11[%c3_71, %c0_72, %c0_73] : memref<4x8x2xbf16, #tpu.memory_space<vmem>>, vector<1x8x2xbf16>
    %79 = vector.shape_cast %78 : vector<1x8x2xbf16> to vector<8x2xbf16>
    %cst_74 = arith.constant dense<0.000000e+00> : vector<8x9xf32>
    %80 = tpu.matmul %79, %68, %cst_74 {dimension_numbers = #tpu.dot_dimension_numbers<[1], [0], [0], [1], [0, 0, 1, 1], [], []>} : vector<8x2xbf16>, vector<2x9xbf16>, vector<8x9xf32> -> vector<8x9xf32>
    %81 = tpu.concatenate %71, %74, %77, %80 in 1 : vector<8x9xf32>, vector<8x9xf32>, vector<8x9xf32>, vector<8x9xf32> -> vector<8x36xf32>
    %82 = arith.truncf %81 : vector<8x36xf32> to vector<8x36xbf16>
    %cst_75 = arith.constant dense<0.000000e+00> : vector<8x64xf32>
    %83 = tpu.matmul %82, %67, %cst_75 {dimension_numbers = #tpu.dot_dimension_numbers<[1], [0], [0], [1], [0, 0, 1, 1], [], []>} : vector<8x36xbf16>, vector<36x64xbf16>, vector<8x64xf32> -> vector<8x64xf32>
    %cst_76 = arith.constant 0.000000e+00 : f32
    %84 = vector.broadcast %cst_76 : f32 to vector<8x64xf32>
    %85 = arith.maximumf %83, %84 : vector<8x64xf32>
    %c0_77 = arith.constant 0 : index
    %c0_78 = arith.constant 0 : index
    %86 = vector.load %arg14[%c0_77, %c0_78] : memref<256x64xbf16, #tpu.memory_space<vmem>>, vector<256x64xbf16>
    %87 = arith.truncf %85 : vector<8x64xf32> to vector<8x64xbf16>
    %c0_79 = arith.constant 0 : index
    %c0_80 = arith.constant 0 : index
    %c0_81 = arith.constant 0 : index
    %88 = vector.load %arg13[%c0_79, %c0_80, %c0_81] : memref<4x16x8xbf16, #tpu.memory_space<vmem>>, vector<1x16x8xbf16>
    %89 = vector.shape_cast %88 : vector<1x16x8xbf16> to vector<16x8xbf16>
    %cst_82 = arith.constant dense<0.000000e+00> : vector<16x64xf32>
    %90 = tpu.matmul %89, %87, %cst_82 {dimension_numbers = #tpu.dot_dimension_numbers<[1], [0], [0], [1], [0, 0, 1, 1], [], []>} : vector<16x8xbf16>, vector<8x64xbf16>, vector<16x64xf32> -> vector<16x64xf32>
    %c1_83 = arith.constant 1 : index
    %c0_84 = arith.constant 0 : index
    %c0_85 = arith.constant 0 : index
    %91 = vector.load %arg13[%c1_83, %c0_84, %c0_85] : memref<4x16x8xbf16, #tpu.memory_space<vmem>>, vector<1x16x8xbf16>
    %92 = vector.shape_cast %91 : vector<1x16x8xbf16> to vector<16x8xbf16>
    %cst_86 = arith.constant dense<0.000000e+00> : vector<16x64xf32>
    %93 = tpu.matmul %92, %87, %cst_86 {dimension_numbers = #tpu.dot_dimension_numbers<[1], [0], [0], [1], [0, 0, 1, 1], [], []>} : vector<16x8xbf16>, vector<8x64xbf16>, vector<16x64xf32> -> vector<16x64xf32>
    %c2_87 = arith.constant 2 : index
    %c0_88 = arith.constant 0 : index
    %c0_89 = arith.constant 0 : index
    %94 = vector.load %arg13[%c2_87, %c0_88, %c0_89] : memref<4x16x8xbf16, #tpu.memory_space<vmem>>, vector<1x16x8xbf16>
    %95 = vector.shape_cast %94 : vector<1x16x8xbf16> to vector<16x8xbf16>
    %cst_90 = arith.constant dense<0.000000e+00> : vector<16x64xf32>
    %96 = tpu.matmul %95, %87, %cst_90 {dimension_numbers = #tpu.dot_dimension_numbers<[1], [0], [0], [1], [0, 0, 1, 1], [], []>} : vector<16x8xbf16>, vector<8x64xbf16>, vector<16x64xf32> -> vector<16x64xf32>
    %c3_91 = arith.constant 3 : index
    %c0_92 = arith.constant 0 : index
    %c0_93 = arith.constant 0 : index
    %97 = vector.load %arg13[%c3_91, %c0_92, %c0_93] : memref<4x16x8xbf16, #tpu.memory_space<vmem>>, vector<1x16x8xbf16>
    %98 = vector.shape_cast %97 : vector<1x16x8xbf16> to vector<16x8xbf16>
    %cst_94 = arith.constant dense<0.000000e+00> : vector<16x64xf32>
    %99 = tpu.matmul %98, %87, %cst_94 {dimension_numbers = #tpu.dot_dimension_numbers<[1], [0], [0], [1], [0, 0, 1, 1], [], []>} : vector<16x8xbf16>, vector<8x64xbf16>, vector<16x64xf32> -> vector<16x64xf32>
    %100 = tpu.concatenate %90, %93, %96, %99 in 1 : vector<16x64xf32>, vector<16x64xf32>, vector<16x64xf32>, vector<16x64xf32> -> vector<16x256xf32>
    %101 = arith.truncf %100 : vector<16x256xf32> to vector<16x256xbf16>
    %cst_95 = arith.constant dense<0.000000e+00> : vector<16x64xf32>
    %102 = tpu.matmul %101, %86, %cst_95 {dimension_numbers = #tpu.dot_dimension_numbers<[1], [0], [0], [1], [0, 0, 1, 1], [], []>} : vector<16x256xbf16>, vector<256x64xbf16>, vector<16x64xf32> -> vector<16x64xf32>
    %c0_96 = arith.constant 0 : index
    %c0_97 = arith.constant 0 : index
    %103 = vector.load %arg15[%c0_96, %c0_97] : memref<1x64xf32, #tpu.memory_space<vmem>>, vector<1x64xf32>
    %104 = vector.broadcast %103 : vector<1x64xf32> to vector<16x64xf32>
    %105 = arith.addf %102, %104 : vector<16x64xf32>
    %cst_98 = arith.constant 0.000000e+00 : f32
    %106 = vector.broadcast %cst_98 : f32 to vector<16x64xf32>
    %107 = arith.maximumf %105, %106 : vector<16x64xf32>
    %c0_99 = arith.constant 0 : index
    %c0_100 = arith.constant 0 : index
    %108 = vector.load %arg17[%c0_99, %c0_100] : memref<256x128xbf16, #tpu.memory_space<vmem>>, vector<256x128xbf16>
    %109 = arith.truncf %107 : vector<16x64xf32> to vector<16x64xbf16>
    %c0_101 = arith.constant 0 : index
    %c0_102 = arith.constant 0 : index
    %c0_103 = arith.constant 0 : index
    %110 = vector.load %arg16[%c0_101, %c0_102, %c0_103] : memref<4x32x16xbf16, #tpu.memory_space<vmem>>, vector<1x32x16xbf16>
    %111 = vector.shape_cast %110 : vector<1x32x16xbf16> to vector<32x16xbf16>
    %cst_104 = arith.constant dense<0.000000e+00> : vector<32x64xf32>
    %112 = tpu.matmul %111, %109, %cst_104 {dimension_numbers = #tpu.dot_dimension_numbers<[1], [0], [0], [1], [0, 0, 1, 1], [], []>} : vector<32x16xbf16>, vector<16x64xbf16>, vector<32x64xf32> -> vector<32x64xf32>
    %c1_105 = arith.constant 1 : index
    %c0_106 = arith.constant 0 : index
    %c0_107 = arith.constant 0 : index
    %113 = vector.load %arg16[%c1_105, %c0_106, %c0_107] : memref<4x32x16xbf16, #tpu.memory_space<vmem>>, vector<1x32x16xbf16>
    %114 = vector.shape_cast %113 : vector<1x32x16xbf16> to vector<32x16xbf16>
    %cst_108 = arith.constant dense<0.000000e+00> : vector<32x64xf32>
    %115 = tpu.matmul %114, %109, %cst_108 {dimension_numbers = #tpu.dot_dimension_numbers<[1], [0], [0], [1], [0, 0, 1, 1], [], []>} : vector<32x16xbf16>, vector<16x64xbf16>, vector<32x64xf32> -> vector<32x64xf32>
    %c2_109 = arith.constant 2 : index
    %c0_110 = arith.constant 0 : index
    %c0_111 = arith.constant 0 : index
    %116 = vector.load %arg16[%c2_109, %c0_110, %c0_111] : memref<4x32x16xbf16, #tpu.memory_space<vmem>>, vector<1x32x16xbf16>
    %117 = vector.shape_cast %116 : vector<1x32x16xbf16> to vector<32x16xbf16>
    %cst_112 = arith.constant dense<0.000000e+00> : vector<32x64xf32>
    %118 = tpu.matmul %117, %109, %cst_112 {dimension_numbers = #tpu.dot_dimension_numbers<[1], [0], [0], [1], [0, 0, 1, 1], [], []>} : vector<32x16xbf16>, vector<16x64xbf16>, vector<32x64xf32> -> vector<32x64xf32>
    %c3_113 = arith.constant 3 : index
    %c0_114 = arith.constant 0 : index
    %c0_115 = arith.constant 0 : index
    %119 = vector.load %arg16[%c3_113, %c0_114, %c0_115] : memref<4x32x16xbf16, #tpu.memory_space<vmem>>, vector<1x32x16xbf16>
    %120 = vector.shape_cast %119 : vector<1x32x16xbf16> to vector<32x16xbf16>
    %cst_116 = arith.constant dense<0.000000e+00> : vector<32x64xf32>
    %121 = tpu.matmul %120, %109, %cst_116 {dimension_numbers = #tpu.dot_dimension_numbers<[1], [0], [0], [1], [0, 0, 1, 1], [], []>} : vector<32x16xbf16>, vector<16x64xbf16>, vector<32x64xf32> -> vector<32x64xf32>
    %122 = tpu.concatenate %112, %115, %118, %121 in 1 : vector<32x64xf32>, vector<32x64xf32>, vector<32x64xf32>, vector<32x64xf32> -> vector<32x256xf32>
    %123 = arith.truncf %122 : vector<32x256xf32> to vector<32x256xbf16>
    %cst_117 = arith.constant dense<0.000000e+00> : vector<32x128xf32>
    %124 = tpu.matmul %123, %108, %cst_117 {dimension_numbers = #tpu.dot_dimension_numbers<[1], [0], [0], [1], [0, 0, 1, 1], [], []>} : vector<32x256xbf16>, vector<256x128xbf16>, vector<32x128xf32> -> vector<32x128xf32>
    %c0_118 = arith.constant 0 : index
    %c0_119 = arith.constant 0 : index
    %125 = vector.load %arg18[%c0_118, %c0_119] : memref<1x128xf32, #tpu.memory_space<vmem>>, vector<1x128xf32>
    %126 = vector.broadcast %125 : vector<1x128xf32> to vector<32x128xf32>
    %127 = arith.addf %124, %126 : vector<32x128xf32>
    %cst_120 = arith.constant 0.000000e+00 : f32
    %128 = vector.broadcast %cst_120 : f32 to vector<32x128xf32>
    %129 = arith.maximumf %127, %128 : vector<32x128xf32>
    %c0_121 = arith.constant 0 : index
    %c0_122 = arith.constant 0 : index
    %130 = vector.load %arg20[%c0_121, %c0_122] : memref<384x64xbf16, #tpu.memory_space<vmem>>, vector<384x64xbf16>
    %131 = arith.truncf %129 : vector<32x128xf32> to vector<32x128xbf16>
    %c0_123 = arith.constant 0 : index
    %c0_124 = arith.constant 0 : index
    %c0_125 = arith.constant 0 : index
    %132 = vector.load %arg19[%c0_123, %c0_124, %c0_125] : memref<3x32x32xbf16, #tpu.memory_space<vmem>>, vector<1x32x32xbf16>
    %133 = vector.shape_cast %132 : vector<1x32x32xbf16> to vector<32x32xbf16>
    %cst_126 = arith.constant dense<0.000000e+00> : vector<32x128xf32>
    %134 = tpu.matmul %133, %131, %cst_126 {dimension_numbers = #tpu.dot_dimension_numbers<[1], [0], [0], [1], [0, 0, 1, 1], [], []>} : vector<32x32xbf16>, vector<32x128xbf16>, vector<32x128xf32> -> vector<32x128xf32>
    %c1_127 = arith.constant 1 : index
    %c0_128 = arith.constant 0 : index
    %c0_129 = arith.constant 0 : index
    %135 = vector.load %arg19[%c1_127, %c0_128, %c0_129] : memref<3x32x32xbf16, #tpu.memory_space<vmem>>, vector<1x32x32xbf16>
    %136 = vector.shape_cast %135 : vector<1x32x32xbf16> to vector<32x32xbf16>
    %cst_130 = arith.constant dense<0.000000e+00> : vector<32x128xf32>
    %137 = tpu.matmul %136, %131, %cst_130 {dimension_numbers = #tpu.dot_dimension_numbers<[1], [0], [0], [1], [0, 0, 1, 1], [], []>} : vector<32x32xbf16>, vector<32x128xbf16>, vector<32x128xf32> -> vector<32x128xf32>
    %c2_131 = arith.constant 2 : index
    %c0_132 = arith.constant 0 : index
    %c0_133 = arith.constant 0 : index
    %138 = vector.load %arg19[%c2_131, %c0_132, %c0_133] : memref<3x32x32xbf16, #tpu.memory_space<vmem>>, vector<1x32x32xbf16>
    %139 = vector.shape_cast %138 : vector<1x32x32xbf16> to vector<32x32xbf16>
    %cst_134 = arith.constant dense<0.000000e+00> : vector<32x128xf32>
    %140 = tpu.matmul %139, %131, %cst_134 {dimension_numbers = #tpu.dot_dimension_numbers<[1], [0], [0], [1], [0, 0, 1, 1], [], []>} : vector<32x32xbf16>, vector<32x128xbf16>, vector<32x128xf32> -> vector<32x128xf32>
    %141 = tpu.concatenate %134, %137, %140 in 1 : vector<32x128xf32>, vector<32x128xf32>, vector<32x128xf32> -> vector<32x384xf32>
    %142 = arith.truncf %141 : vector<32x384xf32> to vector<32x384xbf16>
    %cst_135 = arith.constant dense<0.000000e+00> : vector<32x64xf32>
    %143 = tpu.matmul %142, %130, %cst_135 {dimension_numbers = #tpu.dot_dimension_numbers<[1], [0], [0], [1], [0, 0, 1, 1], [], []>} : vector<32x384xbf16>, vector<384x64xbf16>, vector<32x64xf32> -> vector<32x64xf32>
    %c0_136 = arith.constant 0 : index
    %c0_137 = arith.constant 0 : index
    %144 = vector.load %arg21[%c0_136, %c0_137] : memref<1x64xf32, #tpu.memory_space<vmem>>, vector<1x64xf32>
    %145 = vector.broadcast %144 : vector<1x64xf32> to vector<32x64xf32>
    %146 = arith.addf %143, %145 : vector<32x64xf32>
    %c0_138 = arith.constant 0 : index
    %c0_139 = arith.constant 0 : index
    %147 = vector.load %arg22[%c0_138, %c0_139] : memref<32x64xf32, #tpu.memory_space<vmem>>, vector<32x64xf32>
    tpu.vector_store %arg22[%c0_138, %c0_139], %146 {strides = array<i32>} : memref<32x64xf32, #tpu.memory_space<vmem>>, vector<32x64xf32>,
    %c0_140 = arith.constant 0 : index
    %c0_141 = arith.constant 0 : index
    %148 = vector.load %arg23[%c0_140, %c0_141] : memref<2x16xf32, #tpu.memory_space<vmem>>, vector<2x16xf32>
    tpu.vector_store %arg23[%c0_140, %c0_141], %59 {strides = array<i32>} : memref<2x16xf32, #tpu.memory_space<vmem>>, vector<2x16xf32>,
    return
  }
}

</mosaic_0001>

<llo_original>
// kernel: convvae_forward.1
$region0: #{convvae_forward.1}
  #allocation0 [shape = 'u32[]', space=smem, size = 0x4, offset = 0x4, fixed_abs, tag = 'smem constant byte address 0x4 - core index']
  #allocation1 [shape = 'u32[144,128]{1,0:T(1,128)}', space=vmem, size = 0x12000, scoped, tag = 'internal scratch']
  %s0 = inlined_call_operand.vmem [shape: f32[32,64], index: 0, kind: input, shape index: {}]
  %s1 = inlined_call_operand.vmem [shape: f32[2,8], index: 1, kind: input, shape index: {}]
  %s2 = inlined_call_operand.vmem [shape: bf16[3,16,32], index: 2, kind: input, shape index: {}]
  %s3 = inlined_call_operand.vmem [shape: bf16[192,64], index: 3, kind: input, shape index: {}]
  %s4 = inlined_call_operand.vmem [shape: f32[1,64], index: 4, kind: input, shape index: {}]
  %s5 = inlined_call_operand.vmem [shape: bf16[3,8,16], index: 5, kind: input, shape index: {}]
  %s6 = inlined_call_operand.vmem [shape: bf16[192,64], index: 6, kind: input, shape index: {}]
  %s7 = inlined_call_operand.vmem [shape: f32[1,64], index: 7, kind: input, shape index: {}]
  %s8 = inlined_call_operand.vmem [shape: bf16[4,2,8], index: 8, kind: input, shape index: {}]
  %s9 = inlined_call_operand.vmem [shape: bf16[256,16], index: 9, kind: input, shape index: {}]
  %s10 = inlined_call_operand.vmem [shape: f32[1,16], index: 10, kind: input, shape index: {}]
  %s11 = inlined_call_operand.vmem [shape: bf16[4,8,2], index: 11, kind: input, shape index: {}]
  %s12 = inlined_call_operand.vmem [shape: bf16[36,64], index: 12, kind: input, shape index: {}]
  %s13 = inlined_call_operand.vmem [shape: bf16[4,16,8], index: 13, kind: input, shape index: {}]
  %s14 = inlined_call_operand.vmem [shape: bf16[256,64], index: 14, kind: input, shape index: {}]
  %s15 = inlined_call_operand.vmem [shape: f32[1,64], index: 15, kind: input, shape index: {}]
  %s16 = inlined_call_operand.vmem [shape: bf16[4,32,16], index: 16, kind: input, shape index: {}]
  %s17 = inlined_call_operand.vmem [shape: bf16[256,128], index: 17, kind: input, shape index: {}]
  %s18 = inlined_call_operand.vmem [shape: f32[1,128], index: 18, kind: input, shape index: {}]
  %s19 = inlined_call_operand.vmem [shape: bf16[3,32,32], index: 19, kind: input, shape index: {}]
  %s20 = inlined_call_operand.vmem [shape: bf16[384,64], index: 20, kind: input, shape index: {}]
  %s21 = inlined_call_operand.vmem [shape: f32[1,64], index: 21, kind: input, shape index: {}]
  %s22 = inlined_call_operand.vmem [shape: f32[32,64], index: 22, kind: output, shape index: {0}]
  %s23 = inlined_call_operand.vmem [shape: f32[2,16], index: 23, kind: output, shape index: {1}]
  %24 = xla_tuple %s22, %s23
  %s25 = sld [smem:[#allocation0]]
  $region106: #{convvae_forward.1} parent=0
    _
  %s27 = ssub.s32 1, %s25
  %s28 = scalar_select 0, %s27, %s25
  // Predicated region
  $region2: #{convvae_forward.1} parent=0 // pred_check
    _
  $region3: #{convvae_forward.1} parent=0 // pred_check_branch
    %30 = sbr.rel (0) target = $region5
  $region4: #{convvae_forward.1} parent=0 // pred_region
    _
  $region5: #{convvae_forward.1} parent=0 // pred_fallthru
    _
  // Predicated region
  $region6: #{convvae_forward.1} parent=0 // pred_check
    _
  $region7: #{convvae_forward.1} parent=0 // pred_check_branch
    %32 = sbr.rel (0) target = $region9
  $region8: #{convvae_forward.1} parent=0 // pred_region
    _
  $region9: #{convvae_forward.1} parent=0 // pred_fallthru
    _
  // Predicated region
  $region10: #{convvae_forward.1} parent=0 // pred_check
    _
  $region11: #{convvae_forward.1} parent=0 // pred_check_branch
    %34 = sbr.rel (0) target = $region13
  $region12: #{convvae_forward.1} parent=0 // pred_region
    _
  $region13: #{convvae_forward.1} parent=0 // pred_fallthru
    _
  // Predicated region
  $region14: #{convvae_forward.1} parent=0 // pred_check
    _
  $region15: #{convvae_forward.1} parent=0 // pred_check_branch
    %36 = sbr.rel (0) target = $region17
  $region16: #{convvae_forward.1} parent=0 // pred_region
    _
  $region17: #{convvae_forward.1} parent=0 // pred_fallthru
    _
  // Predicated region
  $region18: #{convvae_forward.1} parent=0 // pred_check
    _
  $region19: #{convvae_forward.1} parent=0 // pred_check_branch
    %38 = sbr.rel (0) target = $region21
  $region20: #{convvae_forward.1} parent=0 // pred_region
    _
  $region21: #{convvae_forward.1} parent=0 // pred_fallthru
    _
  // Predicated region
  $region22: #{convvae_forward.1} parent=0 // pred_check
    _
  $region23: #{convvae_forward.1} parent=0 // pred_check_branch
    %40 = sbr.rel (0) target = $region25
  $region24: #{convvae_forward.1} parent=0 // pred_region
    _
  $region25: #{convvae_forward.1} parent=0 // pred_fallthru
    _
  // Predicated region
  $region26: #{convvae_forward.1} parent=0 // pred_check
    _
  $region27: #{convvae_forward.1} parent=0 // pred_check_branch
    %42 = sbr.rel (0) target = $region29
  $region28: #{convvae_forward.1} parent=0 // pred_region
    _
  $region29: #{convvae_forward.1} parent=0 // pred_fallthru
    _
  // Predicated region
  $region30: #{convvae_forward.1} parent=0 // pred_check
    _
  $region31: #{convvae_forward.1} parent=0 // pred_check_branch
    %44 = sbr.rel (0) target = $region33
  $region32: #{convvae_forward.1} parent=0 // pred_region
    _
  $region33: #{convvae_forward.1} parent=0 // pred_fallthru
    _
  // Predicated region
  $region34: #{convvae_forward.1} parent=0 // pred_check
    _
  $region35: #{convvae_forward.1} parent=0 // pred_check_branch
    %46 = sbr.rel (0) target = $region37
  $region36: #{convvae_forward.1} parent=0 // pred_region
    _
  $region37: #{convvae_forward.1} parent=0 // pred_fallthru
    _
  // Predicated region
  $region38: #{convvae_forward.1} parent=0 // pred_check
    _
  $region39: #{convvae_forward.1} parent=0 // pred_check_branch
    %48 = sbr.rel (0) target = $region41
  $region40: #{convvae_forward.1} parent=0 // pred_region
    _
  $region41: #{convvae_forward.1} parent=0 // pred_fallthru
    _
  // Predicated region
  $region42: #{convvae_forward.1} parent=0 // pred_check
    _
  $region43: #{convvae_forward.1} parent=0 // pred_check_branch
    %50 = sbr.rel (0) target = $region45
  $region44: #{convvae_forward.1} parent=0 // pred_region
    _
  $region45: #{convvae_forward.1} parent=0 // pred_fallthru
    _
  // Predicated region
  $region46: #{convvae_forward.1} parent=0 // pred_check
    _
  $region47: #{convvae_forward.1} parent=0 // pred_check_branch
    %52 = sbr.rel (0) target = $region49
  $region48: #{convvae_forward.1} parent=0 // pred_region
    _
  $region49: #{convvae_forward.1} parent=0 // pred_fallthru
    _
  // Predicated region
  $region50: #{convvae_forward.1} parent=0 // pred_check
    _
  $region51: #{convvae_forward.1} parent=0 // pred_check_branch
    %54 = sbr.rel (0) target = $region53
  $region52: #{convvae_forward.1} parent=0 // pred_region
    _
  $region53: #{convvae_forward.1} parent=0 // pred_fallthru
    _
  // Predicated region
  $region54: #{convvae_forward.1} parent=0 // pred_check
    _
  $region55: #{convvae_forward.1} parent=0 // pred_check_branch
    %56 = sbr.rel (0) target = $region57
  $region56: #{convvae_forward.1} parent=0 // pred_region
    _
  $region57: #{convvae_forward.1} parent=0 // pred_fallthru
    _
  // Predicated region
  $region58: #{convvae_forward.1} parent=0 // pred_check
    _
  $region59: #{convvae_forward.1} parent=0 // pred_check_branch
    %58 = sbr.rel (0) target = $region61
  $region60: #{convvae_forward.1} parent=0 // pred_region
    _
  $region61: #{convvae_forward.1} parent=0 // pred_fallthru
    _
  // Predicated region
  $region62: #{convvae_forward.1} parent=0 // pred_check
    _
  $region63: #{convvae_forward.1} parent=0 // pred_check_branch
    %60 = sbr.rel (0) target = $region65
  $region64: #{convvae_forward.1} parent=0 // pred_region
    _
  $region65: #{convvae_forward.1} parent=0 // pred_fallthru
    _
  // Predicated region
  $region66: #{convvae_forward.1} parent=0 // pred_check
    _
  $region67: #{convvae_forward.1} parent=0 // pred_check_branch
    %62 = sbr.rel (0) target = $region69
  $region68: #{convvae_forward.1} parent=0 // pred_region
    _
  $region69: #{convvae_forward.1} parent=0 // pred_fallthru
    _
  // Predicated region
  $region70: #{convvae_forward.1} parent=0 // pred_check
    _
  $region71: #{convvae_forward.1} parent=0 // pred_check_branch
    %64 = sbr.rel (0) target = $region73
  $region72: #{convvae_forward.1} parent=0 // pred_region
    _
  $region73: #{convvae_forward.1} parent=0 // pred_fallthru
    _
  // Predicated region
  $region74: #{convvae_forward.1} parent=0 // pred_check
    _
  $region75: #{convvae_forward.1} parent=0 // pred_check_branch
    %66 = sbr.rel (0) target = $region77
  $region76: #{convvae_forward.1} parent=0 // pred_region
    _
  $region77: #{convvae_forward.1} parent=0 // pred_fallthru
    _
  // Predicated region
  $region78: #{convvae_forward.1} parent=0 // pred_check
    _
  $region79: #{convvae_forward.1} parent=0 // pred_check_branch
    %68 = sbr.rel (0) target = $region81
  $region80: #{convvae_forward.1} parent=0 // pred_region
    _
  $region81: #{convvae_forward.1} parent=0 // pred_fallthru
    _
  // Predicated region
  $region82: #{convvae_forward.1} parent=0 // pred_check
    _
  $region83: #{convvae_forward.1} parent=0 // pred_check_branch
    %70 = sbr.rel (0) target = $region85
  $region84: #{convvae_forward.1} parent=0 // pred_region
    _
  $region85: #{convvae_forward.1} parent=0 // pred_fallthru
    _
  // Predicated region
  $region86: #{convvae_forward.1} parent=0 // pred_check
    _
  $region87: #{convvae_forward.1} parent=0 // pred_check_branch
    %72 = sbr.rel (0) target = $region89
  $region88: #{convvae_forward.1} parent=0 // pred_region
    _
  $region89: #{convvae_forward.1} parent=0 // pred_fallthru
    _
  %v74 = vld [vmem:[%s0] sm:$0xff]
  %v75 = vld [vmem:[%s0 + $0x8] sm:$0xff]
  %v76 = vld [vmem:[%s0 + $0x10] sm:$0xff]
  %v77 = vld [vmem:[%s0 + $0x18] sm:$0xff]
  %v78 = vld [vmem:[%s1] sm:$0x3]
  %v79 = vld [vmem:[%s3] sm:$0xf]
  %v80 = vld [vmem:[%s3 + $0x4] sm:$0xf]
  %v81 = vld [vmem:[%s3 + $0x8] sm:$0xf]
  %v82 = vld [vmem:[%s3 + $0xc] sm:$0xf]
  %v83 = vld [vmem:[%s3 + $0x10] sm:$0xf]
  %v84 = vld [vmem:[%s3 + $0x14] sm:$0xf]
  %v85 = vld [vmem:[%s3 + $0x18] sm:$0xf]
  %v86 = vld [vmem:[%s3 + $0x1c] sm:$0xf]
  %v87 = vld [vmem:[%s3 + $0x20] sm:$0xf]
  %v88 = vld [vmem:[%s3 + $0x24] sm:$0xf]
  %v89 = vld [vmem:[%s3 + $0x28] sm:$0xf]
  %v90 = vld [vmem:[%s3 + $0x2c] sm:$0xf]
  %v91 = vld [vmem:[%s3 + $0x30] sm:$0xf]
  %v92 = vld [vmem:[%s3 + $0x34] sm:$0xf]
  %v93 = vld [vmem:[%s3 + $0x38] sm:$0xf]
  %v94 = vld [vmem:[%s3 + $0x3c] sm:$0xf]
  %v95 = vld [vmem:[%s3 + $0x40] sm:$0xf]
  %v96 = vld [vmem:[%s3 + $0x44] sm:$0xf]
  %v97 = vld [vmem:[%s3 + $0x48] sm:$0xf]
  %v98 = vld [vmem:[%s3 + $0x4c] sm:$0xf]
  %v99 = vld [vmem:[%s3 + $0x50] sm:$0xf]
  %v100 = vld [vmem:[%s3 + $0x54] sm:$0xf]
  %v101 = vld [vmem:[%s3 + $0x58] sm:$0xf]
  %v102 = vld [vmem:[%s3 + $0x5c] sm:$0xf]
  %v103 = vpack.c.bf16 %v75, %v74
  %v104 = vpack.c.bf16 %v77, %v76
  %v105 = vld [vmem:[%s2] sm:$0xf]
  %v106 = vld [vmem:[%s2 + $0x4] sm:$0xf]
  %v109 = vunpack.c.l.b16 %v105
  %v110 = vunpack.c.l.b16 %v106
  %v111 = vpack.c.b16 %v110, %v109
  %vm112 = vcmask 261120
  %v114 = vsel %vm112, %v111, 0
  %116 = vmatprep.subr.bf16.mxu0 0
  %117 = vmatpush1.bf16.msra.mxu0 %v103
  %118 = vmatprep.subr.bf16.mxu0 0
  %119 = vmatpush1.bf16.msra.mxu0 %v104
  %120 = vmatprep.subr.bf16.mxu0 0
  %121 = vmatpush1.bf16.msra.mxu0 0
  %122 = vmatprep.subr.bf16.mxu0 0
  %123 = vmatpush1.bf16.msra.mxu0 0
  %124 = vmatprep.subr.bf16.mxu0 0
  %125 = vmatpush1.bf16.msra.mxu0 0
  %126 = vmatprep.subr.bf16.mxu0 0
  %127 = vmatpush1.bf16.msra.mxu0 0
  %128 = vmatprep.subr.bf16.mxu0 0
  %129 = vmatpush1.bf16.msra.mxu0 0
  %130 = vmatprep.subr.bf16.mxu0 0
  %131 = vmatpush1.bf16.msra.mxu0 0
  %132 = vmatprep.subr.bf16.mxu0 0
  %133 = vmatpush1.bf16.msra.mxu0 0
  %134 = vmatprep.subr.bf16.mxu0 0
  %135 = vmatpush1.bf16.msra.mxu0 0
  %136 = vmatprep.subr.bf16.mxu0 0
  %137 = vmatpush1.bf16.msra.mxu0 0
  %138 = vmatprep.subr.bf16.mxu0 0
  %139 = vmatpush1.bf16.msra.mxu0 0
  %140 = vmatprep.subr.bf16.mxu0 0
  %141 = vmatpush1.bf16.msra.mxu0 0
  %142 = vmatprep.subr.bf16.mxu0 0
  %143 = vmatpush1.bf16.msra.mxu0 0
  %144 = vmatprep.subr.bf16.mxu0 0
  %145 = vmatpush1.bf16.msra.mxu0 0
  %146 = vmatprep.subr.bf16.mxu0 0
  %147 = vmatpush1.bf16.msra.mxu0 0
  %148 = vmatprep.mubr.bf16.mxu0 0
  %149 = vmatmul.mubr.bf16.gmra.mrb[0].mxu0 %v114
  %v150 = vpop.f32.mrb[0].mxu0
  %v151 = vadd.f32 0.0, %v150
  %v152 = vpop.f32.mrb[0].mxu0
  %v153 = vpop.f32.mrb[0].mxu0
  %v154 = vadd.f32 0.0, %v153
  %v155 = vpop.f32.mrb[0].mxu0
  %156 = vdwg.mxu0
  %s157 = scalar_lea.vmem %s2, 8
  %v158 = vld [vmem:[%s157] sm:$0xf]
  %v159 = vld [vmem:[%s157 + $0x4] sm:$0xf]
  %v162 = vunpack.c.l.b16 %v158
  %v163 = vunpack.c.l.b16 %v159
  %v164 = vpack.c.b16 %v163, %v162
  %v166 = vsel %vm112, %v164, 0
  %168 = vmatprep.subr.bf16.mxu0 0
  %169 = vmatpush1.bf16.msra.mxu0 %v103
  %170 = vmatprep.subr.bf16.mxu0 0
  %171 = vmatpush1.bf16.msra.mxu0 %v104
  %172 = vmatprep.subr.bf16.mxu0 0
  %173 = vmatpush1.bf16.msra.mxu0 0
  %174 = vmatprep.subr.bf16.mxu0 0
  %175 = vmatpush1.bf16.msra.mxu0 0
  %176 = vmatprep.subr.bf16.mxu0 0
  %177 = vmatpush1.bf16.msra.mxu0 0
  %178 = vmatprep.subr.bf16.mxu0 0
  %179 = vmatpush1.bf16.msra.mxu0 0
  %180 = vmatprep.subr.bf16.mxu0 0
  %181 = vmatpush1.bf16.msra.mxu0 0
  %182 = vmatprep.subr.bf16.mxu0 0
  %183 = vmatpush1.bf16.msra.mxu0 0
  %184 = vmatprep.subr.bf16.mxu0 0
  %185 = vmatpush1.bf16.msra.mxu0 0
  %186 = vmatprep.subr.bf16.mxu0 0
  %187 = vmatpush1.bf16.msra.mxu0 0
  %188 = vmatprep.subr.bf16.mxu0 0
  %189 = vmatpush1.bf16.msra.mxu0 0
  %190 = vmatprep.subr.bf16.mxu0 0
  %191 = vmatpush1.bf16.msra.mxu0 0
  %192 = vmatprep.subr.bf16.mxu0 0
  %193 = vmatpush1.bf16.msra.mxu0 0
  %194 = vmatprep.subr.bf16.mxu0 0
  %195 = vmatpush1.bf16.msra.mxu0 0
  %196 = vmatprep.subr.bf16.mxu0 0
  %197 = vmatpush1.bf16.msra.mxu0 0
  %198 = vmatprep.subr.bf16.mxu0 0
  %199 = vmatpush1.bf16.msra.mxu0 0
  %200 = vmatprep.mubr.bf16.mxu0 0
  %201 = vmatmul.mubr.bf16.gmra.mrb[0].mxu0 %v166
  %v202 = vpop.f32.mrb[0].mxu0
  %v203 = vadd.f32 0.0, %v202
  %v204 = vpop.f32.mrb[0].mxu0
  %v205 = vpop.f32.mrb[0].mxu0
  %v206 = vadd.f32 0.0, %v205
  %v207 = vpop.f32.mrb[0].mxu0
  %208 = vdwg.mxu0
  %s209 = scalar_lea.vmem %s2, 16
  %v210 = vld [vmem:[%s209] sm:$0xf]
  %v211 = vld [vmem:[%s209 + $0x4] sm:$0xf]
  %v214 = vunpack.c.l.b16 %v210
  %v215 = vunpack.c.l.b16 %v211
  %v216 = vpack.c.b16 %v215, %v214
  %v218 = vsel %vm112, %v216, 0
  %220 = vmatprep.subr.bf16.mxu0 0
  %221 = vmatpush1.bf16.msra.mxu0 %v103
  %222 = vmatprep.subr.bf16.mxu0 0
  %223 = vmatpush1.bf16.msra.mxu0 %v104
  %224 = vmatprep.subr.bf16.mxu0 0
  %225 = vmatpush1.bf16.msra.mxu0 0
  %226 = vmatprep.subr.bf16.mxu0 0
  %227 = vmatpush1.bf16.msra.mxu0 0
  %228 = vmatprep.subr.bf16.mxu0 0
  %229 = vmatpush1.bf16.msra.mxu0 0
  %230 = vmatprep.subr.bf16.mxu0 0
  %231 = vmatpush1.bf16.msra.mxu0 0
  %232 = vmatprep.subr.bf16.mxu0 0
  %233 = vmatpush1.bf16.msra.mxu0 0
  %234 = vmatprep.subr.bf16.mxu0 0
  %235 = vmatpush1.bf16.msra.mxu0 0
  %236 = vmatprep.subr.bf16.mxu0 0
  %237 = vmatpush1.bf16.msra.mxu0 0
  %238 = vmatprep.subr.bf16.mxu0 0
  %239 = vmatpush1.bf16.msra.mxu0 0
  %240 = vmatprep.subr.bf16.mxu0 0
  %241 = vmatpush1.bf16.msra.mxu0 0
  %242 = vmatprep.subr.bf16.mxu0 0
  %243 = vmatpush1.bf16.msra.mxu0 0
  %244 = vmatprep.subr.bf16.mxu0 0
  %245 = vmatpush1.bf16.msra.mxu0 0
  %246 = vmatprep.subr.bf16.mxu0 0
  %247 = vmatpush1.bf16.msra.mxu0 0
  %248 = vmatprep.subr.bf16.mxu0 0
  %249 = vmatpush1.bf16.msra.mxu0 0
  %250 = vmatprep.subr.bf16.mxu0 0
  %251 = vmatpush1.bf16.msra.mxu0 0
  %252 = vmatprep.mubr.bf16.mxu0 0
  %253 = vmatmul.mubr.bf16.gmra.mrb[0].mxu0 %v218
  %v254 = vpop.f32.mrb[0].mxu0
  %v255 = vadd.f32 0.0, %v254
  %v256 = vpop.f32.mrb[0].mxu0
  %v257 = vpop.f32.mrb[0].mxu0
  %v258 = vadd.f32 0.0, %v257
  %v259 = vpop.f32.mrb[0].mxu0
  %260 = vdwg.mxu0
  %263 = vrot.lane.b32.xlu0 %v203, 64
  %v264 = vpop.permute.xlu0 %263
  %265 = vrot.lane.b32.xlu0 %v206, 64
  %v266 = vpop.permute.xlu0 %265
  %vm269 = vcmask 523264
  %v270 = vsel %vm269, %v151, %v264
  %v271 = vsel %vm269, %v154, %v266
  %v272 = vpack.c.bf16 %v271, %v270
  %v273 = vpack.c.bf16 %v258, %v255
  %v274 = vld [vmem:[%s4] sm:$0x1]
  %v276 = vlaneseq
  %v277 = vshrl.u32 %v276, 7
  %v278 = vsub.s32 0, %v277
  %v279 = vrot.slane %v274, %v278
  %v305 = vunpack.c.l.b16 %v79
  %v306 = vunpack.c.l.b16 %v80
  %v307 = vunpack.c.l.b16 %v81
  %v308 = vunpack.c.l.b16 %v82
  %v309 = vunpack.c.l.b16 %v83
  %v310 = vunpack.c.l.b16 %v84
  %v311 = vunpack.c.l.b16 %v85
  %v312 = vunpack.c.l.b16 %v86
  %v313 = vunpack.c.l.b16 %v87
  %v314 = vunpack.c.l.b16 %v88
  %v315 = vunpack.c.l.b16 %v89
  %v316 = vunpack.c.l.b16 %v90
  %v317 = vunpack.c.l.b16 %v91
  %v318 = vunpack.c.l.b16 %v92
  %v319 = vunpack.c.l.b16 %v93
  %v320 = vunpack.c.l.b16 %v94
  %v321 = vunpack.c.l.b16 %v95
  %v322 = vunpack.c.l.b16 %v96
  %v323 = vunpack.c.l.b16 %v97
  %v324 = vunpack.c.l.b16 %v98
  %v325 = vunpack.c.l.b16 %v99
  %v326 = vunpack.c.l.b16 %v100
  %v327 = vunpack.c.l.b16 %v101
  %v328 = vunpack.c.l.b16 %v102
  %v329 = vpack.c.b16 %v306, %v305
  %v330 = vpack.c.b16 %v308, %v307
  %v331 = vpack.c.b16 %v310, %v309
  %v332 = vpack.c.b16 %v312, %v311
  %v333 = vpack.c.b16 %v314, %v313
  %v334 = vpack.c.b16 %v316, %v315
  %v335 = vpack.c.b16 %v318, %v317
  %v336 = vpack.c.b16 %v320, %v319
  %v337 = vpack.c.b16 %v322, %v321
  %v338 = vpack.c.b16 %v324, %v323
  %v339 = vpack.c.b16 %v326, %v325
  %v340 = vpack.c.b16 %v328, %v327
  %v354 = vsel %vm269, %v273, 0
  %356 = vmatprep.subr.bf16.mxu0 0
  %357 = vmatpush1.bf16.msra.mxu0 %v329
  %358 = vmatprep.subr.bf16.mxu0 0
  %359 = vmatpush1.bf16.msra.mxu0 %v330
  %360 = vmatprep.subr.bf16.mxu0 0
  %361 = vmatpush1.bf16.msra.mxu0 %v331
  %362 = vmatprep.subr.bf16.mxu0 0
  %363 = vmatpush1.bf16.msra.mxu0 %v332
  %364 = vmatprep.subr.bf16.mxu0 0
  %365 = vmatpush1.bf16.msra.mxu0 %v333
  %366 = vmatprep.subr.bf16.mxu0 0
  %367 = vmatpush1.bf16.msra.mxu0 %v334
  %368 = vmatprep.subr.bf16.mxu0 0
  %369 = vmatpush1.bf16.msra.mxu0 %v335
  %370 = vmatprep.subr.bf16.mxu0 0
  %371 = vmatpush1.bf16.msra.mxu0 %v336
  %372 = vmatprep.subr.bf16.mxu0 0
  %373 = vmatpush1.bf16.msra.mxu0 %v337
  %374 = vmatprep.subr.bf16.mxu0 0
  %375 = vmatpush1.bf16.msra.mxu0 %v338
  %376 = vmatprep.subr.bf16.mxu0 0
  %377 = vmatpush1.bf16.msra.mxu0 %v339
  %378 = vmatprep.subr.bf16.mxu0 0
  %379 = vmatpush1.bf16.msra.mxu0 %v340
  %380 = vmatprep.subr.bf16.mxu0 0
  %381 = vmatpush1.bf16.msra.mxu0 0
  %382 = vmatprep.subr.bf16.mxu0 0
  %383 = vmatpush1.bf16.msra.mxu0 0
  %384 = vmatprep.subr.bf16.mxu0 0
  %385 = vmatpush1.bf16.msra.mxu0 0
  %386 = vmatprep.subr.bf16.mxu0 0
  %387 = vmatpush1.bf16.msra.mxu0 0
  %388 = vmatprep.mubr.bf16.mxu0 %v354
  %389 = vmatmul.mubr.bf16.gmra.mrb[0].mxu0 %v272
  %v390 = vpop.f32.mrb[0].mxu0
  %v391 = vadd.f32 %v279, %v390
  %v392 = vpop.f32.mrb[0].mxu0
  %v393 = vpop.f32.mrb[0].mxu0
  %v394 = vadd.f32 %v279, %v393
  %v395 = vpop.f32.mrb[0].mxu0
  %396 = vdwg.mxu0
  %v397 = vmax.f32 %v391, 0.0
  %v398 = vmax.f32 %v394, 0.0
  %v399 = vld [vmem:[%s6] sm:$0xf]
  %v400 = vld [vmem:[%s6 + $0x4] sm:$0xf]
  %v401 = vld [vmem:[%s6 + $0x8] sm:$0xf]
  %v402 = vld [vmem:[%s6 + $0xc] sm:$0xf]
  %v403 = vld [vmem:[%s6 + $0x10] sm:$0xf]
  %v404 = vld [vmem:[%s6 + $0x14] sm:$0xf]
  %v405 = vld [vmem:[%s6 + $0x18] sm:$0xf]
  %v406 = vld [vmem:[%s6 + $0x1c] sm:$0xf]
  %v407 = vld [vmem:[%s6 + $0x20] sm:$0xf]
  %v408 = vld [vmem:[%s6 + $0x24] sm:$0xf]
  %v409 = vld [vmem:[%s6 + $0x28] sm:$0xf]
  %v410 = vld [vmem:[%s6 + $0x2c] sm:$0xf]
  %v411 = vld [vmem:[%s6 + $0x30] sm:$0xf]
  %v412 = vld [vmem:[%s6 + $0x34] sm:$0xf]
  %v413 = vld [vmem:[%s6 + $0x38] sm:$0xf]
  %v414 = vld [vmem:[%s6 + $0x3c] sm:$0xf]
  %v415 = vld [vmem:[%s6 + $0x40] sm:$0xf]
  %v416 = vld [vmem:[%s6 + $0x44] sm:$0xf]
  %v417 = vld [vmem:[%s6 + $0x48] sm:$0xf]
  %v418 = vld [vmem:[%s6 + $0x4c] sm:$0xf]
  %v419 = vld [vmem:[%s6 + $0x50] sm:$0xf]
  %v420 = vld [vmem:[%s6 + $0x54] sm:$0xf]
  %v421 = vld [vmem:[%s6 + $0x58] sm:$0xf]
  %v422 = vld [vmem:[%s6 + $0x5c] sm:$0xf]
  %v423 = vpack.c.bf16 %v398, %v397
  %v424 = vld [vmem:[%s5] sm:$0xf]
  %vm425 = vcmask 130048
  %v427 = vsel %vm425, %v424, 0
  %429 = vmatprep.subr.bf16.mxu0 0
  %430 = vmatpush1.bf16.msra.mxu0 %v423
  %431 = vmatprep.subr.bf16.mxu0 0
  %432 = vmatpush1.bf16.msra.mxu0 0
  %433 = vmatprep.subr.bf16.mxu0 0
  %434 = vmatpush1.bf16.msra.mxu0 0
  %435 = vmatprep.subr.bf16.mxu0 0
  %436 = vmatpush1.bf16.msra.mxu0 0
  %437 = vmatprep.subr.bf16.mxu0 0
  %438 = vmatpush1.bf16.msra.mxu0 0
  %439 = vmatprep.subr.bf16.mxu0 0
  %440 = vmatpush1.bf16.msra.mxu0 0
  %441 = vmatprep.subr.bf16.mxu0 0
  %442 = vmatpush1.bf16.msra.mxu0 0
  %443 = vmatprep.subr.bf16.mxu0 0
  %444 = vmatpush1.bf16.msra.mxu0 0
  %445 = vmatprep.subr.bf16.mxu0 0
  %446 = vmatpush1.bf16.msra.mxu0 0
  %447 = vmatprep.subr.bf16.mxu0 0
  %448 = vmatpush1.bf16.msra.mxu0 0
  %449 = vmatprep.subr.bf16.mxu0 0
  %450 = vmatpush1.bf16.msra.mxu0 0
  %451 = vmatprep.subr.bf16.mxu0 0
  %452 = vmatpush1.bf16.msra.mxu0 0
  %453 = vmatprep.subr.bf16.mxu0 0
  %454 = vmatpush1.bf16.msra.mxu0 0
  %455 = vmatprep.subr.bf16.mxu0 0
  %456 = vmatpush1.bf16.msra.mxu0 0
  %457 = vmatprep.subr.bf16.mxu0 0
  %458 = vmatpush1.bf16.msra.mxu0 0
  %459 = vmatprep.subr.bf16.mxu0 0
  %460 = vmatpush1.bf16.msra.mxu0 0
  %461 = vmatprep.mubr.bf16.mxu0 0
  %462 = vmatmul.mubr.bf16.gmra.mrb[0].mxu0 %v427
  %v463 = vpop.f32.mrb[0].mxu0
  %v464 = vadd.f32 0.0, %v463
  %v465 = vpop.f32.mrb[0].mxu0
  %v466 = vpop.f32.mrb[0].mxu0
  %v467 = vpop.f32.mrb[0].mxu0
  %468 = vdwg.mxu0
  %s469 = scalar_lea.vmem %s5, 4
  %v470 = vld [vmem:[%s469] sm:$0xf]
  %v472 = vsel %vm425, %v470, 0
  %474 = vmatprep.subr.bf16.mxu0 0
  %475 = vmatpush1.bf16.msra.mxu0 %v423
  %476 = vmatprep.subr.bf16.mxu0 0
  %477 = vmatpush1.bf16.msra.mxu0 0
  %478 = vmatprep.subr.bf16.mxu0 0
  %479 = vmatpush1.bf16.msra.mxu0 0
  %480 = vmatprep.subr.bf16.mxu0 0
  %481 = vmatpush1.bf16.msra.mxu0 0
  %482 = vmatprep.subr.bf16.mxu0 0
  %483 = vmatpush1.bf16.msra.mxu0 0
  %484 = vmatprep.subr.bf16.mxu0 0
  %485 = vmatpush1.bf16.msra.mxu0 0
  %486 = vmatprep.subr.bf16.mxu0 0
  %487 = vmatpush1.bf16.msra.mxu0 0
  %488 = vmatprep.subr.bf16.mxu0 0
  %489 = vmatpush1.bf16.msra.mxu0 0
  %490 = vmatprep.subr.bf16.mxu0 0
  %491 = vmatpush1.bf16.msra.mxu0 0
  %492 = vmatprep.subr.bf16.mxu0 0
  %493 = vmatpush1.bf16.msra.mxu0 0
  %494 = vmatprep.subr.bf16.mxu0 0
  %495 = vmatpush1.bf16.msra.mxu0 0
  %496 = vmatprep.subr.bf16.mxu0 0
  %497 = vmatpush1.bf16.msra.mxu0 0
  %498 = vmatprep.subr.bf16.mxu0 0
  %499 = vmatpush1.bf16.msra.mxu0 0
  %500 = vmatprep.subr.bf16.mxu0 0
  %501 = vmatpush1.bf16.msra.mxu0 0
  %502 = vmatprep.subr.bf16.mxu0 0
  %503 = vmatpush1.bf16.msra.mxu0 0
  %504 = vmatprep.subr.bf16.mxu0 0
  %505 = vmatpush1.bf16.msra.mxu0 0
  %506 = vmatprep.mubr.bf16.mxu0 0
  %507 = vmatmul.mubr.bf16.gmra.mrb[0].mxu0 %v472
  %v508 = vpop.f32.mrb[0].mxu0
  %v509 = vadd.f32 0.0, %v508
  %v510 = vpop.f32.mrb[0].mxu0
  %v511 = vpop.f32.mrb[0].mxu0
  %v512 = vpop.f32.mrb[0].mxu0
  %513 = vdwg.mxu0
  %s514 = scalar_lea.vmem %s5, 8
  %v515 = vld [vmem:[%s514] sm:$0xf]
  %v517 = vsel %vm425, %v515, 0
  %519 = vmatprep.subr.bf16.mxu0 0
  %520 = vmatpush1.bf16.msra.mxu0 %v423
  %521 = vmatprep.subr.bf16.mxu0 0
  %522 = vmatpush1.bf16.msra.mxu0 0
  %523 = vmatprep.subr.bf16.mxu0 0
  %524 = vmatpush1.bf16.msra.mxu0 0
  %525 = vmatprep.subr.bf16.mxu0 0
  %526 = vmatpush1.bf16.msra.mxu0 0
  %527 = vmatprep.subr.bf16.mxu0 0
  %528 = vmatpush1.bf16.msra.mxu0 0
  %529 = vmatprep.subr.bf16.mxu0 0
  %530 = vmatpush1.bf16.msra.mxu0 0
  %531 = vmatprep.subr.bf16.mxu0 0
  %532 = vmatpush1.bf16.msra.mxu0 0
  %533 = vmatprep.subr.bf16.mxu0 0
  %534 = vmatpush1.bf16.msra.mxu0 0
  %535 = vmatprep.subr.bf16.mxu0 0
  %536 = vmatpush1.bf16.msra.mxu0 0
  %537 = vmatprep.subr.bf16.mxu0 0
  %538 = vmatpush1.bf16.msra.mxu0 0
  %539 = vmatprep.subr.bf16.mxu0 0
  %540 = vmatpush1.bf16.msra.mxu0 0
  %541 = vmatprep.subr.bf16.mxu0 0
  %542 = vmatpush1.bf16.msra.mxu0 0
  %543 = vmatprep.subr.bf16.mxu0 0
  %544 = vmatpush1.bf16.msra.mxu0 0
  %545 = vmatprep.subr.bf16.mxu0 0
  %546 = vmatpush1.bf16.msra.mxu0 0
  %547 = vmatprep.subr.bf16.mxu0 0
  %548 = vmatpush1.bf16.msra.mxu0 0
  %549 = vmatprep.subr.bf16.mxu0 0
  %550 = vmatpush1.bf16.msra.mxu0 0
  %551 = vmatprep.mubr.bf16.mxu0 0
  %552 = vmatmul.mubr.bf16.gmra.mrb[0].mxu0 %v517
  %v553 = vpop.f32.mrb[0].mxu0
  %v554 = vadd.f32 0.0, %v553
  %v555 = vpop.f32.mrb[0].mxu0
  %v556 = vpop.f32.mrb[0].mxu0
  %v557 = vpop.f32.mrb[0].mxu0
  %558 = vdwg.mxu0
  %560 = vrot.lane.b32.xlu0 %v509, 64
  %v561 = vpop.permute.xlu0 %560
  %v563 = vsel %vm269, %v464, %v561
  %v564 = vpack.c.bf16 %v563, %v563
  %v565 = vpack.c.bf16 %v554, %v554
  %v566 = vld [vmem:[%s7] sm:$0x1]
  %v568 = vlaneseq
  %v569 = vshrl.u32 %v568, 7
  %v570 = vsub.s32 0, %v569
  %v571 = vrot.slane %v566, %v570
  %v597 = vunpack.c.l.b16 %v399
  %v598 = vunpack.c.l.b16 %v400
  %v599 = vunpack.c.l.b16 %v401
  %v600 = vunpack.c.l.b16 %v402
  %v601 = vunpack.c.l.b16 %v403
  %v602 = vunpack.c.l.b16 %v404
  %v603 = vunpack.c.l.b16 %v405
  %v604 = vunpack.c.l.b16 %v406
  %v605 = vunpack.c.l.b16 %v407
  %v606 = vunpack.c.l.b16 %v408
  %v607 = vunpack.c.l.b16 %v409
  %v608 = vunpack.c.l.b16 %v410
  %v609 = vunpack.c.l.b16 %v411
  %v610 = vunpack.c.l.b16 %v412
  %v611 = vunpack.c.l.b16 %v413
  %v612 = vunpack.c.l.b16 %v414
  %v613 = vunpack.c.l.b16 %v415
  %v614 = vunpack.c.l.b16 %v416
  %v615 = vunpack.c.l.b16 %v417
  %v616 = vunpack.c.l.b16 %v418
  %v617 = vunpack.c.l.b16 %v419
  %v618 = vunpack.c.l.b16 %v420
  %v619 = vunpack.c.l.b16 %v421
  %v620 = vunpack.c.l.b16 %v422
  %v621 = vpack.c.b16 %v598, %v597
  %v622 = vpack.c.b16 %v600, %v599
  %v623 = vpack.c.b16 %v602, %v601
  %v624 = vpack.c.b16 %v604, %v603
  %v625 = vpack.c.b16 %v606, %v605
  %v626 = vpack.c.b16 %v608, %v607
  %v627 = vpack.c.b16 %v610, %v609
  %v628 = vpack.c.b16 %v612, %v611
  %v629 = vpack.c.b16 %v614, %v613
  %v630 = vpack.c.b16 %v616, %v615
  %v631 = vpack.c.b16 %v618, %v617
  %v632 = vpack.c.b16 %v620, %v619
  %v646 = vsel %vm269, %v565, 0
  %648 = vmatprep.subr.bf16.mxu0 0
  %649 = vmatpush1.bf16.msra.mxu0 %v621
  %650 = vmatprep.subr.bf16.mxu0 0
  %651 = vmatpush1.bf16.msra.mxu0 %v622
  %652 = vmatprep.subr.bf16.mxu0 0
  %653 = vmatpush1.bf16.msra.mxu0 %v623
  %654 = vmatprep.subr.bf16.mxu0 0
  %655 = vmatpush1.bf16.msra.mxu0 %v624
  %656 = vmatprep.subr.bf16.mxu0 0
  %657 = vmatpush1.bf16.msra.mxu0 %v625
  %658 = vmatprep.subr.bf16.mxu0 0
  %659 = vmatpush1.bf16.msra.mxu0 %v626
  %660 = vmatprep.subr.bf16.mxu0 0
  %661 = vmatpush1.bf16.msra.mxu0 %v627
  %662 = vmatprep.subr.bf16.mxu0 0
  %663 = vmatpush1.bf16.msra.mxu0 %v628
  %664 = vmatprep.subr.bf16.mxu0 0
  %665 = vmatpush1.bf16.msra.mxu0 %v629
  %666 = vmatprep.subr.bf16.mxu0 0
  %667 = vmatpush1.bf16.msra.mxu0 %v630
  %668 = vmatprep.subr.bf16.mxu0 0
  %669 = vmatpush1.bf16.msra.mxu0 %v631
  %670 = vmatprep.subr.bf16.mxu0 0
  %671 = vmatpush1.bf16.msra.mxu0 %v632
  %672 = vmatprep.subr.bf16.mxu0 0
  %673 = vmatpush1.bf16.msra.mxu0 0
  %674 = vmatprep.subr.bf16.mxu0 0
  %675 = vmatpush1.bf16.msra.mxu0 0
  %676 = vmatprep.subr.bf16.mxu0 0
  %677 = vmatpush1.bf16.msra.mxu0 0
  %678 = vmatprep.subr.bf16.mxu0 0
  %679 = vmatpush1.bf16.msra.mxu0 0
  %680 = vmatprep.mubr.bf16.mxu0 %v646
  %681 = vmatmul.mubr.bf16.gmra.mrb[0].mxu0 %v564
  %v682 = vpop.f32.mrb[0].mxu0
  %v683 = vadd.f32 %v571, %v682
  %v684 = vpop.f32.mrb[0].mxu0
  %v685 = vpop.f32.mrb[0].mxu0
  %v686 = vpop.f32.mrb[0].mxu0
  %687 = vdwg.mxu0
  %v688 = vmax.f32 %v683, 0.0
  %v689 = vld [vmem:[%s9] sm:$0xf]
  %v690 = vld [vmem:[%s9 + $0x4] sm:$0xf]
  %v691 = vld [vmem:[%s9 + $0x8] sm:$0xf]
  %v692 = vld [vmem:[%s9 + $0xc] sm:$0xf]
  %v693 = vld [vmem:[%s9 + $0x10] sm:$0xf]
  %v694 = vld [vmem:[%s9 + $0x14] sm:$0xf]
  %v695 = vld [vmem:[%s9 + $0x18] sm:$0xf]
  %v696 = vld [vmem:[%s9 + $0x1c] sm:$0xf]
  %v697 = vld [vmem:[%s9 + $0x20] sm:$0xf]
  %v698 = vld [vmem:[%s9 + $0x24] sm:$0xf]
  %v699 = vld [vmem:[%s9 + $0x28] sm:$0xf]
  %v700 = vld [vmem:[%s9 + $0x2c] sm:$0xf]
  %v701 = vld [vmem:[%s9 + $0x30] sm:$0xf]
  %v702 = vld [vmem:[%s9 + $0x34] sm:$0xf]
  %v703 = vld [vmem:[%s9 + $0x38] sm:$0xf]
  %v704 = vld [vmem:[%s9 + $0x3c] sm:$0xf]
  %v705 = vld [vmem:[%s9 + $0x40] sm:$0xf]
  %v706 = vld [vmem:[%s9 + $0x44] sm:$0xf]
  %v707 = vld [vmem:[%s9 + $0x48] sm:$0xf]
  %v708 = vld [vmem:[%s9 + $0x4c] sm:$0xf]
  %v709 = vld [vmem:[%s9 + $0x50] sm:$0xf]
  %v710 = vld [vmem:[%s9 + $0x54] sm:$0xf]
  %v711 = vld [vmem:[%s9 + $0x58] sm:$0xf]
  %v712 = vld [vmem:[%s9 + $0x5c] sm:$0xf]
  %v713 = vld [vmem:[%s9 + $0x60] sm:$0xf]
  %v714 = vld [vmem:[%s9 + $0x64] sm:$0xf]
  %v715 = vld [vmem:[%s9 + $0x68] sm:$0xf]
  %v716 = vld [vmem:[%s9 + $0x6c] sm:$0xf]
  %v717 = vld [vmem:[%s9 + $0x70] sm:$0xf]
  %v718 = vld [vmem:[%s9 + $0x74] sm:$0xf]
  %v719 = vld [vmem:[%s9 + $0x78] sm:$0xf]
  %v720 = vld [vmem:[%s9 + $0x7c] sm:$0xf]
  %v721 = vpack.c.bf16 %v688, %v688
  %v722 = vld [vmem:[%s8] sm:$0x1]
  %vm723 = vcmask 64512
  %v725 = vsel %vm723, %v722, 0
  %vm727 = vcmask 1043456
  %v729 = vsel %vm727, %v721, 0
  %731 = vmatprep.subr.bf16.mxu0 0
  %732 = vmatpush1.bf16.msra.mxu0 %v729
  %733 = vmatprep.subr.bf16.mxu0 0
  %734 = vmatpush1.bf16.msra.mxu0 0
  %735 = vmatprep.subr.bf16.mxu0 0
  %736 = vmatpush1.bf16.msra.mxu0 0
  %737 = vmatprep.subr.bf16.mxu0 0
  %738 = vmatpush1.bf16.msra.mxu0 0
  %739 = vmatprep.subr.bf16.mxu0 0
  %740 = vmatpush1.bf16.msra.mxu0 0
  %741 = vmatprep.subr.bf16.mxu0 0
  %742 = vmatpush1.bf16.msra.mxu0 0
  %743 = vmatprep.subr.bf16.mxu0 0
  %744 = vmatpush1.bf16.msra.mxu0 0
  %745 = vmatprep.subr.bf16.mxu0 0
  %746 = vmatpush1.bf16.msra.mxu0 0
  %747 = vmatprep.subr.bf16.mxu0 0
  %748 = vmatpush1.bf16.msra.mxu0 0
  %749 = vmatprep.subr.bf16.mxu0 0
  %750 = vmatpush1.bf16.msra.mxu0 0
  %751 = vmatprep.subr.bf16.mxu0 0
  %752 = vmatpush1.bf16.msra.mxu0 0
  %753 = vmatprep.subr.bf16.mxu0 0
  %754 = vmatpush1.bf16.msra.mxu0 0
  %755 = vmatprep.subr.bf16.mxu0 0
  %756 = vmatpush1.bf16.msra.mxu0 0
  %757 = vmatprep.subr.bf16.mxu0 0
  %758 = vmatpush1.bf16.msra.mxu0 0
  %759 = vmatprep.subr.bf16.mxu0 0
  %760 = vmatpush1.bf16.msra.mxu0 0
  %761 = vmatprep.subr.bf16.mxu0 0
  %762 = vmatpush1.bf16.msra.mxu0 0
  %763 = vmatprep.mubr.bf16.mxu0 0
  %764 = vmatmul.mubr.bf16.gmra.mrb[0].mxu0 %v725
  %v765 = vpop.f32.mrb[0].mxu0
  %v766 = vadd.f32 0.0, %v765
  %v767 = vpop.f32.mrb[0].mxu0
  %v768 = vpop.f32.mrb[0].mxu0
  %v769 = vpop.f32.mrb[0].mxu0
  %770 = vdwg.mxu0
  %s771 = scalar_lea.vmem %s8, 1
  %v772 = vld [vmem:[%s771] sm:$0x1]
  %v774 = vsel %vm723, %v772, 0
  %776 = vmatprep.subr.bf16.mxu0 0
  %777 = vmatpush1.bf16.msra.mxu0 %v729
  %778 = vmatprep.subr.bf16.mxu0 0
  %779 = vmatpush1.bf16.msra.mxu0 0
  %780 = vmatprep.subr.bf16.mxu0 0
  %781 = vmatpush1.bf16.msra.mxu0 0
  %782 = vmatprep.subr.bf16.mxu0 0
  %783 = vmatpush1.bf16.msra.mxu0 0
  %784 = vmatprep.subr.bf16.mxu0 0
  %785 = vmatpush1.bf16.msra.mxu0 0
  %786 = vmatprep.subr.bf16.mxu0 0
  %787 = vmatpush1.bf16.msra.mxu0 0
  %788 = vmatprep.subr.bf16.mxu0 0
  %789 = vmatpush1.bf16.msra.mxu0 0
  %790 = vmatprep.subr.bf16.mxu0 0
  %791 = vmatpush1.bf16.msra.mxu0 0
  %792 = vmatprep.subr.bf16.mxu0 0
  %793 = vmatpush1.bf16.msra.mxu0 0
  %794 = vmatprep.subr.bf16.mxu0 0
  %795 = vmatpush1.bf16.msra.mxu0 0
  %796 = vmatprep.subr.bf16.mxu0 0
  %797 = vmatpush1.bf16.msra.mxu0 0
  %798 = vmatprep.subr.bf16.mxu0 0
  %799 = vmatpush1.bf16.msra.mxu0 0
  %800 = vmatprep.subr.bf16.mxu0 0
  %801 = vmatpush1.bf16.msra.mxu0 0
  %802 = vmatprep.subr.bf16.mxu0 0
  %803 = vmatpush1.bf16.msra.mxu0 0
  %804 = vmatprep.subr.bf16.mxu0 0
  %805 = vmatpush1.bf16.msra.mxu0 0
  %806 = vmatprep.subr.bf16.mxu0 0
  %807 = vmatpush1.bf16.msra.mxu0 0
  %808 = vmatprep.mubr.bf16.mxu0 0
  %809 = vmatmul.mubr.bf16.gmra.mrb[0].mxu0 %v774
  %v810 = vpop.f32.mrb[0].mxu0
  %v811 = vadd.f32 0.0, %v810
  %v812 = vpop.f32.mrb[0].mxu0
  %v813 = vpop.f32.mrb[0].mxu0
  %v814 = vpop.f32.mrb[0].mxu0
  %815 = vdwg.mxu0
  %s816 = scalar_lea.vmem %s8, 2
  %v817 = vld [vmem:[%s816] sm:$0x1]
  %v819 = vsel %vm723, %v817, 0
  %821 = vmatprep.subr.bf16.mxu0 0
  %822 = vmatpush1.bf16.msra.mxu0 %v729
  %823 = vmatprep.subr.bf16.mxu0 0
  %824 = vmatpush1.bf16.msra.mxu0 0
  %825 = vmatprep.subr.bf16.mxu0 0
  %826 = vmatpush1.bf16.msra.mxu0 0
  %827 = vmatprep.subr.bf16.mxu0 0
  %828 = vmatpush1.bf16.msra.mxu0 0
  %829 = vmatprep.subr.bf16.mxu0 0
  %830 = vmatpush1.bf16.msra.mxu0 0
  %831 = vmatprep.subr.bf16.mxu0 0
  %832 = vmatpush1.bf16.msra.mxu0 0
  %833 = vmatprep.subr.bf16.mxu0 0
  %834 = vmatpush1.bf16.msra.mxu0 0
  %835 = vmatprep.subr.bf16.mxu0 0
  %836 = vmatpush1.bf16.msra.mxu0 0
  %837 = vmatprep.subr.bf16.mxu0 0
  %838 = vmatpush1.bf16.msra.mxu0 0
  %839 = vmatprep.subr.bf16.mxu0 0
  %840 = vmatpush1.bf16.msra.mxu0 0
  %841 = vmatprep.subr.bf16.mxu0 0
  %842 = vmatpush1.bf16.msra.mxu0 0
  %843 = vmatprep.subr.bf16.mxu0 0
  %844 = vmatpush1.bf16.msra.mxu0 0
  %845 = vmatprep.subr.bf16.mxu0 0
  %846 = vmatpush1.bf16.msra.mxu0 0
  %847 = vmatprep.subr.bf16.mxu0 0
  %848 = vmatpush1.bf16.msra.mxu0 0
  %849 = vmatprep.subr.bf16.mxu0 0
  %850 = vmatpush1.bf16.msra.mxu0 0
  %851 = vmatprep.subr.bf16.mxu0 0
  %852 = vmatpush1.bf16.msra.mxu0 0
  %853 = vmatprep.mubr.bf16.mxu0 0
  %854 = vmatmul.mubr.bf16.gmra.mrb[0].mxu0 %v819
  %v855 = vpop.f32.mrb[0].mxu0
  %v856 = vadd.f32 0.0, %v855
  %v857 = vpop.f32.mrb[0].mxu0
  %v858 = vpop.f32.mrb[0].mxu0
  %v859 = vpop.f32.mrb[0].mxu0
  %860 = vdwg.mxu0
  %s861 = scalar_lea.vmem %s8, 3
  %v862 = vld [vmem:[%s861] sm:$0x1]
  %v864 = vsel %vm723, %v862, 0
  %866 = vmatprep.subr.bf16.mxu0 0
  %867 = vmatpush1.bf16.msra.mxu0 %v729
  %868 = vmatprep.subr.bf16.mxu0 0
  %869 = vmatpush1.bf16.msra.mxu0 0
  %870 = vmatprep.subr.bf16.mxu0 0
  %871 = vmatpush1.bf16.msra.mxu0 0
  %872 = vmatprep.subr.bf16.mxu0 0
  %873 = vmatpush1.bf16.msra.mxu0 0
  %874 = vmatprep.subr.bf16.mxu0 0
  %875 = vmatpush1.bf16.msra.mxu0 0
  %876 = vmatprep.subr.bf16.mxu0 0
  %877 = vmatpush1.bf16.msra.mxu0 0
  %878 = vmatprep.subr.bf16.mxu0 0
  %879 = vmatpush1.bf16.msra.mxu0 0
  %880 = vmatprep.subr.bf16.mxu0 0
  %881 = vmatpush1.bf16.msra.mxu0 0
  %882 = vmatprep.subr.bf16.mxu0 0
  %883 = vmatpush1.bf16.msra.mxu0 0
  %884 = vmatprep.subr.bf16.mxu0 0
  %885 = vmatpush1.bf16.msra.mxu0 0
  %886 = vmatprep.subr.bf16.mxu0 0
  %887 = vmatpush1.bf16.msra.mxu0 0
  %888 = vmatprep.subr.bf16.mxu0 0
  %889 = vmatpush1.bf16.msra.mxu0 0
  %890 = vmatprep.subr.bf16.mxu0 0
  %891 = vmatpush1.bf16.msra.mxu0 0
  %892 = vmatprep.subr.bf16.mxu0 0
  %893 = vmatpush1.bf16.msra.mxu0 0
  %894 = vmatprep.subr.bf16.mxu0 0
  %895 = vmatpush1.bf16.msra.mxu0 0
  %896 = vmatprep.subr.bf16.mxu0 0
  %897 = vmatpush1.bf16.msra.mxu0 0
  %898 = vmatprep.mubr.bf16.mxu0 0
  %899 = vmatmul.mubr.bf16.gmra.mrb[0].mxu0 %v864
  %v900 = vpop.f32.mrb[0].mxu0
  %v901 = vadd.f32 0.0, %v900
  %v902 = vpop.f32.mrb[0].mxu0
  %v903 = vpop.f32.mrb[0].mxu0
  %v904 = vpop.f32.mrb[0].mxu0
  %905 = vdwg.mxu0
  %907 = vrot.lane.b32.xlu0 %v811, 64
  %v908 = vpop.permute.xlu0 %907
  %911 = vrot.lane.b32.xlu0 %v901, 64
  %v912 = vpop.permute.xlu0 %911
  %v914 = vsel %vm269, %v766, %v908
  %v915 = vsel %vm269, %v856, %v912
  %v916 = vpack.c.bf16 %v914, %v914
  %v917 = vpack.c.bf16 %v915, %v915
  %v918 = vld [vmem:[%s10] sm:$0x1]
  %v920 = vlaneseq
  %v921 = vshrl.u32 %v920, 7
  %v922 = vsub.s32 0, %v921
  %v923 = vrot.slane %v918, %v922
  %v957 = vunpack.c.l.b16 %v689
  %v958 = vunpack.c.l.b16 %v690
  %v959 = vunpack.c.l.b16 %v691
  %v960 = vunpack.c.l.b16 %v692
  %v961 = vunpack.c.l.b16 %v693
  %v962 = vunpack.c.l.b16 %v694
  %v963 = vunpack.c.l.b16 %v695
  %v964 = vunpack.c.l.b16 %v696
  %v965 = vunpack.c.l.b16 %v697
  %v966 = vunpack.c.l.b16 %v698
  %v967 = vunpack.c.l.b16 %v699
  %v968 = vunpack.c.l.b16 %v700
  %v969 = vunpack.c.l.b16 %v701
  %v970 = vunpack.c.l.b16 %v702
  %v971 = vunpack.c.l.b16 %v703
  %v972 = vunpack.c.l.b16 %v704
  %v973 = vunpack.c.l.b16 %v705
  %v974 = vunpack.c.l.b16 %v706
  %v975 = vunpack.c.l.b16 %v707
  %v976 = vunpack.c.l.b16 %v708
  %v977 = vunpack.c.l.b16 %v709
  %v978 = vunpack.c.l.b16 %v710
  %v979 = vunpack.c.l.b16 %v711
  %v980 = vunpack.c.l.b16 %v712
  %v981 = vunpack.c.l.b16 %v713
  %v982 = vunpack.c.l.b16 %v714
  %v983 = vunpack.c.l.b16 %v715
  %v984 = vunpack.c.l.b16 %v716
  %v985 = vunpack.c.l.b16 %v717
  %v986 = vunpack.c.l.b16 %v718
  %v987 = vunpack.c.l.b16 %v719
  %v988 = vunpack.c.l.b16 %v720
  %v989 = vpack.c.b16 %v958, %v957
  %v990 = vpack.c.b16 %v960, %v959
  %v991 = vpack.c.b16 %v962, %v961
  %v992 = vpack.c.b16 %v964, %v963
  %v993 = vpack.c.b16 %v966, %v965
  %v994 = vpack.c.b16 %v968, %v967
  %v995 = vpack.c.b16 %v970, %v969
  %v996 = vpack.c.b16 %v972, %v971
  %v997 = vpack.c.b16 %v974, %v973
  %v998 = vpack.c.b16 %v976, %v975
  %v999 = vpack.c.b16 %v978, %v977
  %v1000 = vpack.c.b16 %v980, %v979
  %v1001 = vpack.c.b16 %v982, %v981
  %v1002 = vpack.c.b16 %v984, %v983
  %v1003 = vpack.c.b16 %v986, %v985
  %v1004 = vpack.c.b16 %v988, %v987
  %1021 = vmatprep.subr.bf16.mxu0 0
  %1022 = vmatpush1.bf16.msra.mxu0 %v989
  %1023 = vmatprep.subr.bf16.mxu0 0
  %1024 = vmatpush1.bf16.msra.mxu0 %v990
  %1025 = vmatprep.subr.bf16.mxu0 0
  %1026 = vmatpush1.bf16.msra.mxu0 %v991
  %1027 = vmatprep.subr.bf16.mxu0 0
  %1028 = vmatpush1.bf16.msra.mxu0 %v992
  %1029 = vmatprep.subr.bf16.mxu0 0
  %1030 = vmatpush1.bf16.msra.mxu0 %v993
  %1031 = vmatprep.subr.bf16.mxu0 0
  %1032 = vmatpush1.bf16.msra.mxu0 %v994
  %1033 = vmatprep.subr.bf16.mxu0 0
  %1034 = vmatpush1.bf16.msra.mxu0 %v995
  %1035 = vmatprep.subr.bf16.mxu0 0
  %1036 = vmatpush1.bf16.msra.mxu0 %v996
  %1037 = vmatprep.subr.bf16.mxu0 0
  %1038 = vmatpush1.bf16.msra.mxu0 %v997
  %1039 = vmatprep.subr.bf16.mxu0 0
  %1040 = vmatpush1.bf16.msra.mxu0 %v998
  %1041 = vmatprep.subr.bf16.mxu0 0
  %1042 = vmatpush1.bf16.msra.mxu0 %v999
  %1043 = vmatprep.subr.bf16.mxu0 0
  %1044 = vmatpush1.bf16.msra.mxu0 %v1000
  %1045 = vmatprep.subr.bf16.mxu0 0
  %1046 = vmatpush1.bf16.msra.mxu0 %v1001
  %1047 = vmatprep.subr.bf16.mxu0 0
  %1048 = vmatpush1.bf16.msra.mxu0 %v1002
  %1049 = vmatprep.subr.bf16.mxu0 0
  %1050 = vmatpush1.bf16.msra.mxu0 %v1003
  %1051 = vmatprep.subr.bf16.mxu0 0
  %1052 = vmatpush1.bf16.msra.mxu0 %v1004
  %1053 = vmatprep.mubr.bf16.mxu0 %v917
  %1054 = vmatmul.mubr.bf16.gmra.mrb[0].mxu0 %v916
  %v1055 = vpop.f32.mrb[0].mxu0
  %v1056 = vadd.f32 %v923, %v1055
  %v1057 = vpop.f32.mrb[0].mxu0
  %v1058 = vpop.f32.mrb[0].mxu0
  %v1059 = vpop.f32.mrb[0].mxu0
  %1060 = vdwg.mxu0
  %v1061 = vmul.f32 %v1056, 1.442695
  %v1062 = vpow.pop %v1061
  %1064 = vrot.lane.b32.xlu0 %v1062, 120
  %v1065 = vpop.permute.xlu0 %1064
  %v1067 = vmul.f32 %v78, %v1065
  %v1068 = vadd.f32 %v1067, %v1056
  %v1069 = vsel %vm723, %v1068, 1.0
  %v1070 = vld [vmem:[%s12] sm:$0xf]
  %v1071 = vld [vmem:[%s12 + $0x4] sm:$0xf]
  %v1072 = vld [vmem:[%s12 + $0x8] sm:$0xf]
  %v1073 = vld [vmem:[%s12 + $0xc] sm:$0xf]
  %v1074 = vld [vmem:[%s12 + $0x10] sm:$0x3]
  %v1075 = vpack.c.bf16 %v1069, %v1069
  %v1076 = vld [vmem:[%s11] sm:$0xf]
  %vm1077 = vcmask 15360
  %v1079 = vsel %vm1077, %v1076, 0
  %vm1081 = vcmask 1040384
  %v1083 = vsel %vm1081, %v1075, 0
  %1085 = vmatprep.subr.bf16.mxu0 0
  %1086 = vmatpush1.bf16.msra.mxu0 %v1083
  %1087 = vmatprep.subr.bf16.mxu0 0
  %1088 = vmatpush1.bf16.msra.mxu0 0
  %1089 = vmatprep.subr.bf16.mxu0 0
  %1090 = vmatpush1.bf16.msra.mxu0 0
  %1091 = vmatprep.subr.bf16.mxu0 0
  %1092 = vmatpush1.bf16.msra.mxu0 0
  %1093 = vmatprep.subr.bf16.mxu0 0
  %1094 = vmatpush1.bf16.msra.mxu0 0
  %1095 = vmatprep.subr.bf16.mxu0 0
  %1096 = vmatpush1.bf16.msra.mxu0 0
  %1097 = vmatprep.subr.bf16.mxu0 0
  %1098 = vmatpush1.bf16.msra.mxu0 0
  %1099 = vmatprep.subr.bf16.mxu0 0
  %1100 = vmatpush1.bf16.msra.mxu0 0
  %1101 = vmatprep.subr.bf16.mxu0 0
  %1102 = vmatpush1.bf16.msra.mxu0 0
  %1103 = vmatprep.subr.bf16.mxu0 0
  %1104 = vmatpush1.bf16.msra.mxu0 0
  %1105 = vmatprep.subr.bf16.mxu0 0
  %1106 = vmatpush1.bf16.msra.mxu0 0
  %1107 = vmatprep.subr.bf16.mxu0 0
  %1108 = vmatpush1.bf16.msra.mxu0 0
  %1109 = vmatprep.subr.bf16.mxu0 0
  %1110 = vmatpush1.bf16.msra.mxu0 0
  %1111 = vmatprep.subr.bf16.mxu0 0
  %1112 = vmatpush1.bf16.msra.mxu0 0
  %1113 = vmatprep.subr.bf16.mxu0 0
  %1114 = vmatpush1.bf16.msra.mxu0 0
  %1115 = vmatprep.subr.bf16.mxu0 0
  %1116 = vmatpush1.bf16.msra.mxu0 0
  %1117 = vmatprep.mubr.bf16.mxu0 0
  %1118 = vmatmul.mubr.bf16.gmra.mrb[0].mxu0 %v1079
  %v1119 = vpop.f32.mrb[0].mxu0
  %v1120 = vadd.f32 0.0, %v1119
  %v1121 = vpop.f32.mrb[0].mxu0
  %v1122 = vpop.f32.mrb[0].mxu0
  %v1123 = vpop.f32.mrb[0].mxu0
  %1124 = vdwg.mxu0
  %s1125 = scalar_lea.vmem %s11, 4
  %v1126 = vld [vmem:[%s1125] sm:$0xf]
  %v1128 = vsel %vm1077, %v1126, 0
  %1130 = vmatprep.subr.bf16.mxu0 0
  %1131 = vmatpush1.bf16.msra.mxu0 %v1083
  %1132 = vmatprep.subr.bf16.mxu0 0
  %1133 = vmatpush1.bf16.msra.mxu0 0
  %1134 = vmatprep.subr.bf16.mxu0 0
  %1135 = vmatpush1.bf16.msra.mxu0 0
  %1136 = vmatprep.subr.bf16.mxu0 0
  %1137 = vmatpush1.bf16.msra.mxu0 0
  %1138 = vmatprep.subr.bf16.mxu0 0
  %1139 = vmatpush1.bf16.msra.mxu0 0
  %1140 = vmatprep.subr.bf16.mxu0 0
  %1141 = vmatpush1.bf16.msra.mxu0 0
  %1142 = vmatprep.subr.bf16.mxu0 0
  %1143 = vmatpush1.bf16.msra.mxu0 0
  %1144 = vmatprep.subr.bf16.mxu0 0
  %1145 = vmatpush1.bf16.msra.mxu0 0
  %1146 = vmatprep.subr.bf16.mxu0 0
  %1147 = vmatpush1.bf16.msra.mxu0 0
  %1148 = vmatprep.subr.bf16.mxu0 0
  %1149 = vmatpush1.bf16.msra.mxu0 0
  %1150 = vmatprep.subr.bf16.mxu0 0
  %1151 = vmatpush1.bf16.msra.mxu0 0
  %1152 = vmatprep.subr.bf16.mxu0 0
  %1153 = vmatpush1.bf16.msra.mxu0 0
  %1154 = vmatprep.subr.bf16.mxu0 0
  %1155 = vmatpush1.bf16.msra.mxu0 0
  %1156 = vmatprep.subr.bf16.mxu0 0
  %1157 = vmatpush1.bf16.msra.mxu0 0
  %1158 = vmatprep.subr.bf16.mxu0 0
  %1159 = vmatpush1.bf16.msra.mxu0 0
  %1160 = vmatprep.subr.bf16.mxu0 0
  %1161 = vmatpush1.bf16.msra.mxu0 0
  %1162 = vmatprep.mubr.bf16.mxu0 0
  %1163 = vmatmul.mubr.bf16.gmra.mrb[0].mxu0 %v1128
  %v1164 = vpop.f32.mrb[0].mxu0
  %v1165 = vadd.f32 0.0, %v1164
  %v1166 = vpop.f32.mrb[0].mxu0
  %v1167 = vpop.f32.mrb[0].mxu0
  %v1168 = vpop.f32.mrb[0].mxu0
  %1169 = vdwg.mxu0
  %s1170 = scalar_lea.vmem %s11, 8
  %v1171 = vld [vmem:[%s1170] sm:$0xf]
  %v1173 = vsel %vm1077, %v1171, 0
  %1175 = vmatprep.subr.bf16.mxu0 0
  %1176 = vmatpush1.bf16.msra.mxu0 %v1083
  %1177 = vmatprep.subr.bf16.mxu0 0
  %1178 = vmatpush1.bf16.msra.mxu0 0
  %1179 = vmatprep.subr.bf16.mxu0 0
  %1180 = vmatpush1.bf16.msra.mxu0 0
  %1181 = vmatprep.subr.bf16.mxu0 0
  %1182 = vmatpush1.bf16.msra.mxu0 0
  %1183 = vmatprep.subr.bf16.mxu0 0
  %1184 = vmatpush1.bf16.msra.mxu0 0
  %1185 = vmatprep.subr.bf16.mxu0 0
  %1186 = vmatpush1.bf16.msra.mxu0 0
  %1187 = vmatprep.subr.bf16.mxu0 0
  %1188 = vmatpush1.bf16.msra.mxu0 0
  %1189 = vmatprep.subr.bf16.mxu0 0
  %1190 = vmatpush1.bf16.msra.mxu0 0
  %1191 = vmatprep.subr.bf16.mxu0 0
  %1192 = vmatpush1.bf16.msra.mxu0 0
  %1193 = vmatprep.subr.bf16.mxu0 0
  %1194 = vmatpush1.bf16.msra.mxu0 0
  %1195 = vmatprep.subr.bf16.mxu0 0
  %1196 = vmatpush1.bf16.msra.mxu0 0
  %1197 = vmatprep.subr.bf16.mxu0 0
  %1198 = vmatpush1.bf16.msra.mxu0 0
  %1199 = vmatprep.subr.bf16.mxu0 0
  %1200 = vmatpush1.bf16.msra.mxu0 0
  %1201 = vmatprep.subr.bf16.mxu0 0
  %1202 = vmatpush1.bf16.msra.mxu0 0
  %1203 = vmatprep.subr.bf16.mxu0 0
  %1204 = vmatpush1.bf16.msra.mxu0 0
  %1205 = vmatprep.subr.bf16.mxu0 0
  %1206 = vmatpush1.bf16.msra.mxu0 0
  %1207 = vmatprep.mubr.bf16.mxu0 0
  %1208 = vmatmul.mubr.bf16.gmra.mrb[0].mxu0 %v1173
  %v1209 = vpop.f32.mrb[0].mxu0
  %v1210 = vadd.f32 0.0, %v1209
  %v1211 = vpop.f32.mrb[0].mxu0
  %v1212 = vpop.f32.mrb[0].mxu0
  %v1213 = vpop.f32.mrb[0].mxu0
  %1214 = vdwg.mxu0
  %s1215 = scalar_lea.vmem %s11, 12
  %v1216 = vld [vmem:[%s1215] sm:$0xf]
  %v1218 = vsel %vm1077, %v1216, 0
  %1220 = vmatprep.subr.bf16.mxu0 0
  %1221 = vmatpush1.bf16.msra.mxu0 %v1083
  %1222 = vmatprep.subr.bf16.mxu0 0
  %1223 = vmatpush1.bf16.msra.mxu0 0
  %1224 = vmatprep.subr.bf16.mxu0 0
  %1225 = vmatpush1.bf16.msra.mxu0 0
  %1226 = vmatprep.subr.bf16.mxu0 0
  %1227 = vmatpush1.bf16.msra.mxu0 0
  %1228 = vmatprep.subr.bf16.mxu0 0
  %1229 = vmatpush1.bf16.msra.mxu0 0
  %1230 = vmatprep.subr.bf16.mxu0 0
  %1231 = vmatpush1.bf16.msra.mxu0 0
  %1232 = vmatprep.subr.bf16.mxu0 0
  %1233 = vmatpush1.bf16.msra.mxu0 0
  %1234 = vmatprep.subr.bf16.mxu0 0
  %1235 = vmatpush1.bf16.msra.mxu0 0
  %1236 = vmatprep.subr.bf16.mxu0 0
  %1237 = vmatpush1.bf16.msra.mxu0 0
  %1238 = vmatprep.subr.bf16.mxu0 0
  %1239 = vmatpush1.bf16.msra.mxu0 0
  %1240 = vmatprep.subr.bf16.mxu0 0
  %1241 = vmatpush1.bf16.msra.mxu0 0
  %1242 = vmatprep.subr.bf16.mxu0 0
  %1243 = vmatpush1.bf16.msra.mxu0 0
  %1244 = vmatprep.subr.bf16.mxu0 0
  %1245 = vmatpush1.bf16.msra.mxu0 0
  %1246 = vmatprep.subr.bf16.mxu0 0
  %1247 = vmatpush1.bf16.msra.mxu0 0
  %1248 = vmatprep.subr.bf16.mxu0 0
  %1249 = vmatpush1.bf16.msra.mxu0 0
  %1250 = vmatprep.subr.bf16.mxu0 0
  %1251 = vmatpush1.bf16.msra.mxu0 0
  %1252 = vmatprep.mubr.bf16.mxu0 0
  %1253 = vmatmul.mubr.bf16.gmra.mrb[0].mxu0 %v1218
  %v1254 = vpop.f32.mrb[0].mxu0
  %v1255 = vadd.f32 0.0, %v1254
  %v1256 = vpop.f32.mrb[0].mxu0
  %v1257 = vpop.f32.mrb[0].mxu0
  %v1258 = vpop.f32.mrb[0].mxu0
  %1259 = vdwg.mxu0
  %1261 = vrot.lane.b32.xlu0 %v1165, 9
  %v1262 = vpop.permute.xlu0 %1261
  %1265 = vrot.lane.b32.xlu0 %v1210, 18
  %v1266 = vpop.permute.xlu0 %1265
  %1269 = vrot.lane.b32.xlu0 %v1255, 27
  %v1270 = vpop.permute.xlu0 %1269
  %vm1272 = vcmask 72704
  %v1273 = vsel %vm1272, %v1120, %v1262
  %vm1274 = vcmask 146432
  %v1275 = vsel %vm1274, %v1273, %v1266
  %vm1276 = vcmask 220160
  %v1277 = vsel %vm1276, %v1275, %v1270
  %v1278 = vpack.c.bf16 %v1277, %v1277
  %v1284 = vunpack.c.l.b16 %v1070
  %v1285 = vunpack.c.l.b16 %v1071
  %v1286 = vunpack.c.l.b16 %v1072
  %v1287 = vunpack.c.l.b16 %v1073
  %v1288 = vunpack.c.l.b16 %v1074
  %v1289 = vpack.c.b16 %v1285, %v1284
  %v1290 = vpack.c.b16 %v1287, %v1286
  %v1291 = vpack.c.b16 %v1288, %v1288
  %vm1294 = vcmask 293888
  %v1296 = vsel %vm1294, %v1278, 0
  %vm1298 = vcmask 1041408
  %v1300 = vsel %vm1298, %v1291, 0
  %1302 = vmatprep.subr.bf16.mxu0 0
  %1303 = vmatpush1.bf16.msra.mxu0 %v1289
  %1304 = vmatprep.subr.bf16.mxu0 0
  %1305 = vmatpush1.bf16.msra.mxu0 %v1290
  %1306 = vmatprep.subr.bf16.mxu0 0
  %1307 = vmatpush1.bf16.msra.mxu0 %v1300
  %1308 = vmatprep.subr.bf16.mxu0 0
  %1309 = vmatpush1.bf16.msra.mxu0 0
  %1310 = vmatprep.subr.bf16.mxu0 0
  %1311 = vmatpush1.bf16.msra.mxu0 0
  %1312 = vmatprep.subr.bf16.mxu0 0
  %1313 = vmatpush1.bf16.msra.mxu0 0
  %1314 = vmatprep.subr.bf16.mxu0 0
  %1315 = vmatpush1.bf16.msra.mxu0 0
  %1316 = vmatprep.subr.bf16.mxu0 0
  %1317 = vmatpush1.bf16.msra.mxu0 0
  %1318 = vmatprep.subr.bf16.mxu0 0
  %1319 = vmatpush1.bf16.msra.mxu0 0
  %1320 = vmatprep.subr.bf16.mxu0 0
  %1321 = vmatpush1.bf16.msra.mxu0 0
  %1322 = vmatprep.subr.bf16.mxu0 0
  %1323 = vmatpush1.bf16.msra.mxu0 0
  %1324 = vmatprep.subr.bf16.mxu0 0
  %1325 = vmatpush1.bf16.msra.mxu0 0
  %1326 = vmatprep.subr.bf16.mxu0 0
  %1327 = vmatpush1.bf16.msra.mxu0 0
  %1328 = vmatprep.subr.bf16.mxu0 0
  %1329 = vmatpush1.bf16.msra.mxu0 0
  %1330 = vmatprep.subr.bf16.mxu0 0
  %1331 = vmatpush1.bf16.msra.mxu0 0
  %1332 = vmatprep.subr.bf16.mxu0 0
  %1333 = vmatpush1.bf16.msra.mxu0 0
  %1334 = vmatprep.mubr.bf16.mxu0 0
  %1335 = vmatmul.mubr.bf16.gmra.mrb[0].mxu0 %v1296
  %v1336 = vpop.f32.mrb[0].mxu0
  %v1337 = vadd.f32 0.0, %v1336
  %v1338 = vpop.f32.mrb[0].mxu0
  %v1339 = vpop.f32.mrb[0].mxu0
  %v1340 = vpop.f32.mrb[0].mxu0
  %1341 = vdwg.mxu0
  %v1342 = vmax.f32 %v1337, 0.0
  %v1343 = vld [vmem:[%s14] sm:$0xf]
  %v1344 = vld [vmem:[%s14 + $0x4] sm:$0xf]
  %v1345 = vld [vmem:[%s14 + $0x8] sm:$0xf]
  %v1346 = vld [vmem:[%s14 + $0xc] sm:$0xf]
  %v1347 = vld [vmem:[%s14 + $0x10] sm:$0xf]
  %v1348 = vld [vmem:[%s14 + $0x14] sm:$0xf]
  %v1349 = vld [vmem:[%s14 + $0x18] sm:$0xf]
  %v1350 = vld [vmem:[%s14 + $0x1c] sm:$0xf]
  %v1351 = vld [vmem:[%s14 + $0x20] sm:$0xf]
  %v1352 = vld [vmem:[%s14 + $0x24] sm:$0xf]
  %v1353 = vld [vmem:[%s14 + $0x28] sm:$0xf]
  %v1354 = vld [vmem:[%s14 + $0x2c] sm:$0xf]
  %v1355 = vld [vmem:[%s14 + $0x30] sm:$0xf]
  %v1356 = vld [vmem:[%s14 + $0x34] sm:$0xf]
  %v1357 = vld [vmem:[%s14 + $0x38] sm:$0xf]
  %v1358 = vld [vmem:[%s14 + $0x3c] sm:$0xf]
  %v1359 = vld [vmem:[%s14 + $0x40] sm:$0xf]
  %v1360 = vld [vmem:[%s14 + $0x44] sm:$0xf]
  %v1361 = vld [vmem:[%s14 + $0x48] sm:$0xf]
  %v1362 = vld [vmem:[%s14 + $0x4c] sm:$0xf]
  %v1363 = vld [vmem:[%s14 + $0x50] sm:$0xf]
  %v1364 = vld [vmem:[%s14 + $0x54] sm:$0xf]
  %v1365 = vld [vmem:[%s14 + $0x58] sm:$0xf]
  %v1366 = vld [vmem:[%s14 + $0x5c] sm:$0xf]
  %v1367 = vld [vmem:[%s14 + $0x60] sm:$0xf]
  %v1368 = vld [vmem:[%s14 + $0x64] sm:$0xf]
  %v1369 = vld [vmem:[%s14 + $0x68] sm:$0xf]
  %v1370 = vld [vmem:[%s14 + $0x6c] sm:$0xf]
  %v1371 = vld [vmem:[%s14 + $0x70] sm:$0xf]
  %v1372 = vld [vmem:[%s14 + $0x74] sm:$0xf]
  %v1373 = vld [vmem:[%s14 + $0x78] sm:$0xf]
  %v1374 = vld [vmem:[%s14 + $0x7c] sm:$0xf]
  %v1375 = vpack.c.bf16 %v1342, %v1342
  %v1376 = vld [vmem:[%s13] sm:$0xf]
  %v1377 = vld [vmem:[%s13 + $0x4] sm:$0xf]
  %v1380 = vunpack.c.l.b16 %v1376
  %v1381 = vunpack.c.l.b16 %v1377
  %v1382 = vpack.c.b16 %v1381, %v1380
  %v1384 = vsel %vm723, %v1382, 0
  %v1387 = vsel %vm727, %v1375, 0
  %1389 = vmatprep.subr.bf16.mxu0 0
  %1390 = vmatpush1.bf16.msra.mxu0 %v1387
  %1391 = vmatprep.subr.bf16.mxu0 0
  %1392 = vmatpush1.bf16.msra.mxu0 0
  %1393 = vmatprep.subr.bf16.mxu0 0
  %1394 = vmatpush1.bf16.msra.mxu0 0
  %1395 = vmatprep.subr.bf16.mxu0 0
  %1396 = vmatpush1.bf16.msra.mxu0 0
  %1397 = vmatprep.subr.bf16.mxu0 0
  %1398 = vmatpush1.bf16.msra.mxu0 0
  %1399 = vmatprep.subr.bf16.mxu0 0
  %1400 = vmatpush1.bf16.msra.mxu0 0
  %1401 = vmatprep.subr.bf16.mxu0 0
  %1402 = vmatpush1.bf16.msra.mxu0 0
  %1403 = vmatprep.subr.bf16.mxu0 0
  %1404 = vmatpush1.bf16.msra.mxu0 0
  %1405 = vmatprep.subr.bf16.mxu0 0
  %1406 = vmatpush1.bf16.msra.mxu0 0
  %1407 = vmatprep.subr.bf16.mxu0 0
  %1408 = vmatpush1.bf16.msra.mxu0 0
  %1409 = vmatprep.subr.bf16.mxu0 0
  %1410 = vmatpush1.bf16.msra.mxu0 0
  %1411 = vmatprep.subr.bf16.mxu0 0
  %1412 = vmatpush1.bf16.msra.mxu0 0
  %1413 = vmatprep.subr.bf16.mxu0 0
  %1414 = vmatpush1.bf16.msra.mxu0 0
  %1415 = vmatprep.subr.bf16.mxu0 0
  %1416 = vmatpush1.bf16.msra.mxu0 0
  %1417 = vmatprep.subr.bf16.mxu0 0
  %1418 = vmatpush1.bf16.msra.mxu0 0
  %1419 = vmatprep.subr.bf16.mxu0 0
  %1420 = vmatpush1.bf16.msra.mxu0 0
  %1421 = vmatprep.mubr.bf16.mxu0 0
  %1422 = vmatmul.mubr.bf16.gmra.mrb[0].mxu0 %v1384
  %v1423 = vpop.f32.mrb[0].mxu0
  %v1424 = vadd.f32 0.0, %v1423
  %v1425 = vpop.f32.mrb[0].mxu0
  %v1426 = vpop.f32.mrb[0].mxu0
  %v1427 = vadd.f32 0.0, %v1426
  %v1428 = vpop.f32.mrb[0].mxu0
  %1429 = vdwg.mxu0
  %s1430 = scalar_lea.vmem %s13, 8
  %v1431 = vld [vmem:[%s1430] sm:$0xf]
  %v1432 = vld [vmem:[%s1430 + $0x4] sm:$0xf]
  %v1435 = vunpack.c.l.b16 %v1431
  %v1436 = vunpack.c.l.b16 %v1432
  %v1437 = vpack.c.b16 %v1436, %v1435
  %v1439 = vsel %vm723, %v1437, 0
  %1441 = vmatprep.subr.bf16.mxu0 0
  %1442 = vmatpush1.bf16.msra.mxu0 %v1387
  %1443 = vmatprep.subr.bf16.mxu0 0
  %1444 = vmatpush1.bf16.msra.mxu0 0
  %1445 = vmatprep.subr.bf16.mxu0 0
  %1446 = vmatpush1.bf16.msra.mxu0 0
  %1447 = vmatprep.subr.bf16.mxu0 0
  %1448 = vmatpush1.bf16.msra.mxu0 0
  %1449 = vmatprep.subr.bf16.mxu0 0
  %1450 = vmatpush1.bf16.msra.mxu0 0
  %1451 = vmatprep.subr.bf16.mxu0 0
  %1452 = vmatpush1.bf16.msra.mxu0 0
  %1453 = vmatprep.subr.bf16.mxu0 0
  %1454 = vmatpush1.bf16.msra.mxu0 0
  %1455 = vmatprep.subr.bf16.mxu0 0
  %1456 = vmatpush1.bf16.msra.mxu0 0
  %1457 = vmatprep.subr.bf16.mxu0 0
  %1458 = vmatpush1.bf16.msra.mxu0 0
  %1459 = vmatprep.subr.bf16.mxu0 0
  %1460 = vmatpush1.bf16.msra.mxu0 0
  %1461 = vmatprep.subr.bf16.mxu0 0
  %1462 = vmatpush1.bf16.msra.mxu0 0
  %1463 = vmatprep.subr.bf16.mxu0 0
  %1464 = vmatpush1.bf16.msra.mxu0 0
  %1465 = vmatprep.subr.bf16.mxu0 0
  %1466 = vmatpush1.bf16.msra.mxu0 0
  %1467 = vmatprep.subr.bf16.mxu0 0
  %1468 = vmatpush1.bf16.msra.mxu0 0
  %1469 = vmatprep.subr.bf16.mxu0 0
  %1470 = vmatpush1.bf16.msra.mxu0 0
  %1471 = vmatprep.subr.bf16.mxu0 0
  %1472 = vmatpush1.bf16.msra.mxu0 0
  %1473 = vmatprep.mubr.bf16.mxu0 0
  %1474 = vmatmul.mubr.bf16.gmra.mrb[0].mxu0 %v1439
  %v1475 = vpop.f32.mrb[0].mxu0
  %v1476 = vadd.f32 0.0, %v1475
  %v1477 = vpop.f32.mrb[0].mxu0
  %v1478 = vpop.f32.mrb[0].mxu0
  %v1479 = vadd.f32 0.0, %v1478
  %v1480 = vpop.f32.mrb[0].mxu0
  %1481 = vdwg.mxu0
  %s1482 = scalar_lea.vmem %s13, 16
  %v1483 = vld [vmem:[%s1482] sm:$0xf]
  %v1484 = vld [vmem:[%s1482 + $0x4] sm:$0xf]
  %v1487 = vunpack.c.l.b16 %v1483
  %v1488 = vunpack.c.l.b16 %v1484
  %v1489 = vpack.c.b16 %v1488, %v1487
  %v1491 = vsel %vm723, %v1489, 0
  %1493 = vmatprep.subr.bf16.mxu0 0
  %1494 = vmatpush1.bf16.msra.mxu0 %v1387
  %1495 = vmatprep.subr.bf16.mxu0 0
  %1496 = vmatpush1.bf16.msra.mxu0 0
  %1497 = vmatprep.subr.bf16.mxu0 0
  %1498 = vmatpush1.bf16.msra.mxu0 0
  %1499 = vmatprep.subr.bf16.mxu0 0
  %1500 = vmatpush1.bf16.msra.mxu0 0
  %1501 = vmatprep.subr.bf16.mxu0 0
  %1502 = vmatpush1.bf16.msra.mxu0 0
  %1503 = vmatprep.subr.bf16.mxu0 0
  %1504 = vmatpush1.bf16.msra.mxu0 0
  %1505 = vmatprep.subr.bf16.mxu0 0
  %1506 = vmatpush1.bf16.msra.mxu0 0
  %1507 = vmatprep.subr.bf16.mxu0 0
  %1508 = vmatpush1.bf16.msra.mxu0 0
  %1509 = vmatprep.subr.bf16.mxu0 0
  %1510 = vmatpush1.bf16.msra.mxu0 0
  %1511 = vmatprep.subr.bf16.mxu0 0
  %1512 = vmatpush1.bf16.msra.mxu0 0
  %1513 = vmatprep.subr.bf16.mxu0 0
  %1514 = vmatpush1.bf16.msra.mxu0 0
  %1515 = vmatprep.subr.bf16.mxu0 0
  %1516 = vmatpush1.bf16.msra.mxu0 0
  %1517 = vmatprep.subr.bf16.mxu0 0
  %1518 = vmatpush1.bf16.msra.mxu0 0
  %1519 = vmatprep.subr.bf16.mxu0 0
  %1520 = vmatpush1.bf16.msra.mxu0 0
  %1521 = vmatprep.subr.bf16.mxu0 0
  %1522 = vmatpush1.bf16.msra.mxu0 0
  %1523 = vmatprep.subr.bf16.mxu0 0
  %1524 = vmatpush1.bf16.msra.mxu0 0
  %1525 = vmatprep.mubr.bf16.mxu0 0
  %1526 = vmatmul.mubr.bf16.gmra.mrb[0].mxu0 %v1491
  %v1527 = vpop.f32.mrb[0].mxu0
  %v1528 = vadd.f32 0.0, %v1527
  %v1529 = vpop.f32.mrb[0].mxu0
  %v1530 = vpop.f32.mrb[0].mxu0
  %v1531 = vadd.f32 0.0, %v1530
  %v1532 = vpop.f32.mrb[0].mxu0
  %1533 = vdwg.mxu0
  %s1534 = scalar_lea.vmem %s13, 24
  %v1535 = vld [vmem:[%s1534] sm:$0xf]
  %v1536 = vld [vmem:[%s1534 + $0x4] sm:$0xf]
  %v1539 = vunpack.c.l.b16 %v1535
  %v1540 = vunpack.c.l.b16 %v1536
  %v1541 = vpack.c.b16 %v1540, %v1539
  %v1543 = vsel %vm723, %v1541, 0
  %1545 = vmatprep.subr.bf16.mxu0 0
  %1546 = vmatpush1.bf16.msra.mxu0 %v1387
  %1547 = vmatprep.subr.bf16.mxu0 0
  %1548 = vmatpush1.bf16.msra.mxu0 0
  %1549 = vmatprep.subr.bf16.mxu0 0
  %1550 = vmatpush1.bf16.msra.mxu0 0
  %1551 = vmatprep.subr.bf16.mxu0 0
  %1552 = vmatpush1.bf16.msra.mxu0 0
  %1553 = vmatprep.subr.bf16.mxu0 0
  %1554 = vmatpush1.bf16.msra.mxu0 0
  %1555 = vmatprep.subr.bf16.mxu0 0
  %1556 = vmatpush1.bf16.msra.mxu0 0
  %1557 = vmatprep.subr.bf16.mxu0 0
  %1558 = vmatpush1.bf16.msra.mxu0 0
  %1559 = vmatprep.subr.bf16.mxu0 0
  %1560 = vmatpush1.bf16.msra.mxu0 0
  %1561 = vmatprep.subr.bf16.mxu0 0
  %1562 = vmatpush1.bf16.msra.mxu0 0
  %1563 = vmatprep.subr.bf16.mxu0 0
  %1564 = vmatpush1.bf16.msra.mxu0 0
  %1565 = vmatprep.subr.bf16.mxu0 0
  %1566 = vmatpush1.bf16.msra.mxu0 0
  %1567 = vmatprep.subr.bf16.mxu0 0
  %1568 = vmatpush1.bf16.msra.mxu0 0
  %1569 = vmatprep.subr.bf16.mxu0 0
  %1570 = vmatpush1.bf16.msra.mxu0 0
  %1571 = vmatprep.subr.bf16.mxu0 0
  %1572 = vmatpush1.bf16.msra.mxu0 0
  %1573 = vmatprep.subr.bf16.mxu0 0
  %1574 = vmatpush1.bf16.msra.mxu0 0
  %1575 = vmatprep.subr.bf16.mxu0 0
  %1576 = vmatpush1.bf16.msra.mxu0 0
  %1577 = vmatprep.mubr.bf16.mxu0 0
  %1578 = vmatmul.mubr.bf16.gmra.mrb[0].mxu0 %v1543
  %v1579 = vpop.f32.mrb[0].mxu0
  %v1580 = vadd.f32 0.0, %v1579
  %v1581 = vpop.f32.mrb[0].mxu0
  %v1582 = vpop.f32.mrb[0].mxu0
  %v1583 = vadd.f32 0.0, %v1582
  %v1584 = vpop.f32.mrb[0].mxu0
  %1585 = vdwg.mxu0
  %1588 = vrot.lane.b32.xlu0 %v1476, 64
  %v1589 = vpop.permute.xlu0 %1588
  %1590 = vrot.lane.b32.xlu0 %v1479, 64
  %v1591 = vpop.permute.xlu0 %1590
  %1596 = vrot.lane.b32.xlu0 %v1580, 64
  %v1597 = vpop.permute.xlu0 %1596
  %1598 = vrot.lane.b32.xlu0 %v1583, 64
  %v1599 = vpop.permute.xlu0 %1598
  %v1602 = vsel %vm269, %v1424, %v1589
  %v1603 = vsel %vm269, %v1427, %v1591
  %v1604 = vsel %vm269, %v1528, %v1597
  %v1605 = vsel %vm269, %v1531, %v1599
  %v1606 = vpack.c.bf16 %v1603, %v1602
  %v1607 = vpack.c.bf16 %v1605, %v1604
  %v1608 = vld [vmem:[%s15] sm:$0x1]
  %v1610 = vlaneseq
  %v1611 = vshrl.u32 %v1610, 7
  %v1612 = vsub.s32 0, %v1611
  %v1613 = vrot.slane %v1608, %v1612
  %v1647 = vunpack.c.l.b16 %v1343
  %v1648 = vunpack.c.l.b16 %v1344
  %v1649 = vunpack.c.l.b16 %v1345
  %v1650 = vunpack.c.l.b16 %v1346
  %v1651 = vunpack.c.l.b16 %v1347
  %v1652 = vunpack.c.l.b16 %v1348
  %v1653 = vunpack.c.l.b16 %v1349
  %v1654 = vunpack.c.l.b16 %v1350
  %v1655 = vunpack.c.l.b16 %v1351
  %v1656 = vunpack.c.l.b16 %v1352
  %v1657 = vunpack.c.l.b16 %v1353
  %v1658 = vunpack.c.l.b16 %v1354
  %v1659 = vunpack.c.l.b16 %v1355
  %v1660 = vunpack.c.l.b16 %v1356
  %v1661 = vunpack.c.l.b16 %v1357
  %v1662 = vunpack.c.l.b16 %v1358
  %v1663 = vunpack.c.l.b16 %v1359
  %v1664 = vunpack.c.l.b16 %v1360
  %v1665 = vunpack.c.l.b16 %v1361
  %v1666 = vunpack.c.l.b16 %v1362
  %v1667 = vunpack.c.l.b16 %v1363
  %v1668 = vunpack.c.l.b16 %v1364
  %v1669 = vunpack.c.l.b16 %v1365
  %v1670 = vunpack.c.l.b16 %v1366
  %v1671 = vunpack.c.l.b16 %v1367
  %v1672 = vunpack.c.l.b16 %v1368
  %v1673 = vunpack.c.l.b16 %v1369
  %v1674 = vunpack.c.l.b16 %v1370
  %v1675 = vunpack.c.l.b16 %v1371
  %v1676 = vunpack.c.l.b16 %v1372
  %v1677 = vunpack.c.l.b16 %v1373
  %v1678 = vunpack.c.l.b16 %v1374
  %v1679 = vpack.c.b16 %v1648, %v1647
  %v1680 = vpack.c.b16 %v1650, %v1649
  %v1681 = vpack.c.b16 %v1652, %v1651
  %v1682 = vpack.c.b16 %v1654, %v1653
  %v1683 = vpack.c.b16 %v1656, %v1655
  %v1684 = vpack.c.b16 %v1658, %v1657
  %v1685 = vpack.c.b16 %v1660, %v1659
  %v1686 = vpack.c.b16 %v1662, %v1661
  %v1687 = vpack.c.b16 %v1664, %v1663
  %v1688 = vpack.c.b16 %v1666, %v1665
  %v1689 = vpack.c.b16 %v1668, %v1667
  %v1690 = vpack.c.b16 %v1670, %v1669
  %v1691 = vpack.c.b16 %v1672, %v1671
  %v1692 = vpack.c.b16 %v1674, %v1673
  %v1693 = vpack.c.b16 %v1676, %v1675
  %v1694 = vpack.c.b16 %v1678, %v1677
  %1711 = vmatprep.subr.bf16.mxu0 0
  %1712 = vmatpush1.bf16.msra.mxu0 %v1679
  %1713 = vmatprep.subr.bf16.mxu0 0
  %1714 = vmatpush1.bf16.msra.mxu0 %v1680
  %1715 = vmatprep.subr.bf16.mxu0 0
  %1716 = vmatpush1.bf16.msra.mxu0 %v1681
  %1717 = vmatprep.subr.bf16.mxu0 0
  %1718 = vmatpush1.bf16.msra.mxu0 %v1682
  %1719 = vmatprep.subr.bf16.mxu0 0
  %1720 = vmatpush1.bf16.msra.mxu0 %v1683
  %1721 = vmatprep.subr.bf16.mxu0 0
  %1722 = vmatpush1.bf16.msra.mxu0 %v1684
  %1723 = vmatprep.subr.bf16.mxu0 0
  %1724 = vmatpush1.bf16.msra.mxu0 %v1685
  %1725 = vmatprep.subr.bf16.mxu0 0
  %1726 = vmatpush1.bf16.msra.mxu0 %v1686
  %1727 = vmatprep.subr.bf16.mxu0 0
  %1728 = vmatpush1.bf16.msra.mxu0 %v1687
  %1729 = vmatprep.subr.bf16.mxu0 0
  %1730 = vmatpush1.bf16.msra.mxu0 %v1688
  %1731 = vmatprep.subr.bf16.mxu0 0
  %1732 = vmatpush1.bf16.msra.mxu0 %v1689
  %1733 = vmatprep.subr.bf16.mxu0 0
  %1734 = vmatpush1.bf16.msra.mxu0 %v1690
  %1735 = vmatprep.subr.bf16.mxu0 0
  %1736 = vmatpush1.bf16.msra.mxu0 %v1691
  %1737 = vmatprep.subr.bf16.mxu0 0
  %1738 = vmatpush1.bf16.msra.mxu0 %v1692
  %1739 = vmatprep.subr.bf16.mxu0 0
  %1740 = vmatpush1.bf16.msra.mxu0 %v1693
  %1741 = vmatprep.subr.bf16.mxu0 0
  %1742 = vmatpush1.bf16.msra.mxu0 %v1694
  %1743 = vmatprep.mubr.bf16.mxu0 %v1607
  %1744 = vmatmul.mubr.bf16.gmra.mrb[0].mxu0 %v1606
  %v1745 = vpop.f32.mrb[0].mxu0
  %v1746 = vadd.f32 %v1613, %v1745
  %v1747 = vpop.f32.mrb[0].mxu0
  %v1748 = vpop.f32.mrb[0].mxu0
  %v1749 = vadd.f32 %v1613, %v1748
  %v1750 = vpop.f32.mrb[0].mxu0
  %1751 = vdwg.mxu0
  %v1752 = vmax.f32 %v1746, 0.0
  %v1753 = vmax.f32 %v1749, 0.0
  %v1754 = vld [vmem:[%s17] sm:$0xf]
  %v1755 = vld [vmem:[%s17 + $0x4] sm:$0xf]
  %v1756 = vld [vmem:[%s17 + $0x8] sm:$0xf]
  %v1757 = vld [vmem:[%s17 + $0xc] sm:$0xf]
  %v1758 = vld [vmem:[%s17 + $0x10] sm:$0xf]
  %v1759 = vld [vmem:[%s17 + $0x14] sm:$0xf]
  %v1760 = vld [vmem:[%s17 + $0x18] sm:$0xf]
  %v1761 = vld [vmem:[%s17 + $0x1c] sm:$0xf]
  %v1762 = vld [vmem:[%s17 + $0x20] sm:$0xf]
  %v1763 = vld [vmem:[%s17 + $0x24] sm:$0xf]
  %v1764 = vld [vmem:[%s17 + $0x28] sm:$0xf]
  %v1765 = vld [vmem:[%s17 + $0x2c] sm:$0xf]
  %v1766 = vld [vmem:[%s17 + $0x30] sm:$0xf]
  %v1767 = vld [vmem:[%s17 + $0x34] sm:$0xf]
  %v1768 = vld [vmem:[%s17 + $0x38] sm:$0xf]
  %v1769 = vld [vmem:[%s17 + $0x3c] sm:$0xf]
  %v1770 = vld [vmem:[%s17 + $0x40] sm:$0xf]
  %v1771 = vld [vmem:[%s17 + $0x44] sm:$0xf]
  %v1772 = vld [vmem:[%s17 + $0x48] sm:$0xf]
  %v1773 = vld [vmem:[%s17 + $0x4c] sm:$0xf]
  %v1774 = vld [vmem:[%s17 + $0x50] sm:$0xf]
  %v1775 = vld [vmem:[%s17 + $0x54] sm:$0xf]
  %v1776 = vld [vmem:[%s17 + $0x58] sm:$0xf]
  %v1777 = vld [vmem:[%s17 + $0x5c] sm:$0xf]
  %v1778 = vld [vmem:[%s17 + $0x60] sm:$0xf]
  %v1779 = vld [vmem:[%s17 + $0x64] sm:$0xf]
  %v1780 = vld [vmem:[%s17 + $0x68] sm:$0xf]
  %v1781 = vld [vmem:[%s17 + $0x6c] sm:$0xf]
  %v1782 = vld [vmem:[%s17 + $0x70] sm:$0xf]
  %v1783 = vld [vmem:[%s17 + $0x74] sm:$0xf]
  %v1784 = vld [vmem:[%s17 + $0x78] sm:$0xf]
  %v1785 = vld [vmem:[%s17 + $0x7c] sm:$0xf]
  %v1786 = vpack.c.bf16 %v1753, %v1752
  %v1787 = vld [vmem:[%s16] sm:$0xf]
  %v1788 = vld [vmem:[%s16 + $0x4] sm:$0xf]
  %v1789 = vld [vmem:[%s16 + $0x8] sm:$0xf]
  %v1790 = vld [vmem:[%s16 + $0xc] sm:$0xf]
  %v1795 = vunpack.c.l.b16 %v1787
  %v1796 = vunpack.c.l.b16 %v1788
  %v1797 = vunpack.c.l.b16 %v1789
  %v1798 = vunpack.c.l.b16 %v1790
  %v1799 = vpack.c.b16 %v1796, %v1795
  %v1800 = vpack.c.b16 %v1798, %v1797
  %v1802 = vsel %vm425, %v1799, 0
  %v1805 = vsel %vm425, %v1800, 0
  %1807 = vmatprep.subr.bf16.mxu0 0
  %1808 = vmatpush1.bf16.msra.mxu0 %v1786
  %1809 = vmatprep.subr.bf16.mxu0 0
  %1810 = vmatpush1.bf16.msra.mxu0 0
  %1811 = vmatprep.subr.bf16.mxu0 0
  %1812 = vmatpush1.bf16.msra.mxu0 0
  %1813 = vmatprep.subr.bf16.mxu0 0
  %1814 = vmatpush1.bf16.msra.mxu0 0
  %1815 = vmatprep.subr.bf16.mxu0 0
  %1816 = vmatpush1.bf16.msra.mxu0 0
  %1817 = vmatprep.subr.bf16.mxu0 0
  %1818 = vmatpush1.bf16.msra.mxu0 0
  %1819 = vmatprep.subr.bf16.mxu0 0
  %1820 = vmatpush1.bf16.msra.mxu0 0
  %1821 = vmatprep.subr.bf16.mxu0 0
  %1822 = vmatpush1.bf16.msra.mxu0 0
  %1823 = vmatprep.subr.bf16.mxu0 0
  %1824 = vmatpush1.bf16.msra.mxu0 0
  %1825 = vmatprep.subr.bf16.mxu0 0
  %1826 = vmatpush1.bf16.msra.mxu0 0
  %1827 = vmatprep.subr.bf16.mxu0 0
  %1828 = vmatpush1.bf16.msra.mxu0 0
  %1829 = vmatprep.subr.bf16.mxu0 0
  %1830 = vmatpush1.bf16.msra.mxu0 0
  %1831 = vmatprep.subr.bf16.mxu0 0
  %1832 = vmatpush1.bf16.msra.mxu0 0
  %1833 = vmatprep.subr.bf16.mxu0 0
  %1834 = vmatpush1.bf16.msra.mxu0 0
  %1835 = vmatprep.subr.bf16.mxu0 0
  %1836 = vmatpush1.bf16.msra.mxu0 0
  %1837 = vmatprep.subr.bf16.mxu0 0
  %1838 = vmatpush1.bf16.msra.mxu0 0
  %1839 = vmatprep.mubr.bf16.mxu0 0
  %1840 = vmatmul.mubr.bf16.gmra.mrb[0].mxu0 %v1802
  %v1841 = vpop.f32.mrb[0].mxu0
  %v1842 = vadd.f32 0.0, %v1841
  %v1843 = vpop.f32.mrb[0].mxu0
  %v1844 = vpop.f32.mrb[0].mxu0
  %v1845 = vadd.f32 0.0, %v1844
  %v1846 = vpop.f32.mrb[0].mxu0
  %1847 = vmatprep.mubr.bf16.mxu0 0
  %1848 = vmatmul.mubr.bf16.gmra.mrb[0].mxu0 %v1805
  %v1849 = vpop.f32.mrb[0].mxu0
  %v1850 = vadd.f32 0.0, %v1849
  %v1851 = vpop.f32.mrb[0].mxu0
  %v1852 = vpop.f32.mrb[0].mxu0
  %v1853 = vadd.f32 0.0, %v1852
  %v1854 = vpop.f32.mrb[0].mxu0
  %1855 = vdwg.mxu0
  %s1856 = scalar_lea.vmem %s16, 16
  %v1857 = vld [vmem:[%s1856] sm:$0xf]
  %v1858 = vld [vmem:[%s1856 + $0x4] sm:$0xf]
  %v1859 = vld [vmem:[%s1856 + $0x8] sm:$0xf]
  %v1860 = vld [vmem:[%s1856 + $0xc] sm:$0xf]
  %v1865 = vunpack.c.l.b16 %v1857
  %v1866 = vunpack.c.l.b16 %v1858
  %v1867 = vunpack.c.l.b16 %v1859
  %v1868 = vunpack.c.l.b16 %v1860
  %v1869 = vpack.c.b16 %v1866, %v1865
  %v1870 = vpack.c.b16 %v1868, %v1867
  %v1872 = vsel %vm425, %v1869, 0
  %v1875 = vsel %vm425, %v1870, 0
  %1877 = vmatprep.subr.bf16.mxu0 0
  %1878 = vmatpush1.bf16.msra.mxu0 %v1786
  %1879 = vmatprep.subr.bf16.mxu0 0
  %1880 = vmatpush1.bf16.msra.mxu0 0
  %1881 = vmatprep.subr.bf16.mxu0 0
  %1882 = vmatpush1.bf16.msra.mxu0 0
  %1883 = vmatprep.subr.bf16.mxu0 0
  %1884 = vmatpush1.bf16.msra.mxu0 0
  %1885 = vmatprep.subr.bf16.mxu0 0
  %1886 = vmatpush1.bf16.msra.mxu0 0
  %1887 = vmatprep.subr.bf16.mxu0 0
  %1888 = vmatpush1.bf16.msra.mxu0 0
  %1889 = vmatprep.subr.bf16.mxu0 0
  %1890 = vmatpush1.bf16.msra.mxu0 0
  %1891 = vmatprep.subr.bf16.mxu0 0
  %1892 = vmatpush1.bf16.msra.mxu0 0
  %1893 = vmatprep.subr.bf16.mxu0 0
  %1894 = vmatpush1.bf16.msra.mxu0 0
  %1895 = vmatprep.subr.bf16.mxu0 0
  %1896 = vmatpush1.bf16.msra.mxu0 0
  %1897 = vmatprep.subr.bf16.mxu0 0
  %1898 = vmatpush1.bf16.msra.mxu0 0
  %1899 = vmatprep.subr.bf16.mxu0 0
  %1900 = vmatpush1.bf16.msra.mxu0 0
  %1901 = vmatprep.subr.bf16.mxu0 0
  %1902 = vmatpush1.bf16.msra.mxu0 0
  %1903 = vmatprep.subr.bf16.mxu0 0
  %1904 = vmatpush1.bf16.msra.mxu0 0
  %1905 = vmatprep.subr.bf16.mxu0 0
  %1906 = vmatpush1.bf16.msra.mxu0 0
  %1907 = vmatprep.subr.bf16.mxu0 0
  %1908 = vmatpush1.bf16.msra.mxu0 0
  %1909 = vmatprep.mubr.bf16.mxu0 0
  %1910 = vmatmul.mubr.bf16.gmra.mrb[0].mxu0 %v1872
  %v1911 = vpop.f32.mrb[0].mxu0
  %v1912 = vadd.f32 0.0, %v1911
  %v1913 = vpop.f32.mrb[0].mxu0
  %v1914 = vpop.f32.mrb[0].mxu0
  %v1915 = vadd.f32 0.0, %v1914
  %v1916 = vpop.f32.mrb[0].mxu0
  %1917 = vmatprep.mubr.bf16.mxu0 0
  %1918 = vmatmul.mubr.bf16.gmra.mrb[0].mxu0 %v1875
  %v1919 = vpop.f32.mrb[0].mxu0
  %v1920 = vadd.f32 0.0, %v1919
  %v1921 = vpop.f32.mrb[0].mxu0
  %v1922 = vpop.f32.mrb[0].mxu0
  %v1923 = vadd.f32 0.0, %v1922
  %v1924 = vpop.f32.mrb[0].mxu0
  %1925 = vdwg.mxu0
  %s1926 = scalar_lea.vmem %s16, 32
  %v1927 = vld [vmem:[%s1926] sm:$0xf]
  %v1928 = vld [vmem:[%s1926 + $0x4] sm:$0xf]
  %v1929 = vld [vmem:[%s1926 + $0x8] sm:$0xf]
  %v1930 = vld [vmem:[%s1926 + $0xc] sm:$0xf]
  %v1935 = vunpack.c.l.b16 %v1927
  %v1936 = vunpack.c.l.b16 %v1928
  %v1937 = vunpack.c.l.b16 %v1929
  %v1938 = vunpack.c.l.b16 %v1930
  %v1939 = vpack.c.b16 %v1936, %v1935
  %v1940 = vpack.c.b16 %v1938, %v1937
  %v1942 = vsel %vm425, %v1939, 0
  %v1945 = vsel %vm425, %v1940, 0
  %1947 = vmatprep.subr.bf16.mxu0 0
  %1948 = vmatpush1.bf16.msra.mxu0 %v1786
  %1949 = vmatprep.subr.bf16.mxu0 0
  %1950 = vmatpush1.bf16.msra.mxu0 0
  %1951 = vmatprep.subr.bf16.mxu0 0
  %1952 = vmatpush1.bf16.msra.mxu0 0
  %1953 = vmatprep.subr.bf16.mxu0 0
  %1954 = vmatpush1.bf16.msra.mxu0 0
  %1955 = vmatprep.subr.bf16.mxu0 0
  %1956 = vmatpush1.bf16.msra.mxu0 0
  %1957 = vmatprep.subr.bf16.mxu0 0
  %1958 = vmatpush1.bf16.msra.mxu0 0
  %1959 = vmatprep.subr.bf16.mxu0 0
  %1960 = vmatpush1.bf16.msra.mxu0 0
  %1961 = vmatprep.subr.bf16.mxu0 0
  %1962 = vmatpush1.bf16.msra.mxu0 0
  %1963 = vmatprep.subr.bf16.mxu0 0
  %1964 = vmatpush1.bf16.msra.mxu0 0
  %1965 = vmatprep.subr.bf16.mxu0 0
  %1966 = vmatpush1.bf16.msra.mxu0 0
  %1967 = vmatprep.subr.bf16.mxu0 0
  %1968 = vmatpush1.bf16.msra.mxu0 0
  %1969 = vmatprep.subr.bf16.mxu0 0
  %1970 = vmatpush1.bf16.msra.mxu0 0
  %1971 = vmatprep.subr.bf16.mxu0 0
  %1972 = vmatpush1.bf16.msra.mxu0 0
  %1973 = vmatprep.subr.bf16.mxu0 0
  %1974 = vmatpush1.bf16.msra.mxu0 0
  %1975 = vmatprep.subr.bf16.mxu0 0
  %1976 = vmatpush1.bf16.msra.mxu0 0
  %1977 = vmatprep.subr.bf16.mxu0 0
  %1978 = vmatpush1.bf16.msra.mxu0 0
  %1979 = vmatprep.mubr.bf16.mxu0 0
  %1980 = vmatmul.mubr.bf16.gmra.mrb[0].mxu0 %v1942
  %v1981 = vpop.f32.mrb[0].mxu0
  %v1982 = vadd.f32 0.0, %v1981
  %v1983 = vpop.f32.mrb[0].mxu0
  %v1984 = vpop.f32.mrb[0].mxu0
  %v1985 = vadd.f32 0.0, %v1984
  %v1986 = vpop.f32.mrb[0].mxu0
  %1987 = vmatprep.mubr.bf16.mxu0 0
  %1988 = vmatmul.mubr.bf16.gmra.mrb[0].mxu0 %v1945
  %v1989 = vpop.f32.mrb[0].mxu0
  %v1990 = vadd.f32 0.0, %v1989
  %v1991 = vpop.f32.mrb[0].mxu0
  %v1992 = vpop.f32.mrb[0].mxu0
  %v1993 = vadd.f32 0.0, %v1992
  %v1994 = vpop.f32.mrb[0].mxu0
  %1995 = vdwg.mxu0
  %s1996 = scalar_lea.vmem %s16, 48
  %v1997 = vld [vmem:[%s1996] sm:$0xf]
  %v1998 = vld [vmem:[%s1996 + $0x4] sm:$0xf]
  %v1999 = vld [vmem:[%s1996 + $0x8] sm:$0xf]
  %v2000 = vld [vmem:[%s1996 + $0xc] sm:$0xf]
  %v2005 = vunpack.c.l.b16 %v1997
  %v2006 = vunpack.c.l.b16 %v1998
  %v2007 = vunpack.c.l.b16 %v1999
  %v2008 = vunpack.c.l.b16 %v2000
  %v2009 = vpack.c.b16 %v2006, %v2005
  %v2010 = vpack.c.b16 %v2008, %v2007
  %v2012 = vsel %vm425, %v2009, 0
  %v2015 = vsel %vm425, %v2010, 0
  %2017 = vmatprep.subr.bf16.mxu0 0
  %2018 = vmatpush1.bf16.msra.mxu0 %v1786
  %2019 = vmatprep.subr.bf16.mxu0 0
  %2020 = vmatpush1.bf16.msra.mxu0 0
  %2021 = vmatprep.subr.bf16.mxu0 0
  %2022 = vmatpush1.bf16.msra.mxu0 0
  %2023 = vmatprep.subr.bf16.mxu0 0
  %2024 = vmatpush1.bf16.msra.mxu0 0
  %2025 = vmatprep.subr.bf16.mxu0 0
  %2026 = vmatpush1.bf16.msra.mxu0 0
  %2027 = vmatprep.subr.bf16.mxu0 0
  %2028 = vmatpush1.bf16.msra.mxu0 0
  %2029 = vmatprep.subr.bf16.mxu0 0
  %2030 = vmatpush1.bf16.msra.mxu0 0
  %2031 = vmatprep.subr.bf16.mxu0 0
  %2032 = vmatpush1.bf16.msra.mxu0 0
  %2033 = vmatprep.subr.bf16.mxu0 0
  %2034 = vmatpush1.bf16.msra.mxu0 0
  %2035 = vmatprep.subr.bf16.mxu0 0
  %2036 = vmatpush1.bf16.msra.mxu0 0
  %2037 = vmatprep.subr.bf16.mxu0 0
  %2038 = vmatpush1.bf16.msra.mxu0 0
  %2039 = vmatprep.subr.bf16.mxu0 0
  %2040 = vmatpush1.bf16.msra.mxu0 0
  %2041 = vmatprep.subr.bf16.mxu0 0
  %2042 = vmatpush1.bf16.msra.mxu0 0
  %2043 = vmatprep.subr.bf16.mxu0 0
  %2044 = vmatpush1.bf16.msra.mxu0 0
  %2045 = vmatprep.subr.bf16.mxu0 0
  %2046 = vmatpush1.bf16.msra.mxu0 0
  %2047 = vmatprep.subr.bf16.mxu0 0
  %2048 = vmatpush1.bf16.msra.mxu0 0
  %2049 = vmatprep.mubr.bf16.mxu0 0
  %2050 = vmatmul.mubr.bf16.gmra.mrb[0].mxu0 %v2012
  %v2051 = vpop.f32.mrb[0].mxu0
  %v2052 = vadd.f32 0.0, %v2051
  %v2053 = vpop.f32.mrb[0].mxu0
  %v2054 = vpop.f32.mrb[0].mxu0
  %v2055 = vadd.f32 0.0, %v2054
  %v2056 = vpop.f32.mrb[0].mxu0
  %2057 = vmatprep.mubr.bf16.mxu0 0
  %2058 = vmatmul.mubr.bf16.gmra.mrb[0].mxu0 %v2015
  %v2059 = vpop.f32.mrb[0].mxu0
  %v2060 = vadd.f32 0.0, %v2059
  %v2061 = vpop.f32.mrb[0].mxu0
  %v2062 = vpop.f32.mrb[0].mxu0
  %v2063 = vadd.f32 0.0, %v2062
  %v2064 = vpop.f32.mrb[0].mxu0
  %2065 = vdwg.mxu0
  %2070 = vrot.lane.b32.xlu0 %v1912, 64
  %v2071 = vpop.permute.xlu0 %2070
  %2072 = vrot.lane.b32.xlu0 %v1915, 64
  %v2073 = vpop.permute.xlu0 %2072
  %2074 = vrot.lane.b32.xlu0 %v1920, 64
  %v2075 = vpop.permute.xlu0 %2074
  %2076 = vrot.lane.b32.xlu0 %v1923, 64
  %v2077 = vpop.permute.xlu0 %2076
  %2086 = vrot.lane.b32.xlu0 %v2052, 64
  %v2087 = vpop.permute.xlu0 %2086
  %2088 = vrot.lane.b32.xlu0 %v2055, 64
  %v2089 = vpop.permute.xlu0 %2088
  %2090 = vrot.lane.b32.xlu0 %v2060, 64
  %v2091 = vpop.permute.xlu0 %2090
  %2092 = vrot.lane.b32.xlu0 %v2063, 64
  %v2093 = vpop.permute.xlu0 %2092
  %v2098 = vsel %vm269, %v1842, %v2071
  %v2099 = vsel %vm269, %v1845, %v2073
  %v2100 = vsel %vm269, %v1850, %v2075
  %v2101 = vsel %vm269, %v1853, %v2077
  %v2102 = vsel %vm269, %v1982, %v2087
  %v2103 = vsel %vm269, %v1985, %v2089
  %v2104 = vsel %vm269, %v1990, %v2091
  %v2105 = vsel %vm269, %v1993, %v2093
  %v2106 = vpack.c.bf16 %v2099, %v2098
  %v2107 = vpack.c.bf16 %v2103, %v2102
  %v2108 = vpack.c.bf16 %v2101, %v2100
  %v2109 = vpack.c.bf16 %v2105, %v2104
  %v2110 = vld [vmem:[%s18] sm:$0x1]
  %v2112 = vlaneseq
  %v2113 = vshrl.u32 %v2112, 7
  %v2114 = vsub.s32 0, %v2113
  %v2115 = vrot.slane %v2110, %v2114
  %v2149 = vunpack.c.l.b16 %v1754
  %v2150 = vunpack.c.l.b16 %v1755
  %v2151 = vunpack.c.l.b16 %v1756
  %v2152 = vunpack.c.l.b16 %v1757
  %v2153 = vunpack.c.l.b16 %v1758
  %v2154 = vunpack.c.l.b16 %v1759
  %v2155 = vunpack.c.l.b16 %v1760
  %v2156 = vunpack.c.l.b16 %v1761
  %v2157 = vunpack.c.l.b16 %v1762
  %v2158 = vunpack.c.l.b16 %v1763
  %v2159 = vunpack.c.l.b16 %v1764
  %v2160 = vunpack.c.l.b16 %v1765
  %v2161 = vunpack.c.l.b16 %v1766
  %v2162 = vunpack.c.l.b16 %v1767
  %v2163 = vunpack.c.l.b16 %v1768
  %v2164 = vunpack.c.l.b16 %v1769
  %v2165 = vunpack.c.l.b16 %v1770
  %v2166 = vunpack.c.l.b16 %v1771
  %v2167 = vunpack.c.l.b16 %v1772
  %v2168 = vunpack.c.l.b16 %v1773
  %v2169 = vunpack.c.l.b16 %v1774
  %v2170 = vunpack.c.l.b16 %v1775
  %v2171 = vunpack.c.l.b16 %v1776
  %v2172 = vunpack.c.l.b16 %v1777
  %v2173 = vunpack.c.l.b16 %v1778
  %v2174 = vunpack.c.l.b16 %v1779
  %v2175 = vunpack.c.l.b16 %v1780
  %v2176 = vunpack.c.l.b16 %v1781
  %v2177 = vunpack.c.l.b16 %v1782
  %v2178 = vunpack.c.l.b16 %v1783
  %v2179 = vunpack.c.l.b16 %v1784
  %v2180 = vunpack.c.l.b16 %v1785
  %v2181 = vpack.c.b16 %v2150, %v2149
  %v2182 = vpack.c.b16 %v2152, %v2151
  %v2183 = vpack.c.b16 %v2154, %v2153
  %v2184 = vpack.c.b16 %v2156, %v2155
  %v2185 = vpack.c.b16 %v2158, %v2157
  %v2186 = vpack.c.b16 %v2160, %v2159
  %v2187 = vpack.c.b16 %v2162, %v2161
  %v2188 = vpack.c.b16 %v2164, %v2163
  %v2189 = vpack.c.b16 %v2166, %v2165
  %v2190 = vpack.c.b16 %v2168, %v2167
  %v2191 = vpack.c.b16 %v2170, %v2169
  %v2192 = vpack.c.b16 %v2172, %v2171
  %v2193 = vpack.c.b16 %v2174, %v2173
  %v2194 = vpack.c.b16 %v2176, %v2175
  %v2195 = vpack.c.b16 %v2178, %v2177
  %v2196 = vpack.c.b16 %v2180, %v2179
  %2213 = vmatprep.subr.bf16.mxu0 0
  %2214 = vmatpush1.bf16.msra.mxu0 %v2181
  %2215 = vmatprep.subr.bf16.mxu0 0
  %2216 = vmatpush1.bf16.msra.mxu0 %v2182
  %2217 = vmatprep.subr.bf16.mxu0 0
  %2218 = vmatpush1.bf16.msra.mxu0 %v2183
  %2219 = vmatprep.subr.bf16.mxu0 0
  %2220 = vmatpush1.bf16.msra.mxu0 %v2184
  %2221 = vmatprep.subr.bf16.mxu0 0
  %2222 = vmatpush1.bf16.msra.mxu0 %v2185
  %2223 = vmatprep.subr.bf16.mxu0 0
  %2224 = vmatpush1.bf16.msra.mxu0 %v2186
  %2225 = vmatprep.subr.bf16.mxu0 0
  %2226 = vmatpush1.bf16.msra.mxu0 %v2187
  %2227 = vmatprep.subr.bf16.mxu0 0
  %2228 = vmatpush1.bf16.msra.mxu0 %v2188
  %2229 = vmatprep.subr.bf16.mxu0 0
  %2230 = vmatpush1.bf16.msra.mxu0 %v2189
  %2231 = vmatprep.subr.bf16.mxu0 0
  %2232 = vmatpush1.bf16.msra.mxu0 %v2190
  %2233 = vmatprep.subr.bf16.mxu0 0
  %2234 = vmatpush1.bf16.msra.mxu0 %v2191
  %2235 = vmatprep.subr.bf16.mxu0 0
  %2236 = vmatpush1.bf16.msra.mxu0 %v2192
  %2237 = vmatprep.subr.bf16.mxu0 0
  %2238 = vmatpush1.bf16.msra.mxu0 %v2193
  %2239 = vmatprep.subr.bf16.mxu0 0
  %2240 = vmatpush1.bf16.msra.mxu0 %v2194
  %2241 = vmatprep.subr.bf16.mxu0 0
  %2242 = vmatpush1.bf16.msra.mxu0 %v2195
  %2243 = vmatprep.subr.bf16.mxu0 0
  %2244 = vmatpush1.bf16.msra.mxu0 %v2196
  %2245 = vmatprep.mubr.bf16.mxu0 %v2107
  %2246 = vmatmul.mubr.bf16.gmra.mrb[0].mxu0 %v2106
  %v2247 = vpop.f32.mrb[0].mxu0
  %v2248 = vadd.f32 %v2115, %v2247
  %v2249 = vpop.f32.mrb[0].mxu0
  %v2250 = vpop.f32.mrb[0].mxu0
  %v2251 = vadd.f32 %v2115, %v2250
  %v2252 = vpop.f32.mrb[0].mxu0
  %2253 = vmatprep.mubr.bf16.mxu0 %v2109
  %2254 = vmatmul.mubr.bf16.gmra.mrb[0].mxu0 %v2108
  %v2255 = vpop.f32.mrb[0].mxu0
  %v2256 = vadd.f32 %v2115, %v2255
  %v2257 = vpop.f32.mrb[0].mxu0
  %v2258 = vpop.f32.mrb[0].mxu0
  %v2259 = vadd.f32 %v2115, %v2258
  %v2260 = vpop.f32.mrb[0].mxu0
  %2261 = vdwg.mxu0
  %v2262 = vmax.f32 %v2248, 0.0
  %v2263 = vmax.f32 %v2251, 0.0
  %v2264 = vmax.f32 %v2256, 0.0
  %v2265 = vmax.f32 %v2259, 0.0
  %v2266 = vld [vmem:[%s20] sm:$0xf]
  %v2267 = vld [vmem:[%s20 + $0x4] sm:$0xf]
  %v2268 = vld [vmem:[%s20 + $0x8] sm:$0xf]
  %v2269 = vld [vmem:[%s20 + $0xc] sm:$0xf]
  %v2270 = vld [vmem:[%s20 + $0x10] sm:$0xf]
  %v2271 = vld [vmem:[%s20 + $0x14] sm:$0xf]
  %v2272 = vld [vmem:[%s20 + $0x18] sm:$0xf]
  %v2273 = vld [vmem:[%s20 + $0x1c] sm:$0xf]
  %v2274 = vld [vmem:[%s20 + $0x20] sm:$0xf]
  %v2275 = vld [vmem:[%s20 + $0x24] sm:$0xf]
  %v2276 = vld [vmem:[%s20 + $0x28] sm:$0xf]
  %v2277 = vld [vmem:[%s20 + $0x2c] sm:$0xf]
  %v2278 = vld [vmem:[%s20 + $0x30] sm:$0xf]
  %v2279 = vld [vmem:[%s20 + $0x34] sm:$0xf]
  %v2280 = vld [vmem:[%s20 + $0x38] sm:$0xf]
  %v2281 = vld [vmem:[%s20 + $0x3c] sm:$0xf]
  %v2282 = vld [vmem:[%s20 + $0x40] sm:$0xf]
  %v2283 = vld [vmem:[%s20 + $0x44] sm:$0xf]
  %v2284 = vld [vmem:[%s20 + $0x48] sm:$0xf]
  %v2285 = vld [vmem:[%s20 + $0x4c] sm:$0xf]
  %v2286 = vld [vmem:[%s20 + $0x50] sm:$0xf]
  %v2287 = vld [vmem:[%s20 + $0x54] sm:$0xf]
  %v2288 = vld [vmem:[%s20 + $0x58] sm:$0xf]
  %v2289 = vld [vmem:[%s20 + $0x5c] sm:$0xf]
  %v2290 = vld [vmem:[%s20 + $0x60] sm:$0xf]
  %v2291 = vld [vmem:[%s20 + $0x64] sm:$0xf]
  %v2292 = vld [vmem:[%s20 + $0x68] sm:$0xf]
  %v2293 = vld [vmem:[%s20 + $0x6c] sm:$0xf]
  %v2294 = vld [vmem:[%s20 + $0x70] sm:$0xf]
  %v2295 = vld [vmem:[%s20 + $0x74] sm:$0xf]
  %v2296 = vld [vmem:[%s20 + $0x78] sm:$0xf]
  %v2297 = vld [vmem:[%s20 + $0x7c] sm:$0xf]
  %v2298 = vld [vmem:[%s20 + $0x80] sm:$0xf]
  %v2299 = vld [vmem:[%s20 + $0x84] sm:$0xf]
  %v2300 = vld [vmem:[%s20 + $0x88] sm:$0xf]
  %v2301 = vld [vmem:[%s20 + $0x8c] sm:$0xf]
  %v2302 = vld [vmem:[%s20 + $0x90] sm:$0xf]
  %v2303 = vld [vmem:[%s20 + $0x94] sm:$0xf]
  %v2304 = vld [vmem:[%s20 + $0x98] sm:$0xf]
  %v2305 = vld [vmem:[%s20 + $0x9c] sm:$0xf]
  %v2306 = vld [vmem:[%s20 + $0xa0] sm:$0xf]
  %v2307 = vld [vmem:[%s20 + $0xa4] sm:$0xf]
  %v2308 = vld [vmem:[%s20 + $0xa8] sm:$0xf]
  %v2309 = vld [vmem:[%s20 + $0xac] sm:$0xf]
  %v2310 = vld [vmem:[%s20 + $0xb0] sm:$0xf]
  %v2311 = vld [vmem:[%s20 + $0xb4] sm:$0xf]
  %v2312 = vld [vmem:[%s20 + $0xb8] sm:$0xf]
  %v2313 = vld [vmem:[%s20 + $0xbc] sm:$0xf]
  %v2314 = vpack.c.bf16 %v2263, %v2262
  %v2315 = vpack.c.bf16 %v2265, %v2264
  %v2316 = vld [vmem:[%s19] sm:$0xf]
  %v2317 = vld [vmem:[%s19 + $0x4] sm:$0xf]
  %v2318 = vld [vmem:[%s19 + $0x8] sm:$0xf]
  %v2319 = vld [vmem:[%s19 + $0xc] sm:$0xf]
  %v2324 = vunpack.c.l.b16 %v2316
  %v2325 = vunpack.c.l.b16 %v2317
  %v2326 = vunpack.c.l.b16 %v2318
  %v2327 = vunpack.c.l.b16 %v2319
  %v2328 = vpack.c.b16 %v2325, %v2324
  %v2329 = vpack.c.b16 %v2327, %v2326
  %v2331 = vsel %vm112, %v2328, 0
  %v2334 = vsel %vm112, %v2329, 0
  %2336 = vmatprep.subr.bf16.mxu0 0
  %2337 = vmatpush1.bf16.msra.mxu0 %v2314
  %2338 = vmatprep.subr.bf16.mxu0 0
  %2339 = vmatpush1.bf16.msra.mxu0 %v2315
  %2340 = vmatprep.subr.bf16.mxu0 0
  %2341 = vmatpush1.bf16.msra.mxu0 0
  %2342 = vmatprep.subr.bf16.mxu0 0
  %2343 = vmatpush1.bf16.msra.mxu0 0
  %2344 = vmatprep.subr.bf16.mxu0 0
  %2345 = vmatpush1.bf16.msra.mxu0 0
  %2346 = vmatprep.subr.bf16.mxu0 0
  %2347 = vmatpush1.bf16.msra.mxu0 0
  %2348 = vmatprep.subr.bf16.mxu0 0
  %2349 = vmatpush1.bf16.msra.mxu0 0
  %2350 = vmatprep.subr.bf16.mxu0 0
  %2351 = vmatpush1.bf16.msra.mxu0 0
  %2352 = vmatprep.subr.bf16.mxu0 0
  %2353 = vmatpush1.bf16.msra.mxu0 0
  %2354 = vmatprep.subr.bf16.mxu0 0
  %2355 = vmatpush1.bf16.msra.mxu0 0
  %2356 = vmatprep.subr.bf16.mxu0 0
  %2357 = vmatpush1.bf16.msra.mxu0 0
  %2358 = vmatprep.subr.bf16.mxu0 0
  %2359 = vmatpush1.bf16.msra.mxu0 0
  %2360 = vmatprep.subr.bf16.mxu0 0
  %2361 = vmatpush1.bf16.msra.mxu0 0
  %2362 = vmatprep.subr.bf16.mxu0 0
  %2363 = vmatpush1.bf16.msra.mxu0 0
  %2364 = vmatprep.subr.bf16.mxu0 0
  %2365 = vmatpush1.bf16.msra.mxu0 0
  %2366 = vmatprep.subr.bf16.mxu0 0
  %2367 = vmatpush1.bf16.msra.mxu0 0
  %2368 = vmatprep.mubr.bf16.mxu0 0
  %2369 = vmatmul.mubr.bf16.gmra.mrb[0].mxu0 %v2331
  %v2370 = vpop.f32.mrb[0].mxu0
  %v2371 = vadd.f32 0.0, %v2370
  %v2372 = vpop.f32.mrb[0].mxu0
  %v2373 = vpop.f32.mrb[0].mxu0
  %v2374 = vadd.f32 0.0, %v2373
  %v2375 = vpop.f32.mrb[0].mxu0
  %2376 = vmatprep.mubr.bf16.mxu0 0
  %2377 = vmatmul.mubr.bf16.gmra.mrb[0].mxu0 %v2334
  %v2378 = vpop.f32.mrb[0].mxu0
  %v2379 = vadd.f32 0.0, %v2378
  %v2380 = vpop.f32.mrb[0].mxu0
  %v2381 = vpop.f32.mrb[0].mxu0
  %v2382 = vadd.f32 0.0, %v2381
  %v2383 = vpop.f32.mrb[0].mxu0
  %2384 = vdwg.mxu0
  %s2385 = scalar_lea.vmem %s19, 16
  %v2386 = vld [vmem:[%s2385] sm:$0xf]
  %v2387 = vld [vmem:[%s2385 + $0x4] sm:$0xf]
  %v2388 = vld [vmem:[%s2385 + $0x8] sm:$0xf]
  %v2389 = vld [vmem:[%s2385 + $0xc] sm:$0xf]
  %v2394 = vunpack.c.l.b16 %v2386
  %v2395 = vunpack.c.l.b16 %v2387
  %v2396 = vunpack.c.l.b16 %v2388
  %v2397 = vunpack.c.l.b16 %v2389
  %v2398 = vpack.c.b16 %v2395, %v2394
  %v2399 = vpack.c.b16 %v2397, %v2396
  %v2401 = vsel %vm112, %v2398, 0
  %v2404 = vsel %vm112, %v2399, 0
  %2406 = vmatprep.subr.bf16.mxu0 0
  %2407 = vmatpush1.bf16.msra.mxu0 %v2314
  %2408 = vmatprep.subr.bf16.mxu0 0
  %2409 = vmatpush1.bf16.msra.mxu0 %v2315
  %2410 = vmatprep.subr.bf16.mxu0 0
  %2411 = vmatpush1.bf16.msra.mxu0 0
  %2412 = vmatprep.subr.bf16.mxu0 0
  %2413 = vmatpush1.bf16.msra.mxu0 0
  %2414 = vmatprep.subr.bf16.mxu0 0
  %2415 = vmatpush1.bf16.msra.mxu0 0
  %2416 = vmatprep.subr.bf16.mxu0 0
  %2417 = vmatpush1.bf16.msra.mxu0 0
  %2418 = vmatprep.subr.bf16.mxu0 0
  %2419 = vmatpush1.bf16.msra.mxu0 0
  %2420 = vmatprep.subr.bf16.mxu0 0
  %2421 = vmatpush1.bf16.msra.mxu0 0
  %2422 = vmatprep.subr.bf16.mxu0 0
  %2423 = vmatpush1.bf16.msra.mxu0 0
  %2424 = vmatprep.subr.bf16.mxu0 0
  %2425 = vmatpush1.bf16.msra.mxu0 0
  %2426 = vmatprep.subr.bf16.mxu0 0
  %2427 = vmatpush1.bf16.msra.mxu0 0
  %2428 = vmatprep.subr.bf16.mxu0 0
  %2429 = vmatpush1.bf16.msra.mxu0 0
  %2430 = vmatprep.subr.bf16.mxu0 0
  %2431 = vmatpush1.bf16.msra.mxu0 0
  %2432 = vmatprep.subr.bf16.mxu0 0
  %2433 = vmatpush1.bf16.msra.mxu0 0
  %2434 = vmatprep.subr.bf16.mxu0 0
  %2435 = vmatpush1.bf16.msra.mxu0 0
  %2436 = vmatprep.subr.bf16.mxu0 0
  %2437 = vmatpush1.bf16.msra.mxu0 0
  %2438 = vmatprep.mubr.bf16.mxu0 0
  %2439 = vmatmul.mubr.bf16.gmra.mrb[0].mxu0 %v2401
  %v2440 = vpop.f32.mrb[0].mxu0
  %v2441 = vadd.f32 0.0, %v2440
  %v2442 = vpop.f32.mrb[0].mxu0
  %v2443 = vpop.f32.mrb[0].mxu0
  %v2444 = vadd.f32 0.0, %v2443
  %v2445 = vpop.f32.mrb[0].mxu0
  %2446 = vmatprep.mubr.bf16.mxu0 0
  %2447 = vmatmul.mubr.bf16.gmra.mrb[0].mxu0 %v2404
  %v2448 = vpop.f32.mrb[0].mxu0
  %v2449 = vadd.f32 0.0, %v2448
  %v2450 = vpop.f32.mrb[0].mxu0
  %v2451 = vpop.f32.mrb[0].mxu0
  %v2452 = vadd.f32 0.0, %v2451
  %v2453 = vpop.f32.mrb[0].mxu0
  %2454 = vdwg.mxu0
  %s2455 = scalar_lea.vmem %s19, 32
  %v2456 = vld [vmem:[%s2455] sm:$0xf]
  %v2457 = vld [vmem:[%s2455 + $0x4] sm:$0xf]
  %v2458 = vld [vmem:[%s2455 + $0x8] sm:$0xf]
  %v2459 = vld [vmem:[%s2455 + $0xc] sm:$0xf]
  %v2464 = vunpack.c.l.b16 %v2456
  %v2465 = vunpack.c.l.b16 %v2457
  %v2466 = vunpack.c.l.b16 %v2458
  %v2467 = vunpack.c.l.b16 %v2459
  %v2468 = vpack.c.b16 %v2465, %v2464
  %v2469 = vpack.c.b16 %v2467, %v2466
  %v2471 = vsel %vm112, %v2468, 0
  %v2474 = vsel %vm112, %v2469, 0
  %2476 = vmatprep.subr.bf16.mxu0 0
  %2477 = vmatpush1.bf16.msra.mxu0 %v2314
  %2478 = vmatprep.subr.bf16.mxu0 0
  %2479 = vmatpush1.bf16.msra.mxu0 %v2315
  %2480 = vmatprep.subr.bf16.mxu0 0
  %2481 = vmatpush1.bf16.msra.mxu0 0
  %2482 = vmatprep.subr.bf16.mxu0 0
  %2483 = vmatpush1.bf16.msra.mxu0 0
  %2484 = vmatprep.subr.bf16.mxu0 0
  %2485 = vmatpush1.bf16.msra.mxu0 0
  %2486 = vmatprep.subr.bf16.mxu0 0
  %2487 = vmatpush1.bf16.msra.mxu0 0
  %2488 = vmatprep.subr.bf16.mxu0 0
  %2489 = vmatpush1.bf16.msra.mxu0 0
  %2490 = vmatprep.subr.bf16.mxu0 0
  %2491 = vmatpush1.bf16.msra.mxu0 0
  %2492 = vmatprep.subr.bf16.mxu0 0
  %2493 = vmatpush1.bf16.msra.mxu0 0
  %2494 = vmatprep.subr.bf16.mxu0 0
  %2495 = vmatpush1.bf16.msra.mxu0 0
  %2496 = vmatprep.subr.bf16.mxu0 0
  %2497 = vmatpush1.bf16.msra.mxu0 0
  %2498 = vmatprep.subr.bf16.mxu0 0
  %2499 = vmatpush1.bf16.msra.mxu0 0
  %2500 = vmatprep.subr.bf16.mxu0 0
  %2501 = vmatpush1.bf16.msra.mxu0 0
  %2502 = vmatprep.subr.bf16.mxu0 0
  %2503 = vmatpush1.bf16.msra.mxu0 0
  %2504 = vmatprep.subr.bf16.mxu0 0
  %2505 = vmatpush1.bf16.msra.mxu0 0
  %2506 = vmatprep.subr.bf16.mxu0 0
  %2507 = vmatpush1.bf16.msra.mxu0 0
  %2508 = vmatprep.mubr.bf16.mxu0 0
  %2509 = vmatmul.mubr.bf16.gmra.mrb[0].mxu0 %v2471
  %v2510 = vpop.f32.mrb[0].mxu0
  %v2511 = vadd.f32 0.0, %v2510
  %v2512 = vpop.f32.mrb[0].mxu0
  %v2513 = vpop.f32.mrb[0].mxu0
  %v2514 = vadd.f32 0.0, %v2513
  %v2515 = vpop.f32.mrb[0].mxu0
  %2516 = vmatprep.mubr.bf16.mxu0 0
  %2517 = vmatmul.mubr.bf16.gmra.mrb[0].mxu0 %v2474
  %v2518 = vpop.f32.mrb[0].mxu0
  %v2519 = vadd.f32 0.0, %v2518
  %v2520 = vpop.f32.mrb[0].mxu0
  %v2521 = vpop.f32.mrb[0].mxu0
  %v2522 = vadd.f32 0.0, %v2521
  %v2523 = vpop.f32.mrb[0].mxu0
  %2524 = vdwg.mxu0
  %v2525 = vpack.c.bf16 %v2374, %v2371
  %v2526 = vpack.c.bf16 %v2444, %v2441
  %v2527 = vpack.c.bf16 %v2514, %v2511
  %v2528 = vpack.c.bf16 %v2382, %v2379
  %v2529 = vpack.c.bf16 %v2452, %v2449
  %v2530 = vpack.c.bf16 %v2522, %v2519
  %v2531 = vld [vmem:[%s21] sm:$0x1]
  %v2533 = vlaneseq
  %v2534 = vshrl.u32 %v2533, 7
  %v2535 = vsub.s32 0, %v2534
  %v2536 = vrot.slane %v2531, %v2535
  %v2586 = vunpack.c.l.b16 %v2266
  %v2587 = vunpack.c.l.b16 %v2267
  %v2588 = vunpack.c.l.b16 %v2268
  %v2589 = vunpack.c.l.b16 %v2269
  %v2590 = vunpack.c.l.b16 %v2270
  %v2591 = vunpack.c.l.b16 %v2271
  %v2592 = vunpack.c.l.b16 %v2272
  %v2593 = vunpack.c.l.b16 %v2273
  %v2594 = vunpack.c.l.b16 %v2274
  %v2595 = vunpack.c.l.b16 %v2275
  %v2596 = vunpack.c.l.b16 %v2276
  %v2597 = vunpack.c.l.b16 %v2277
  %v2598 = vunpack.c.l.b16 %v2278
  %v2599 = vunpack.c.l.b16 %v2279
  %v2600 = vunpack.c.l.b16 %v2280
  %v2601 = vunpack.c.l.b16 %v2281
  %v2602 = vunpack.c.l.b16 %v2282
  %v2603 = vunpack.c.l.b16 %v2283
  %v2604 = vunpack.c.l.b16 %v2284
  %v2605 = vunpack.c.l.b16 %v2285
  %v2606 = vunpack.c.l.b16 %v2286
  %v2607 = vunpack.c.l.b16 %v2287
  %v2608 = vunpack.c.l.b16 %v2288
  %v2609 = vunpack.c.l.b16 %v2289
  %v2610 = vunpack.c.l.b16 %v2290
  %v2611 = vunpack.c.l.b16 %v2291
  %v2612 = vunpack.c.l.b16 %v2292
  %v2613 = vunpack.c.l.b16 %v2293
  %v2614 = vunpack.c.l.b16 %v2294
  %v2615 = vunpack.c.l.b16 %v2295
  %v2616 = vunpack.c.l.b16 %v2296
  %v2617 = vunpack.c.l.b16 %v2297
  %v2618 = vunpack.c.l.b16 %v2298
  %v2619 = vunpack.c.l.b16 %v2299
  %v2620 = vunpack.c.l.b16 %v2300
  %v2621 = vunpack.c.l.b16 %v2301
  %v2622 = vunpack.c.l.b16 %v2302
  %v2623 = vunpack.c.l.b16 %v2303
  %v2624 = vunpack.c.l.b16 %v2304
  %v2625 = vunpack.c.l.b16 %v2305
  %v2626 = vunpack.c.l.b16 %v2306
  %v2627 = vunpack.c.l.b16 %v2307
  %v2628 = vunpack.c.l.b16 %v2308
  %v2629 = vunpack.c.l.b16 %v2309
  %v2630 = vunpack.c.l.b16 %v2310
  %v2631 = vunpack.c.l.b16 %v2311
  %v2632 = vunpack.c.l.b16 %v2312
  %v2633 = vunpack.c.l.b16 %v2313
  %v2634 = vpack.c.b16 %v2587, %v2586
  %v2635 = vpack.c.b16 %v2589, %v2588
  %v2636 = vpack.c.b16 %v2591, %v2590
  %v2637 = vpack.c.b16 %v2593, %v2592
  %v2638 = vpack.c.b16 %v2595, %v2594
  %v2639 = vpack.c.b16 %v2597, %v2596
  %v2640 = vpack.c.b16 %v2599, %v2598
  %v2641 = vpack.c.b16 %v2601, %v2600
  %v2642 = vpack.c.b16 %v2603, %v2602
  %v2643 = vpack.c.b16 %v2605, %v2604
  %v2644 = vpack.c.b16 %v2607, %v2606
  %v2645 = vpack.c.b16 %v2609, %v2608
  %v2646 = vpack.c.b16 %v2611, %v2610
  %v2647 = vpack.c.b16 %v2613, %v2612
  %v2648 = vpack.c.b16 %v2615, %v2614
  %v2649 = vpack.c.b16 %v2617, %v2616
  %v2650 = vpack.c.b16 %v2619, %v2618
  %v2651 = vpack.c.b16 %v2621, %v2620
  %v2652 = vpack.c.b16 %v2623, %v2622
  %v2653 = vpack.c.b16 %v2625, %v2624
  %v2654 = vpack.c.b16 %v2627, %v2626
  %v2655 = vpack.c.b16 %v2629, %v2628
  %v2656 = vpack.c.b16 %v2631, %v2630
  %v2657 = vpack.c.b16 %v2633, %v2632
  %2682 = vmatprep.subr.bf16.mxu0 0
  %2683 = vmatpush1.bf16.msra.mxu0 %v2634
  %2684 = vmatprep.subr.bf16.mxu0 0
  %2685 = vmatpush1.bf16.msra.mxu0 %v2635
  %2686 = vmatprep.subr.bf16.mxu0 0
  %2687 = vmatpush1.bf16.msra.mxu0 %v2636
  %2688 = vmatprep.subr.bf16.mxu0 0
  %2689 = vmatpush1.bf16.msra.mxu0 %v2637
  %2690 = vmatprep.subr.bf16.mxu0 0
  %2691 = vmatpush1.bf16.msra.mxu0 %v2638
  %2692 = vmatprep.subr.bf16.mxu0 0
  %2693 = vmatpush1.bf16.msra.mxu0 %v2639
  %2694 = vmatprep.subr.bf16.mxu0 0
  %2695 = vmatpush1.bf16.msra.mxu0 %v2640
  %2696 = vmatprep.subr.bf16.mxu0 0
  %2697 = vmatpush1.bf16.msra.mxu0 %v2641
  %2698 = vmatprep.subr.bf16.mxu0 0
  %2699 = vmatpush1.bf16.msra.mxu0 %v2642
  %2700 = vmatprep.subr.bf16.mxu0 0
  %2701 = vmatpush1.bf16.msra.mxu0 %v2643
  %2702 = vmatprep.subr.bf16.mxu0 0
  %2703 = vmatpush1.bf16.msra.mxu0 %v2644
  %2704 = vmatprep.subr.bf16.mxu0 0
  %2705 = vmatpush1.bf16.msra.mxu0 %v2645
  %2706 = vmatprep.subr.bf16.mxu0 0
  %2707 = vmatpush1.bf16.msra.mxu0 %v2646
  %2708 = vmatprep.subr.bf16.mxu0 0
  %2709 = vmatpush1.bf16.msra.mxu0 %v2647
  %2710 = vmatprep.subr.bf16.mxu0 0
  %2711 = vmatpush1.bf16.msra.mxu0 %v2648
  %2712 = vmatprep.subr.bf16.mxu0 0
  %2713 = vmatpush1.bf16.msra.mxu0 %v2649
  %2714 = vmatprep.mubr.bf16.mxu0 %v2526
  %2715 = vmatmul.mubr.bf16.gmra.mrb[0].mxu0 %v2525
  %v2716 = vpop.f32.mrb[0].mxu0
  %v2717 = vadd.f32 %v2536, %v2716
  %v2718 = vpop.f32.mrb[0].mxu0
  %v2719 = vpop.f32.mrb[0].mxu0
  %v2720 = vadd.f32 %v2536, %v2719
  %v2721 = vpop.f32.mrb[0].mxu0
  %2722 = vmatprep.mubr.bf16.mxu0 %v2529
  %2723 = vmatmul.mubr.bf16.gmra.mrb[0].mxu0 %v2528
  %v2724 = vpop.f32.mrb[0].mxu0
  %v2725 = vadd.f32 %v2536, %v2724
  %v2726 = vpop.f32.mrb[0].mxu0
  %v2727 = vpop.f32.mrb[0].mxu0
  %v2728 = vadd.f32 %v2536, %v2727
  %v2729 = vpop.f32.mrb[0].mxu0
  %2730 = vdwg.mxu0
  %2731 = vmatprep.subr.bf16.mxu0 0
  %2732 = vmatpush1.bf16.msra.mxu0 %v2650
  %2733 = vmatprep.subr.bf16.mxu0 0
  %2734 = vmatpush1.bf16.msra.mxu0 %v2651
  %2735 = vmatprep.subr.bf16.mxu0 0
  %2736 = vmatpush1.bf16.msra.mxu0 %v2652
  %2737 = vmatprep.subr.bf16.mxu0 0
  %2738 = vmatpush1.bf16.msra.mxu0 %v2653
  %2739 = vmatprep.subr.bf16.mxu0 0
  %2740 = vmatpush1.bf16.msra.mxu0 %v2654
  %2741 = vmatprep.subr.bf16.mxu0 0
  %2742 = vmatpush1.bf16.msra.mxu0 %v2655
  %2743 = vmatprep.subr.bf16.mxu0 0
  %2744 = vmatpush1.bf16.msra.mxu0 %v2656
  %2745 = vmatprep.subr.bf16.mxu0 0
  %2746 = vmatpush1.bf16.msra.mxu0 %v2657
  %2747 = vmatprep.subr.bf16.mxu0 0
  %2748 = vmatpush1.bf16.msra.mxu0 0
  %2749 = vmatprep.subr.bf16.mxu0 0
  %2750 = vmatpush1.bf16.msra.mxu0 0
  %2751 = vmatprep.subr.bf16.mxu0 0
  %2752 = vmatpush1.bf16.msra.mxu0 0
  %2753 = vmatprep.subr.bf16.mxu0 0
  %2754 = vmatpush1.bf16.msra.mxu0 0
  %2755 = vmatprep.subr.bf16.mxu0 0
  %2756 = vmatpush1.bf16.msra.mxu0 0
  %2757 = vmatprep.subr.bf16.mxu0 0
  %2758 = vmatpush1.bf16.msra.mxu0 0
  %2759 = vmatprep.subr.bf16.mxu0 0
  %2760 = vmatpush1.bf16.msra.mxu0 0
  %2761 = vmatprep.subr.bf16.mxu0 0
  %2762 = vmatpush1.bf16.msra.mxu0 0
  %2763 = vmatprep.mubr.bf16.mxu0 0
  %2764 = vmatmul.mubr.bf16.gmra.mrb[0].mxu0 %v2527
  %v2765 = vpop.f32.mrb[0].mxu0
  %v2766 = vadd.f32 %v2717, %v2765
  %v2767 = vpop.f32.mrb[0].mxu0
  %v2768 = vpop.f32.mrb[0].mxu0
  %v2769 = vadd.f32 %v2720, %v2768
  %v2770 = vpop.f32.mrb[0].mxu0
  %2771 = vmatprep.mubr.bf16.mxu0 0
  %2772 = vmatmul.mubr.bf16.gmra.mrb[0].mxu0 %v2530
  %v2773 = vpop.f32.mrb[0].mxu0
  %v2774 = vadd.f32 %v2725, %v2773
  %v2775 = vpop.f32.mrb[0].mxu0
  %v2776 = vpop.f32.mrb[0].mxu0
  %v2777 = vadd.f32 %v2728, %v2776
  %v2778 = vpop.f32.mrb[0].mxu0
  %2779 = vdwg.mxu0
  %2780 = vst.msk [vmem:[%s22] sm:$0xff] %vm269, %v2766
  %2781 = vst.msk [vmem:[%s22 + $0x8] sm:$0xff] %vm269, %v2769
  %2782 = vst.msk [vmem:[%s22 + $0x10] sm:$0xff] %vm269, %v2774
  %2783 = vst.msk [vmem:[%s22 + $0x18] sm:$0xff] %vm269, %v2777
  %vm2784 = vcmask 123904
  %2785 = vst.msk [vmem:[%s23] sm:$0x3] %vm2784, %v1056
  // Predicated region
  $region90: #{convvae_forward.1} parent=0 // pred_check
    _
  $region91: #{convvae_forward.1} parent=0 // pred_check_branch
    %2787 = sbr.rel (0) target = $region93
  $region92: #{convvae_forward.1} parent=0 // pred_region
    _
  $region93: #{convvae_forward.1} parent=0 // pred_fallthru
    _
  // Predicated region
  $region94: #{convvae_forward.1} parent=0 // pred_check
    _
  $region95: #{convvae_forward.1} parent=0 // pred_check_branch
    %2789 = sbr.rel (0) target = $region97
  $region96: #{convvae_forward.1} parent=0 // pred_region
    _
  $region97: #{convvae_forward.1} parent=0 // pred_fallthru
    _
  // Predicated region
  $region98: #{convvae_forward.1} parent=0 // pred_check
    _
  $region99: #{convvae_forward.1} parent=0 // pred_check_branch
    %2791 = sbr.rel (0) target = $region101
  $region100: #{convvae_forward.1} parent=0 // pred_region
    _
  $region101: #{convvae_forward.1} parent=0 // pred_fallthru
    _
  // Predicated region
  $region102: #{convvae_forward.1} parent=0 // pred_check
    _
  $region103: #{convvae_forward.1} parent=0 // pred_check_branch
    %2793 = sbr.rel (0) target = $region105
  $region104: #{convvae_forward.1} parent=0 // pred_region
    _
  $region105: #{convvae_forward.1} parent=0 // pred_fallthru
    _

</llo_original>
